<compile_context>
chip_gen: v5e
topology: v5e:2x2
jax: 0.10.0
libtpu: 0.0.40
codegen_flags: <defaults>
</compile_context>

<pallas_src>
import math

import jax
import jax.numpy as jnp
import numpy as np
from jax.experimental import pallas as pl
from jax.experimental.pallas import tpu as pltpu

EPS = 1e-5
LANE = 128  # TPU lane width; channel dims are padded to this for dense vregs.


def _round_up(x, m):
    return (x + m - 1) // m * m


def _nbytes(shape, dtype):
    return math.prod(shape) * np.dtype(dtype).itemsize


# --------------------------------------------------------------------------- #
# One-time capability probes / per-generation limits
# --------------------------------------------------------------------------- #
def _probe_single_buffered():
    """Probe whether pipeline_mode=pl.Buffered(1) (single-buffered, grid-
    invariant operands) is supported by this Pallas/Mosaic build; otherwise
    fall back to default double buffering."""
    try:
        spec = pl.BlockSpec((8, LANE), lambda i: (0, 0),
                            pipeline_mode=pl.Buffered(1))

        def _k(x_ref, o_ref):
            o_ref[...] = x_ref[...] + 1.0

        fn = pl.pallas_call(
            _k, grid=(2,), in_specs=[spec],
            out_specs=pl.BlockSpec((8, LANE), lambda i: (0, 0)),
            out_shape=jax.ShapeDtypeStruct((8, LANE), jnp.float32))
        jax.block_until_ready(fn(jnp.zeros((8, LANE), jnp.float32)))
        return True
    except Exception:  # any failure -> use default (double) buffering
        return False


_SINGLE_BUFFER_OK = _probe_single_buffered()
_VMEM_CAP = None


def _vmem_cap_bytes():
    """Per-generation VMEM budget: ~80% of physical VMEM (v5e/v6e: 128 MiB,
    v7x: 64 MiB per TC), with a conservative fallback if the query fails."""
    global _VMEM_CAP
    if _VMEM_CAP is None:
        phys = 64 << 20
        try:
            info = pltpu.get_tpu_info()
            for attr in ("vmem_capacity_bytes", "vmem_size_bytes", "vmem_bytes"):
                v = getattr(info, attr, None)
                if v:
                    phys = int(v)
                    break
        except Exception:
            pass
        _VMEM_CAP = max(int(phys * 0.8), 32 << 20)
    return _VMEM_CAP


def _cparams(stream_bytes, resident_bytes=0, scratch_bytes=0, temp_bytes=0):
    """VMEM limit sized from the real working set: double-buffered streamed
    blocks, single/double-buffered resident operands, scratch, in-kernel
    temporaries, plus slack for Mosaic-internal buffers."""
    rf = 1 if _SINGLE_BUFFER_OK else 2
    need = (2 * stream_bytes + rf * resident_bytes + scratch_bytes
            + temp_bytes + (4 << 20))
    limit = int(min(max(need, 16 << 20), _vmem_cap_bytes()))
    return pltpu.CompilerParams(dimension_semantics=("parallel",),
                                vmem_limit_bytes=limit)


def _resident_spec(a):
    """BlockSpec for a grid-invariant operand: constant index_map, and single
    buffering (no point double-buffering a block that never changes)."""
    idx = lambda n: (0,) * a.ndim
    if _SINGLE_BUFFER_OK:
        return pl.BlockSpec(a.shape, idx, pipeline_mode=pl.Buffered(1))
    return pl.BlockSpec(a.shape, idx)


# --------------------------------------------------------------------------- #
# In-kernel helpers
# --------------------------------------------------------------------------- #
def _zero_halo(pad_sc):
    """Zero only the 1-element halo border; the interior is fully overwritten
    each step (no full-plane store of zeros)."""
    Hh, Wh, C = pad_sc.shape
    z_row = jnp.zeros((1, Wh, C), pad_sc.dtype)
    pad_sc[0:1, :, :] = z_row
    pad_sc[Hh - 1:Hh, :, :] = z_row
    z_col = jnp.zeros((Hh, 1, C), pad_sc.dtype)
    pad_sc[:, 0:1, :] = z_col
    pad_sc[:, Wh - 1:Wh, :] = z_col


def _conv3x3_folded(pad_sc, w_ref):
    """3x3 'same' conv of the zero-halo padded bf16 tile in `pad_sc`.

    The taps are folded into the contraction dim per kernel-row (dy): three
    (Hp*Wp, 3*C) bf16 groups, each a single MXU matmul accumulated in f32, so
    the monolithic (Hp*Wp, 9*C) operand is never materialized."""
    Hp, Wp, C = pad_sc.shape[0] - 2, pad_sc.shape[1] - 2, pad_sc.shape[2]
    Cp = w_ref.shape[1]
    acc = jnp.zeros((Hp * Wp, Cp), jnp.float32)
    for dy in range(3):
        group = jnp.concatenate(
            [pad_sc[pl.ds(dy, Hp), pl.ds(dx, Wp), :].reshape(Hp * Wp, C)
             for dx in range(3)], axis=1)                         # bf16 (HW,3C)
        acc = acc + jnp.dot(group, w_ref[dy * 3 * C:(dy + 1) * 3 * C, :],
                            preferred_element_type=jnp.float32)   # MXU, f32 acc
    return acc                                                    # (Hp*Wp, Cp)


def _store_stats(stats_ref, h):
    """Single-pass per-sample sum / sum-of-squares from the f32 accumulator,
    chunked over rows so the h*h temporary never covers the whole plane."""
    rows, C = h.shape
    n_chunks = next((c for c in (8, 4, 2) if rows % c == 0), 1)
    ck = rows // n_chunks
    s = jnp.zeros((1, C), jnp.float32)
    ss = jnp.zeros((1, C), jnp.float32)
    for i in range(n_chunks):
        blk = h[i * ck:(i + 1) * ck, :]
        s = s + jnp.sum(blk, axis=0, keepdims=True)
        ss = ss + jnp.sum(blk * blk, axis=0, keepdims=True)
    stats_ref[0, 0:1, :] = s
    stats_ref[0, 1:2, :] = ss


# --------------------------------------------------------------------------- #
# Kernels (grid = (N,), one batch element per fully-parallel step)
# --------------------------------------------------------------------------- #
def _pool_conv1_kernel(x_ref, w_ref, h_ref, stats_ref, pad_sc):
    # x_ref: (1, H, Wp, 2*Cin_p) f32 -- NHWC with W split into (Wp, pair), so
    # the 2x2 pool taps are plain lane slices (no strided sub-lane accesses).
    _, Hp, Wp, Cp = h_ref.shape
    Cin = pad_sc.shape[-1]

    xt = x_ref[0]                                             # (H, Wp, 2*Cin_p)
    wmax = jnp.maximum(xt[:, :, :Cin], xt[:, :, Cin:])        # pool along W
    pooled = jnp.max(wmax.reshape(Hp, 2, Wp, Cin), axis=1)    # pool along H

    _zero_halo(pad_sc)
    pad_sc[pl.ds(1, Hp), pl.ds(1, Wp), :] = pooled.astype(pad_sc.dtype)

    h = _conv3x3_folded(pad_sc, w_ref)                        # (Hp*Wp, Cp) f32
    h_ref[0] = h.reshape(Hp, Wp, Cp).astype(h_ref.dtype)      # bf16 writeback
    _store_stats(stats_ref, h)


def _bn_relu_conv2_kernel(h1_ref, sc_ref, sh_ref, w_ref,
                          h2_ref, stats_ref, pad_sc):
    _, Hp, Wp, Cp = h2_ref.shape
    # Train-mode BatchNorm (precomputed per-channel scale/shift) + ReLU in f32.
    y = jnp.maximum(h1_ref[0].astype(jnp.float32) * sc_ref[...].reshape(1, 1, Cp)
                    + sh_ref[...].reshape(1, 1, Cp), 0.0)

    _zero_halo(pad_sc)
    pad_sc[pl.ds(1, Hp), pl.ds(1, Wp), :] = y.astype(pad_sc.dtype)

    h = _conv3x3_folded(pad_sc, w_ref)
    h2_ref[0] = h.reshape(Hp, Wp, Cp).astype(h2_ref.dtype)
    _store_stats(stats_ref, h)


def _bn_relu_kernel(h2_ref, sc_ref, sh_ref, out_ref):
    _, Hp, Wp, Cp = out_ref.shape
    out_ref[0] = jnp.maximum(
        h2_ref[0].astype(jnp.float32) * sc_ref[...].reshape(1, 1, Cp)
        + sh_ref[...].reshape(1, 1, Cp), 0.0)


# --------------------------------------------------------------------------- #
# Host-side glue
# --------------------------------------------------------------------------- #
def _bn_affine(pstats, count, gamma_p, beta_p):
    """Fold batch statistics into a per-channel affine (scale, shift), f32."""
    stats = jnp.sum(pstats, axis=0)                 # (2, Cp)
    mean = stats[0] / count
    var = stats[1] / count - mean * mean            # biased variance (train mode)
    scale = gamma_p * jax.lax.rsqrt(var + EPS)
    shift = beta_p - mean * scale
    return scale.reshape(1, -1), shift.reshape(1, -1)


def down_forward(x_nchw, params):
    w1, cb1, g1, bt1, w2, cb2, g2, bt2 = params
    # Conv biases are constant per-channel shifts applied before train-mode
    # BatchNorm, so they cancel exactly in the normalized output -> dropped.
    del cb1, cb2

    N, Cin, H, W = x_nchw.shape
    assert H % 2 == 0 and W % 2 == 0, "MaxPool2d(2) kernel assumes even H, W"
    Hp, Wp = H // 2, W // 2
    Cout = w1.shape[-1]
    Cin_p = _round_up(Cin, LANE)
    Cp = _round_up(Cout, LANE)
    f32, bf16 = jnp.float32, jnp.bfloat16

    # NCHW -> NHWC, pad channels to the 128-lane width, split W into (Wp, pair)
    # so the 2x2 pool taps are free lane slices inside the kernel.
    x = jnp.transpose(x_nchw, (0, 2, 3, 1)).astype(f32)
    x = jnp.pad(x, ((0, 0), (0, 0), (0, 0), (0, Cin_p - Cin)))
    x = x.reshape(N, H, Wp, 2 * Cin_p)

    # Fold the 3x3 taps into the contraction dim ((ky, kx, cin) major->minor,
    # matching the per-dy patch groups), pad channels, cast to bf16.
    w1s = jnp.pad(w1, ((0, 0), (0, 0), (0, Cin_p - Cin), (0, Cp - Cout)))
    w1s = w1s.reshape(9 * Cin_p, Cp).astype(bf16)
    w2s = jnp.pad(w2, ((0, 0), (0, 0), (0, Cp - Cout), (0, Cp - Cout)))
    w2s = w2s.reshape(9 * Cp, Cp).astype(bf16)

    def padc(v):
        return jnp.pad(v.reshape(-1).astype(f32), (0, Cp - Cout))

    g1p, bt1p = padc(g1), padc(bt1)
    g2p, bt2p = padc(g2), padc(bt2)

    count = jnp.float32(N * Hp * Wp)

    def stream4(shape):
        return pl.BlockSpec(shape, lambda n: (n, 0, 0, 0))

    stats_spec = pl.BlockSpec((1, 2, Cp), lambda n: (n, 0, 0))

    # ---- Kernel A: MaxPool2d(2) + Conv1 + BN1 statistics --------------------
    streamA = (_nbytes((1, H, Wp, 2 * Cin_p), f32)
               + _nbytes((1, Hp, Wp, Cp), bf16) + _nbytes((1, 2, Cp), f32))
    residentA = _nbytes(w1s.shape, bf16)
    scratchA = _nbytes((Hp + 2, Wp + 2, Cin_p), bf16)
    tempA = (_nbytes((H, Wp, Cin_p), f32)                  # pooling temporaries
             + _nbytes((Hp * Wp, 3 * Cin_p), bf16)         # per-dy patch group
             + 2 * _nbytes((Hp * Wp, Cp), f32))            # f32 acc + stats chunk
    costA = pl.CostEstimate(
        flops=2 * N * Hp * Wp * 9 * Cin_p * Cp + 8 * N * Hp * Wp * Cp,
        transcendentals=0,
        bytes_accessed=int(x.size * 4 + w1s.size * 2
                           + N * Hp * Wp * Cp * 2 + N * 2 * Cp * 4))
    h1, pstats1 = pl.pallas_call(
        _pool_conv1_kernel,
        grid=(N,),
        in_specs=[stream4((1, H, Wp, 2 * Cin_p)), _resident_spec(w1s)],
        out_specs=(stream4((1, Hp, Wp, Cp)), stats_spec),
        out_shape=(jax.ShapeDtypeStruct((N, Hp, Wp, Cp), bf16),
                   jax.ShapeDtypeStruct((N, 2, Cp), f32)),
        scratch_shapes=[pltpu.VMEM((Hp + 2, Wp + 2, Cin_p), bf16)],
        compiler_params=_cparams(streamA, residentA, scratchA, tempA),
        cost_estimate=costA,
    )(x, w1s)

    scale1, shift1 = _bn_affine(pstats1, count, g1p, bt1p)

    # ---- Kernel B: BN1 + ReLU + Conv2 + BN2 statistics ----------------------
    streamB = 2 * _nbytes((1, Hp, Wp, Cp), bf16) + _nbytes((1, 2, Cp), f32)
    residentB = _nbytes(w2s.shape, bf16) + 2 * _nbytes((1, Cp), f32)
    scratchB = _nbytes((Hp + 2, Wp + 2, Cp), bf16)
    tempB = (_nbytes((Hp, Wp, Cp), f32)                    # BN+ReLU in f32
             + _nbytes((Hp * Wp, 3 * Cp), bf16)
             + 2 * _nbytes((Hp * Wp, Cp), f32))
    costB = pl.CostEstimate(
        flops=2 * N * Hp * Wp * 9 * Cp * Cp + 8 * N * Hp * Wp * Cp,
        transcendentals=0,
        bytes_accessed=int(2 * N * Hp * Wp * Cp * 2 + w2s.size * 2
                           + 4 * Cp * 4 + N * 2 * Cp * 4))
    h2, pstats2 = pl.pallas_call(
        _bn_relu_conv2_kernel,
        grid=(N,),
        in_specs=[stream4((1, Hp, Wp, Cp)), _resident_spec(scale1),
                  _resident_spec(shift1), _resident_spec(w2s)],
        out_specs=(stream4((1, Hp, Wp, Cp)), stats_spec),
        out_shape=(jax.ShapeDtypeStruct((N, Hp, Wp, Cp), bf16),
                   jax.ShapeDtypeStruct((N, 2, Cp), f32)),
        scratch_shapes=[pltpu.VMEM((Hp + 2, Wp + 2, Cp), bf16)],
        compiler_params=_cparams(streamB, residentB, scratchB, tempB),
        cost_estimate=costB,
    )(h1, scale1, shift1, w2s)

    scale2, shift2 = _bn_affine(pstats2, count, g2p, bt2p)

    # ---- Kernel C: BN2 + ReLU (bandwidth-only; reads bf16 h2) ---------------
    # TODO(synk): when Down blocks are chained, fuse this into the next block's
    # pool+conv kernel; as a standalone module it must stay a separate pass
    # because BN2's batch statistics depend on all of h2.
    streamC = _nbytes((1, Hp, Wp, Cp), bf16) + _nbytes((1, Hp, Wp, Cp), f32)
    residentC = 2 * _nbytes((1, Cp), f32)
    costC = pl.CostEstimate(
        flops=3 * N * Hp * Wp * Cp, transcendentals=0,
        bytes_accessed=int(N * Hp * Wp * Cp * (2 + 4) + 2 * Cp * 4))
    out_p = pl.pallas_call(
        _bn_relu_kernel,
        grid=(N,),
        in_specs=[stream4((1, Hp, Wp, Cp)), _resident_spec(scale2),
                  _resident_spec(shift2)],
        out_specs=stream4((1, Hp, Wp, Cp)),
        out_shape=jax.ShapeDtypeStruct((N, Hp, Wp, Cp), f32),
        compiler_params=_cparams(streamC, residentC, 0,
                                 _nbytes((Hp, Wp, Cp), f32)),
        cost_estimate=costC,
    )(h2, scale2, shift2)

    # Drop channel padding, NHWC -> NCHW (PyTorch convention).
    return jnp.transpose(out_p[..., :Cout], (0, 3, 1, 2))


def ref_forward(x_nchw, params):
    """Pure-JAX f32 reference of Down.forward (train-mode BatchNorm)."""
    w1, cb1, g1, bt1, w2, cb2, g2, bt2 = params
    N, Cin, H, W = x_nchw.shape
    xp = jnp.max(x_nchw.reshape(N, Cin, H // 2, 2, W // 2, 2), axis=(3, 5))

    def conv_bn_relu(x, w, cb, g, bt):
        y = jax.lax.conv_general_dilated(
            x, w, window_strides=(1, 1), padding="SAME",
            dimension_numbers=("NCHW", "HWIO", "NCHW"))
        y = y + cb.reshape(1, -1, 1, 1)
        mean = jnp.mean(y, axis=(0, 2, 3), keepdims=True)
        var = jnp.mean((y - mean) ** 2, axis=(0, 2, 3), keepdims=True)
        y = (y - mean) * jax.lax.rsqrt(var + EPS) * g.reshape(1, -1, 1, 1) \
            + bt.reshape(1, -1, 1, 1)
        return jnp.maximum(y, 0.0)

    y = conv_bn_relu(xp, w1, cb1, g1, bt1)
    return conv_bn_relu(y, w2, cb2, g2, bt2)


if __name__ == "__main__":
    N, Cin, Cout, H, W = 2, 4, 8, 16, 16

    key = jax.random.PRNGKey(0)
    ks = jax.random.split(key, 9)
    # Deterministic synthetic parameters (shapes follow DoubleConv(Cin, Cout)).
    w1 = 0.2 * jax.random.normal(ks[0], (3, 3, Cin, Cout), jnp.float32)
    cb1 = 0.1 * jax.random.normal(ks[1], (Cout,), jnp.float32)
    g1 = 1.0 + 0.1 * jax.random.normal(ks[2], (Cout,), jnp.float32)
    bt1 = 0.1 * jax.random.normal(ks[3], (Cout,), jnp.float32)
    w2 = 0.2 * jax.random.normal(ks[4], (3, 3, Cout, Cout), jnp.float32)
    cb2 = 0.1 * jax.random.normal(ks[5], (Cout,), jnp.float32)
    g2 = 1.0 + 0.1 * jax.random.normal(ks[6], (Cout,), jnp.float32)
    bt2 = 0.1 * jax.random.normal(ks[7], (Cout,), jnp.float32)
    params = (w1, cb1, g1, bt1, w2, cb2, g2, bt2)

    x = jax.random.normal(ks[8], (N, Cin, H, W), jnp.float32)  # NCHW as PyTorch

    out = jax.block_until_ready(jax.jit(down_forward)(x, params))
    assert out.shape == (N, Cout, H // 2, W // 2), out.shape

    ref = jax.block_until_ready(ref_forward(x, params))
    err = float(jnp.max(jnp.abs(out - ref)))
    # Explicit accuracy decision: bf16 MXU operands + bf16 h1/h2 intermediates
    # (with f32 accumulation and f32 BN statistics) vs the pure-f32 reference.
    assert bool(jnp.allclose(out, ref, atol=6e-2, rtol=6e-2)), err

    print("KERNEL_OK")
</pallas_src>

<mosaic_0001>
module attributes {stable_mosaic.version = 11 : i64} {
  func.func @_k(%arg0: i32, %arg1: memref<8x128xf32, #tpu.memory_space<vmem>>, %arg2: memref<8x128xf32, #tpu.memory_space<vmem>>) attributes {dimension_semantics = [#tpu.dimension_semantics<arbitrary>], iteration_bounds = array<i64: 2>, scalar_prefetch = 0 : i64, scratch_operands = 0 : i64, tpu.core_type = #tpu.core_type<tc>, window_params = [{pipeline_mode = #tpu.pipeline_mode<synchronous>, transform_indices = @transform_0, window_bounds = array<i64: 8, 128>}, {pipeline_mode = #tpu.pipeline_mode<synchronous>, transform_indices = @transform_1, window_bounds = array<i64: 8, 128>}]} {
    %c0 = arith.constant 0 : index
    %c0_0 = arith.constant 0 : index
    %0 = vector.load %arg1[%c0, %c0_0] : memref<8x128xf32, #tpu.memory_space<vmem>>, vector<8x128xf32>
    %cst = arith.constant 1.000000e+00 : f32
    %1 = vector.broadcast %cst : f32 to vector<8x128xf32>
    %2 = arith.addf %0, %1 : vector<8x128xf32>
    %c0_1 = arith.constant 0 : index
    %c0_2 = arith.constant 0 : index
    %3 = vector.load %arg2[%c0_1, %c0_2] : memref<8x128xf32, #tpu.memory_space<vmem>>, vector<8x128xf32>
    tpu.vector_store %arg2[%c0_1, %c0_2], %2 {strides = array<i32>} : memref<8x128xf32, #tpu.memory_space<vmem>>, vector<8x128xf32>,
    return
  }
  func.func @transform_0(%arg0: i32) -> (i32, i32) {
    %c0_i32 = arith.constant 0 : i32
    %c0_i32_0 = arith.constant 0 : i32
    %c0_i32_1 = arith.constant 0 : i32
    return %c0_i32, %c0_i32_0 : i32, i32
  }
  func.func @transform_1(%arg0: i32) -> (i32, i32) {
    %c0_i32 = arith.constant 0 : i32
    %c0_i32_0 = arith.constant 0 : i32
    %c0_i32_1 = arith.constant 0 : i32
    return %c0_i32, %c0_i32_0 : i32, i32
  }
}

module attributes {stable_mosaic.version = 11 : i64} {
  func.func @_pool_conv1_kernel(%arg0: i32, %arg1: memref<1x16x8x256xf32, #tpu.memory_space<vmem>>, %arg2: memref<1152x128xbf16, #tpu.memory_space<vmem>>, %arg3: memref<1x8x8x128xbf16, #tpu.memory_space<vmem>>, %arg4: memref<1x2x128xf32, #tpu.memory_space<vmem>>, %arg5: memref<10x10x128xbf16, #tpu.memory_space<vmem>>) attributes {dimension_semantics = [#tpu.dimension_semantics<parallel>], iteration_bounds = array<i64: 2>, scalar_prefetch = 0 : i64, scratch_operands = 1 : i64, tpu.core_type = #tpu.core_type<tc>, window_params = [{transform_indices = @transform_0, window_bounds = array<i64: 1, 16, 8, 256>}, {pipeline_mode = #tpu.pipeline_mode<synchronous>, transform_indices = @transform_1, window_bounds = array<i64: 1152, 128>}, {transform_indices = @transform_2, window_bounds = array<i64: 1, 8, 8, 128>}, {transform_indices = @transform_3, window_bounds = array<i64: 1, 2, 128>}]} {
    %c0 = arith.constant 0 : index
    %c0_0 = arith.constant 0 : index
    %c0_1 = arith.constant 0 : index
    %c0_2 = arith.constant 0 : index
    %0 = vector.load %arg1[%c0, %c0_0, %c0_1, %c0_2] : memref<1x16x8x256xf32, #tpu.memory_space<vmem>>, vector<1x16x8x256xf32>
    %1 = vector.shape_cast %0 : vector<1x16x8x256xf32> to vector<16x8x256xf32>
    %2 = vector.extract_strided_slice %1 {offsets = [0, 0, 0], sizes = [16, 8, 128], strides = [1, 1, 1]} : vector<16x8x256xf32> to vector<16x8x128xf32>
    %3 = vector.extract_strided_slice %1 {offsets = [0, 0, 128], sizes = [16, 8, 128], strides = [1, 1, 1]} : vector<16x8x256xf32> to vector<16x8x128xf32>
    %4 = arith.maximumf %2, %3 : vector<16x8x128xf32>
    %5 = vector.shape_cast %4 : vector<16x8x128xf32> to vector<8x2x8x128xf32>
    %cst = arith.constant dense<0xFF800000> : vector<8x8x128xf32>
    %6 = vector.multi_reduction <maximumf>, %5, %cst [1] : vector<8x2x8x128xf32> to vector<8x8x128xf32>
    %cst_3 = arith.constant 0.000000e+00 : bf16
    %7 = vector.broadcast %cst_3 : bf16 to vector<1x10x128xbf16>
    %c0_4 = arith.constant 0 : index
    %c0_5 = arith.constant 0 : index
    %c0_6 = arith.constant 0 : index
    %8 = vector.load %arg5[%c0_4, %c0_5, %c0_6] : memref<10x10x128xbf16, #tpu.memory_space<vmem>>, vector<1x10x128xbf16>
    tpu.vector_store %arg5[%c0_4, %c0_5, %c0_6], %7 {strides = array<i32>} : memref<10x10x128xbf16, #tpu.memory_space<vmem>>, vector<1x10x128xbf16>,
    %c9 = arith.constant 9 : index
    %c0_7 = arith.constant 0 : index
    %c0_8 = arith.constant 0 : index
    %9 = vector.load %arg5[%c9, %c0_7, %c0_8] : memref<10x10x128xbf16, #tpu.memory_space<vmem>>, vector<1x10x128xbf16>
    tpu.vector_store %arg5[%c9, %c0_7, %c0_8], %7 {strides = array<i32>} : memref<10x10x128xbf16, #tpu.memory_space<vmem>>, vector<1x10x128xbf16>,
    %cst_9 = arith.constant 0.000000e+00 : bf16
    %10 = vector.broadcast %cst_9 : bf16 to vector<10x1x128xbf16>
    %c0_10 = arith.constant 0 : index
    %c0_11 = arith.constant 0 : index
    %c0_12 = arith.constant 0 : index
    %11 = vector.load %arg5[%c0_10, %c0_11, %c0_12] : memref<10x10x128xbf16, #tpu.memory_space<vmem>>, vector<10x1x128xbf16>
    tpu.vector_store %arg5[%c0_10, %c0_11, %c0_12], %10 {strides = array<i32>} : memref<10x10x128xbf16, #tpu.memory_space<vmem>>, vector<10x1x128xbf16>,
    %c0_13 = arith.constant 0 : index
    %c9_14 = arith.constant 9 : index
    %c0_15 = arith.constant 0 : index
    %12 = vector.load %arg5[%c0_13, %c9_14, %c0_15] : memref<10x10x128xbf16, #tpu.memory_space<vmem>>, vector<10x1x128xbf16>
    tpu.vector_store %arg5[%c0_13, %c9_14, %c0_15], %10 {strides = array<i32>} : memref<10x10x128xbf16, #tpu.memory_space<vmem>>, vector<10x1x128xbf16>,
    %13 = arith.truncf %6 : vector<8x8x128xf32> to vector<8x8x128xbf16>
    %c1 = arith.constant 1 : index
    %c1_16 = arith.constant 1 : index
    %c0_17 = arith.constant 0 : index
    %14 = vector.load %arg5[%c1, %c1_16, %c0_17] : memref<10x10x128xbf16, #tpu.memory_space<vmem>>, vector<8x8x128xbf16>
    tpu.vector_store %arg5[%c1, %c1_16, %c0_17], %13 {strides = array<i32>} : memref<10x10x128xbf16, #tpu.memory_space<vmem>>, vector<8x8x128xbf16>,
    %cst_18 = arith.constant 0.000000e+00 : f32
    %15 = vector.broadcast %cst_18 : f32 to vector<64x128xf32>
    %c0_19 = arith.constant 0 : index
    %c0_20 = arith.constant 0 : index
    %c0_21 = arith.constant 0 : index
    %16 = vector.load %arg5[%c0_19, %c0_20, %c0_21] : memref<10x10x128xbf16, #tpu.memory_space<vmem>>, vector<8x8x128xbf16>
    %17 = vector.shape_cast %16 : vector<8x8x128xbf16> to vector<64x128xbf16>
    %c0_22 = arith.constant 0 : index
    %c1_23 = arith.constant 1 : index
    %c0_24 = arith.constant 0 : index
    %18 = vector.load %arg5[%c0_22, %c1_23, %c0_24] : memref<10x10x128xbf16, #tpu.memory_space<vmem>>, vector<8x8x128xbf16>
    %19 = vector.shape_cast %18 : vector<8x8x128xbf16> to vector<64x128xbf16>
    %c0_25 = arith.constant 0 : index
    %c2 = arith.constant 2 : index
    %c0_26 = arith.constant 0 : index
    %20 = vector.load %arg5[%c0_25, %c2, %c0_26] : memref<10x10x128xbf16, #tpu.memory_space<vmem>>, vector<8x8x128xbf16>
    %21 = vector.shape_cast %20 : vector<8x8x128xbf16> to vector<64x128xbf16>
    %22 = tpu.concatenate %17, %19, %21 in 1 : vector<64x128xbf16>, vector<64x128xbf16>, vector<64x128xbf16> -> vector<64x384xbf16>
    %c0_27 = arith.constant 0 : index
    %c0_28 = arith.constant 0 : index
    %23 = vector.load %arg2[%c0_27, %c0_28] : memref<1152x128xbf16, #tpu.memory_space<vmem>>, vector<384x128xbf16>
    %cst_29 = arith.constant dense<0.000000e+00> : vector<64x128xf32>
    %24 = tpu.matmul %22, %23, %cst_29 {dimension_numbers = #tpu.dot_dimension_numbers<[1], [0], [0], [1], [0, 0, 1, 1], [], []>} : vector<64x384xbf16>, vector<384x128xbf16>, vector<64x128xf32> -> vector<64x128xf32>
    %25 = arith.addf %15, %24 : vector<64x128xf32>
    %c1_30 = arith.constant 1 : index
    %c0_31 = arith.constant 0 : index
    %c0_32 = arith.constant 0 : index
    %26 = vector.load %arg5[%c1_30, %c0_31, %c0_32] : memref<10x10x128xbf16, #tpu.memory_space<vmem>>, vector<8x8x128xbf16>
    %27 = vector.shape_cast %26 : vector<8x8x128xbf16> to vector<64x128xbf16>
    %c1_33 = arith.constant 1 : index
    %c1_34 = arith.constant 1 : index
    %c0_35 = arith.constant 0 : index
    %28 = vector.load %arg5[%c1_33, %c1_34, %c0_35] : memref<10x10x128xbf16, #tpu.memory_space<vmem>>, vector<8x8x128xbf16>
    %29 = vector.shape_cast %28 : vector<8x8x128xbf16> to vector<64x128xbf16>
    %c1_36 = arith.constant 1 : index
    %c2_37 = arith.constant 2 : index
    %c0_38 = arith.constant 0 : index
    %30 = vector.load %arg5[%c1_36, %c2_37, %c0_38] : memref<10x10x128xbf16, #tpu.memory_space<vmem>>, vector<8x8x128xbf16>
    %31 = vector.shape_cast %30 : vector<8x8x128xbf16> to vector<64x128xbf16>
    %32 = tpu.concatenate %27, %29, %31 in 1 : vector<64x128xbf16>, vector<64x128xbf16>, vector<64x128xbf16> -> vector<64x384xbf16>
    %c384 = arith.constant 384 : index
    %c0_39 = arith.constant 0 : index
    %33 = vector.load %arg2[%c384, %c0_39] : memref<1152x128xbf16, #tpu.memory_space<vmem>>, vector<384x128xbf16>
    %cst_40 = arith.constant dense<0.000000e+00> : vector<64x128xf32>
    %34 = tpu.matmul %32, %33, %cst_40 {dimension_numbers = #tpu.dot_dimension_numbers<[1], [0], [0], [1], [0, 0, 1, 1], [], []>} : vector<64x384xbf16>, vector<384x128xbf16>, vector<64x128xf32> -> vector<64x128xf32>
    %35 = arith.addf %25, %34 : vector<64x128xf32>
    %c2_41 = arith.constant 2 : index
    %c0_42 = arith.constant 0 : index
    %c0_43 = arith.constant 0 : index
    %36 = vector.load %arg5[%c2_41, %c0_42, %c0_43] : memref<10x10x128xbf16, #tpu.memory_space<vmem>>, vector<8x8x128xbf16>
    %37 = vector.shape_cast %36 : vector<8x8x128xbf16> to vector<64x128xbf16>
    %c2_44 = arith.constant 2 : index
    %c1_45 = arith.constant 1 : index
    %c0_46 = arith.constant 0 : index
    %38 = vector.load %arg5[%c2_44, %c1_45, %c0_46] : memref<10x10x128xbf16, #tpu.memory_space<vmem>>, vector<8x8x128xbf16>
    %39 = vector.shape_cast %38 : vector<8x8x128xbf16> to vector<64x128xbf16>
    %c2_47 = arith.constant 2 : index
    %c2_48 = arith.constant 2 : index
    %c0_49 = arith.constant 0 : index
    %40 = vector.load %arg5[%c2_47, %c2_48, %c0_49] : memref<10x10x128xbf16, #tpu.memory_space<vmem>>, vector<8x8x128xbf16>
    %41 = vector.shape_cast %40 : vector<8x8x128xbf16> to vector<64x128xbf16>
    %42 = tpu.concatenate %37, %39, %41 in 1 : vector<64x128xbf16>, vector<64x128xbf16>, vector<64x128xbf16> -> vector<64x384xbf16>
    %c768 = arith.constant 768 : index
    %c0_50 = arith.constant 0 : index
    %43 = vector.load %arg2[%c768, %c0_50] : memref<1152x128xbf16, #tpu.memory_space<vmem>>, vector<384x128xbf16>
    %cst_51 = arith.constant dense<0.000000e+00> : vector<64x128xf32>
    %44 = tpu.matmul %42, %43, %cst_51 {dimension_numbers = #tpu.dot_dimension_numbers<[1], [0], [0], [1], [0, 0, 1, 1], [], []>} : vector<64x384xbf16>, vector<384x128xbf16>, vector<64x128xf32> -> vector<64x128xf32>
    %45 = arith.addf %35, %44 : vector<64x128xf32>
    %46 = vector.shape_cast %45 : vector<64x128xf32> to vector<8x8x128xf32>
    %47 = arith.truncf %46 : vector<8x8x128xf32> to vector<8x8x128xbf16>
    %c0_52 = arith.constant 0 : index
    %c0_53 = arith.constant 0 : index
    %c0_54 = arith.constant 0 : index
    %c0_55 = arith.constant 0 : index
    %48 = vector.load %arg3[%c0_52, %c0_53, %c0_54, %c0_55] : memref<1x8x8x128xbf16, #tpu.memory_space<vmem>>, vector<1x8x8x128xbf16>
    %49 = vector.shape_cast %48 : vector<1x8x8x128xbf16> to vector<8x8x128xbf16>
    %50 = vector.shape_cast %47 : vector<8x8x128xbf16> to vector<1x8x8x128xbf16>
    tpu.vector_store %arg3[%c0_52, %c0_53, %c0_54, %c0_55], %50 {strides = array<i32>} : memref<1x8x8x128xbf16, #tpu.memory_space<vmem>>, vector<1x8x8x128xbf16>,
    %cst_56 = arith.constant 0.000000e+00 : f32
    %51 = vector.broadcast %cst_56 : f32 to vector<1x128xf32>
    %cst_57 = arith.constant 0.000000e+00 : f32
    %52 = vector.broadcast %cst_57 : f32 to vector<1x128xf32>
    %53 = vector.extract_strided_slice %45 {offsets = [0, 0], sizes = [8, 128], strides = [1, 1]} : vector<64x128xf32> to vector<8x128xf32>
    %cst_58 = arith.constant dense<0.000000e+00> : vector<128xf32>
    %54 = vector.multi_reduction <add>, %53, %cst_58 [0] : vector<8x128xf32> to vector<128xf32>
    %55 = vector.shape_cast %54 : vector<128xf32> to vector<1x128xf32>
    %56 = arith.addf %51, %55 : vector<1x128xf32>
    %57 = arith.mulf %53, %53 : vector<8x128xf32>
    %cst_59 = arith.constant dense<0.000000e+00> : vector<128xf32>
    %58 = vector.multi_reduction <add>, %57, %cst_59 [0] : vector<8x128xf32> to vector<128xf32>
    %59 = vector.shape_cast %58 : vector<128xf32> to vector<1x128xf32>
    %60 = arith.addf %52, %59 : vector<1x128xf32>
    %61 = vector.extract_strided_slice %45 {offsets = [8, 0], sizes = [8, 128], strides = [1, 1]} : vector<64x128xf32> to vector<8x128xf32>
    %cst_60 = arith.constant dense<0.000000e+00> : vector<128xf32>
    %62 = vector.multi_reduction <add>, %61, %cst_60 [0] : vector<8x128xf32> to vector<128xf32>
    %63 = vector.shape_cast %62 : vector<128xf32> to vector<1x128xf32>
    %64 = arith.addf %56, %63 : vector<1x128xf32>
    %65 = arith.mulf %61, %61 : vector<8x128xf32>
    %cst_61 = arith.constant dense<0.000000e+00> : vector<128xf32>
    %66 = vector.multi_reduction <add>, %65, %cst_61 [0] : vector<8x128xf32> to vector<128xf32>
    %67 = vector.shape_cast %66 : vector<128xf32> to vector<1x128xf32>
    %68 = arith.addf %60, %67 : vector<1x128xf32>
    %69 = vector.extract_strided_slice %45 {offsets = [16, 0], sizes = [8, 128], strides = [1, 1]} : vector<64x128xf32> to vector<8x128xf32>
    %cst_62 = arith.constant dense<0.000000e+00> : vector<128xf32>
    %70 = vector.multi_reduction <add>, %69, %cst_62 [0] : vector<8x128xf32> to vector<128xf32>
    %71 = vector.shape_cast %70 : vector<128xf32> to vector<1x128xf32>
    %72 = arith.addf %64, %71 : vector<1x128xf32>
    %73 = arith.mulf %69, %69 : vector<8x128xf32>
    %cst_63 = arith.constant dense<0.000000e+00> : vector<128xf32>
    %74 = vector.multi_reduction <add>, %73, %cst_63 [0] : vector<8x128xf32> to vector<128xf32>
    %75 = vector.shape_cast %74 : vector<128xf32> to vector<1x128xf32>
    %76 = arith.addf %68, %75 : vector<1x128xf32>
    %77 = vector.extract_strided_slice %45 {offsets = [24, 0], sizes = [8, 128], strides = [1, 1]} : vector<64x128xf32> to vector<8x128xf32>
    %cst_64 = arith.constant dense<0.000000e+00> : vector<128xf32>
    %78 = vector.multi_reduction <add>, %77, %cst_64 [0] : vector<8x128xf32> to vector<128xf32>
    %79 = vector.shape_cast %78 : vector<128xf32> to vector<1x128xf32>
    %80 = arith.addf %72, %79 : vector<1x128xf32>
    %81 = arith.mulf %77, %77 : vector<8x128xf32>
    %cst_65 = arith.constant dense<0.000000e+00> : vector<128xf32>
    %82 = vector.multi_reduction <add>, %81, %cst_65 [0] : vector<8x128xf32> to vector<128xf32>
    %83 = vector.shape_cast %82 : vector<128xf32> to vector<1x128xf32>
    %84 = arith.addf %76, %83 : vector<1x128xf32>
    %85 = vector.extract_strided_slice %45 {offsets = [32, 0], sizes = [8, 128], strides = [1, 1]} : vector<64x128xf32> to vector<8x128xf32>
    %cst_66 = arith.constant dense<0.000000e+00> : vector<128xf32>
    %86 = vector.multi_reduction <add>, %85, %cst_66 [0] : vector<8x128xf32> to vector<128xf32>
    %87 = vector.shape_cast %86 : vector<128xf32> to vector<1x128xf32>
    %88 = arith.addf %80, %87 : vector<1x128xf32>
    %89 = arith.mulf %85, %85 : vector<8x128xf32>
    %cst_67 = arith.constant dense<0.000000e+00> : vector<128xf32>
    %90 = vector.multi_reduction <add>, %89, %cst_67 [0] : vector<8x128xf32> to vector<128xf32>
    %91 = vector.shape_cast %90 : vector<128xf32> to vector<1x128xf32>
    %92 = arith.addf %84, %91 : vector<1x128xf32>
    %93 = vector.extract_strided_slice %45 {offsets = [40, 0], sizes = [8, 128], strides = [1, 1]} : vector<64x128xf32> to vector<8x128xf32>
    %cst_68 = arith.constant dense<0.000000e+00> : vector<128xf32>
    %94 = vector.multi_reduction <add>, %93, %cst_68 [0] : vector<8x128xf32> to vector<128xf32>
    %95 = vector.shape_cast %94 : vector<128xf32> to vector<1x128xf32>
    %96 = arith.addf %88, %95 : vector<1x128xf32>
    %97 = arith.mulf %93, %93 : vector<8x128xf32>
    %cst_69 = arith.constant dense<0.000000e+00> : vector<128xf32>
    %98 = vector.multi_reduction <add>, %97, %cst_69 [0] : vector<8x128xf32> to vector<128xf32>
    %99 = vector.shape_cast %98 : vector<128xf32> to vector<1x128xf32>
    %100 = arith.addf %92, %99 : vector<1x128xf32>
    %101 = vector.extract_strided_slice %45 {offsets = [48, 0], sizes = [8, 128], strides = [1, 1]} : vector<64x128xf32> to vector<8x128xf32>
    %cst_70 = arith.constant dense<0.000000e+00> : vector<128xf32>
    %102 = vector.multi_reduction <add>, %101, %cst_70 [0] : vector<8x128xf32> to vector<128xf32>
    %103 = vector.shape_cast %102 : vector<128xf32> to vector<1x128xf32>
    %104 = arith.addf %96, %103 : vector<1x128xf32>
    %105 = arith.mulf %101, %101 : vector<8x128xf32>
    %cst_71 = arith.constant dense<0.000000e+00> : vector<128xf32>
    %106 = vector.multi_reduction <add>, %105, %cst_71 [0] : vector<8x128xf32> to vector<128xf32>
    %107 = vector.shape_cast %106 : vector<128xf32> to vector<1x128xf32>
    %108 = arith.addf %100, %107 : vector<1x128xf32>
    %109 = vector.extract_strided_slice %45 {offsets = [56, 0], sizes = [8, 128], strides = [1, 1]} : vector<64x128xf32> to vector<8x128xf32>
    %cst_72 = arith.constant dense<0.000000e+00> : vector<128xf32>
    %110 = vector.multi_reduction <add>, %109, %cst_72 [0] : vector<8x128xf32> to vector<128xf32>
    %111 = vector.shape_cast %110 : vector<128xf32> to vector<1x128xf32>
    %112 = arith.addf %104, %111 : vector<1x128xf32>
    %113 = arith.mulf %109, %109 : vector<8x128xf32>
    %cst_73 = arith.constant dense<0.000000e+00> : vector<128xf32>
    %114 = vector.multi_reduction <add>, %113, %cst_73 [0] : vector<8x128xf32> to vector<128xf32>
    %115 = vector.shape_cast %114 : vector<128xf32> to vector<1x128xf32>
    %116 = arith.addf %108, %115 : vector<1x128xf32>
    %c0_74 = arith.constant 0 : index
    %c0_75 = arith.constant 0 : index
    %c0_76 = arith.constant 0 : index
    %117 = vector.load %arg4[%c0_74, %c0_75, %c0_76] : memref<1x2x128xf32, #tpu.memory_space<vmem>>, vector<1x1x128xf32>
    %118 = vector.shape_cast %117 : vector<1x1x128xf32> to vector<1x128xf32>
    %119 = vector.shape_cast %112 : vector<1x128xf32> to vector<1x1x128xf32>
    tpu.vector_store %arg4[%c0_74, %c0_75, %c0_76], %119 {strides = array<i32>} : memref<1x2x128xf32, #tpu.memory_space<vmem>>, vector<1x1x128xf32>,
    %c0_77 = arith.constant 0 : index
    %c1_78 = arith.constant 1 : index
    %c0_79 = arith.constant 0 : index
    %120 = vector.load %arg4[%c0_77, %c1_78, %c0_79] : memref<1x2x128xf32, #tpu.memory_space<vmem>>, vector<1x1x128xf32>
    %121 = vector.shape_cast %120 : vector<1x1x128xf32> to vector<1x128xf32>
    %122 = vector.shape_cast %116 : vector<1x128xf32> to vector<1x1x128xf32>
    tpu.vector_store %arg4[%c0_77, %c1_78, %c0_79], %122 {strides = array<i32>} : memref<1x2x128xf32, #tpu.memory_space<vmem>>, vector<1x1x128xf32>,
    return
  }
  func.func @transform_0(%arg0: i32) -> (i32, i32, i32, i32) {
    %c0_i32 = arith.constant 0 : i32
    %c0_i32_0 = arith.constant 0 : i32
    %c0_i32_1 = arith.constant 0 : i32
    %c0_i32_2 = arith.constant 0 : i32
    return %arg0, %c0_i32, %c0_i32_0, %c0_i32_1 : i32, i32, i32, i32
  }
  func.func @transform_1(%arg0: i32) -> (i32, i32) {
    %c0_i32 = arith.constant 0 : i32
    %c0_i32_0 = arith.constant 0 : i32
    %c0_i32_1 = arith.constant 0 : i32
    return %c0_i32, %c0_i32_0 : i32, i32
  }
  func.func @transform_2(%arg0: i32) -> (i32, i32, i32, i32) {
    %c0_i32 = arith.constant 0 : i32
    %c0_i32_0 = arith.constant 0 : i32
    %c0_i32_1 = arith.constant 0 : i32
    %c0_i32_2 = arith.constant 0 : i32
    return %arg0, %c0_i32, %c0_i32_0, %c0_i32_1 : i32, i32, i32, i32
  }
  func.func @transform_3(%arg0: i32) -> (i32, i32, i32) {
    %c0_i32 = arith.constant 0 : i32
    %c0_i32_0 = arith.constant 0 : i32
    %c0_i32_1 = arith.constant 0 : i32
    return %arg0, %c0_i32, %c0_i32_0 : i32, i32, i32
  }
}

module attributes {stable_mosaic.version = 11 : i64} {
  func.func @_bn_relu_kernel(%arg0: i32, %arg1: memref<1x8x8x128xbf16, #tpu.memory_space<vmem>>, %arg2: memref<1x128xf32, #tpu.memory_space<vmem>>, %arg3: memref<1x128xf32, #tpu.memory_space<vmem>>, %arg4: memref<1x8x8x128xf32, #tpu.memory_space<vmem>>) attributes {dimension_semantics = [#tpu.dimension_semantics<parallel>], iteration_bounds = array<i64: 2>, scalar_prefetch = 0 : i64, scratch_operands = 0 : i64, tpu.core_type = #tpu.core_type<tc>, window_params = [{transform_indices = @transform_0, window_bounds = array<i64: 1, 8, 8, 128>}, {pipeline_mode = #tpu.pipeline_mode<synchronous>, transform_indices = @transform_1, window_bounds = array<i64: 1, 128>}, {pipeline_mode = #tpu.pipeline_mode<synchronous>, transform_indices = @transform_2, window_bounds = array<i64: 1, 128>}, {transform_indices = @transform_3, window_bounds = array<i64: 1, 8, 8, 128>}]} {
    %c0 = arith.constant 0 : index
    %c0_0 = arith.constant 0 : index
    %c0_1 = arith.constant 0 : index
    %c0_2 = arith.constant 0 : index
    %0 = vector.load %arg1[%c0, %c0_0, %c0_1, %c0_2] : memref<1x8x8x128xbf16, #tpu.memory_space<vmem>>, vector<1x8x8x128xbf16>
    %1 = vector.shape_cast %0 : vector<1x8x8x128xbf16> to vector<8x8x128xbf16>
    %2 = arith.extf %1 : vector<8x8x128xbf16> to vector<8x8x128xf32>
    %c0_3 = arith.constant 0 : index
    %c0_4 = arith.constant 0 : index
    %3 = vector.load %arg2[%c0_3, %c0_4] : memref<1x128xf32, #tpu.memory_space<vmem>>, vector<1x128xf32>
    %4 = vector.shape_cast %3 : vector<1x128xf32> to vector<1x1x128xf32>
    %5 = vector.broadcast %4 : vector<1x1x128xf32> to vector<8x8x128xf32>
    %6 = arith.mulf %2, %5 : vector<8x8x128xf32>
    %c0_5 = arith.constant 0 : index
    %c0_6 = arith.constant 0 : index
    %7 = vector.load %arg3[%c0_5, %c0_6] : memref<1x128xf32, #tpu.memory_space<vmem>>, vector<1x128xf32>
    %8 = vector.shape_cast %7 : vector<1x128xf32> to vector<1x1x128xf32>
    %9 = vector.broadcast %8 : vector<1x1x128xf32> to vector<8x8x128xf32>
    %10 = arith.addf %6, %9 : vector<8x8x128xf32>
    %cst = arith.constant 0.000000e+00 : f32
    %11 = vector.broadcast %cst : f32 to vector<8x8x128xf32>
    %12 = arith.maximumf %10, %11 : vector<8x8x128xf32>
    %c0_7 = arith.constant 0 : index
    %c0_8 = arith.constant 0 : index
    %c0_9 = arith.constant 0 : index
    %c0_10 = arith.constant 0 : index
    %13 = vector.load %arg4[%c0_7, %c0_8, %c0_9, %c0_10] : memref<1x8x8x128xf32, #tpu.memory_space<vmem>>, vector<1x8x8x128xf32>
    %14 = vector.shape_cast %13 : vector<1x8x8x128xf32> to vector<8x8x128xf32>
    %15 = vector.shape_cast %12 : vector<8x8x128xf32> to vector<1x8x8x128xf32>
    tpu.vector_store %arg4[%c0_7, %c0_8, %c0_9, %c0_10], %15 {strides = array<i32>} : memref<1x8x8x128xf32, #tpu.memory_space<vmem>>, vector<1x8x8x128xf32>,
    return
  }
  func.func @transform_0(%arg0: i32) -> (i32, i32, i32, i32) {
    %c0_i32 = arith.constant 0 : i32
    %c0_i32_0 = arith.constant 0 : i32
    %c0_i32_1 = arith.constant 0 : i32
    %c0_i32_2 = arith.constant 0 : i32
    return %arg0, %c0_i32, %c0_i32_0, %c0_i32_1 : i32, i32, i32, i32
  }
  func.func @transform_1(%arg0: i32) -> (i32, i32) {
    %c0_i32 = arith.constant 0 : i32
    %c0_i32_0 = arith.constant 0 : i32
    %c0_i32_1 = arith.constant 0 : i32
    return %c0_i32, %c0_i32_0 : i32, i32
  }
  func.func @transform_2(%arg0: i32) -> (i32, i32) {
    %c0_i32 = arith.constant 0 : i32
    %c0_i32_0 = arith.constant 0 : i32
    %c0_i32_1 = arith.constant 0 : i32
    return %c0_i32, %c0_i32_0 : i32, i32
  }
  func.func @transform_3(%arg0: i32) -> (i32, i32, i32, i32) {
    %c0_i32 = arith.constant 0 : i32
    %c0_i32_0 = arith.constant 0 : i32
    %c0_i32_1 = arith.constant 0 : i32
    %c0_i32_2 = arith.constant 0 : i32
    return %arg0, %c0_i32, %c0_i32_0, %c0_i32_1 : i32, i32, i32, i32
  }
}

module attributes {stable_mosaic.version = 11 : i64} {
  func.func @_bn_relu_conv2_kernel(%arg0: i32, %arg1: memref<1x8x8x128xbf16, #tpu.memory_space<vmem>>, %arg2: memref<1x128xf32, #tpu.memory_space<vmem>>, %arg3: memref<1x128xf32, #tpu.memory_space<vmem>>, %arg4: memref<1152x128xbf16, #tpu.memory_space<vmem>>, %arg5: memref<1x8x8x128xbf16, #tpu.memory_space<vmem>>, %arg6: memref<1x2x128xf32, #tpu.memory_space<vmem>>, %arg7: memref<10x10x128xbf16, #tpu.memory_space<vmem>>) attributes {dimension_semantics = [#tpu.dimension_semantics<parallel>], iteration_bounds = array<i64: 2>, scalar_prefetch = 0 : i64, scratch_operands = 1 : i64, tpu.core_type = #tpu.core_type<tc>, window_params = [{transform_indices = @transform_0, window_bounds = array<i64: 1, 8, 8, 128>}, {pipeline_mode = #tpu.pipeline_mode<synchronous>, transform_indices = @transform_1, window_bounds = array<i64: 1, 128>}, {pipeline_mode = #tpu.pipeline_mode<synchronous>, transform_indices = @transform_2, window_bounds = array<i64: 1, 128>}, {pipeline_mode = #tpu.pipeline_mode<synchronous>, transform_indices = @transform_3, window_bounds = array<i64: 1152, 128>}, {transform_indices = @transform_4, window_bounds = array<i64: 1, 8, 8, 128>}, {transform_indices = @transform_5, window_bounds = array<i64: 1, 2, 128>}]} {
    %c0 = arith.constant 0 : index
    %c0_0 = arith.constant 0 : index
    %c0_1 = arith.constant 0 : index
    %c0_2 = arith.constant 0 : index
    %0 = vector.load %arg1[%c0, %c0_0, %c0_1, %c0_2] : memref<1x8x8x128xbf16, #tpu.memory_space<vmem>>, vector<1x8x8x128xbf16>
    %1 = vector.shape_cast %0 : vector<1x8x8x128xbf16> to vector<8x8x128xbf16>
    %2 = arith.extf %1 : vector<8x8x128xbf16> to vector<8x8x128xf32>
    %c0_3 = arith.constant 0 : index
    %c0_4 = arith.constant 0 : index
    %3 = vector.load %arg2[%c0_3, %c0_4] : memref<1x128xf32, #tpu.memory_space<vmem>>, vector<1x128xf32>
    %4 = vector.shape_cast %3 : vector<1x128xf32> to vector<1x1x128xf32>
    %5 = vector.broadcast %4 : vector<1x1x128xf32> to vector<8x8x128xf32>
    %6 = arith.mulf %2, %5 : vector<8x8x128xf32>
    %c0_5 = arith.constant 0 : index
    %c0_6 = arith.constant 0 : index
    %7 = vector.load %arg3[%c0_5, %c0_6] : memref<1x128xf32, #tpu.memory_space<vmem>>, vector<1x128xf32>
    %8 = vector.shape_cast %7 : vector<1x128xf32> to vector<1x1x128xf32>
    %9 = vector.broadcast %8 : vector<1x1x128xf32> to vector<8x8x128xf32>
    %10 = arith.addf %6, %9 : vector<8x8x128xf32>
    %cst = arith.constant 0.000000e+00 : f32
    %11 = vector.broadcast %cst : f32 to vector<8x8x128xf32>
    %12 = arith.maximumf %10, %11 : vector<8x8x128xf32>
    %cst_7 = arith.constant 0.000000e+00 : bf16
    %13 = vector.broadcast %cst_7 : bf16 to vector<1x10x128xbf16>
    %c0_8 = arith.constant 0 : index
    %c0_9 = arith.constant 0 : index
    %c0_10 = arith.constant 0 : index
    %14 = vector.load %arg7[%c0_8, %c0_9, %c0_10] : memref<10x10x128xbf16, #tpu.memory_space<vmem>>, vector<1x10x128xbf16>
    tpu.vector_store %arg7[%c0_8, %c0_9, %c0_10], %13 {strides = array<i32>} : memref<10x10x128xbf16, #tpu.memory_space<vmem>>, vector<1x10x128xbf16>,
    %c9 = arith.constant 9 : index
    %c0_11 = arith.constant 0 : index
    %c0_12 = arith.constant 0 : index
    %15 = vector.load %arg7[%c9, %c0_11, %c0_12] : memref<10x10x128xbf16, #tpu.memory_space<vmem>>, vector<1x10x128xbf16>
    tpu.vector_store %arg7[%c9, %c0_11, %c0_12], %13 {strides = array<i32>} : memref<10x10x128xbf16, #tpu.memory_space<vmem>>, vector<1x10x128xbf16>,
    %cst_13 = arith.constant 0.000000e+00 : bf16
    %16 = vector.broadcast %cst_13 : bf16 to vector<10x1x128xbf16>
    %c0_14 = arith.constant 0 : index
    %c0_15 = arith.constant 0 : index
    %c0_16 = arith.constant 0 : index
    %17 = vector.load %arg7[%c0_14, %c0_15, %c0_16] : memref<10x10x128xbf16, #tpu.memory_space<vmem>>, vector<10x1x128xbf16>
    tpu.vector_store %arg7[%c0_14, %c0_15, %c0_16], %16 {strides = array<i32>} : memref<10x10x128xbf16, #tpu.memory_space<vmem>>, vector<10x1x128xbf16>,
    %c0_17 = arith.constant 0 : index
    %c9_18 = arith.constant 9 : index
    %c0_19 = arith.constant 0 : index
    %18 = vector.load %arg7[%c0_17, %c9_18, %c0_19] : memref<10x10x128xbf16, #tpu.memory_space<vmem>>, vector<10x1x128xbf16>
    tpu.vector_store %arg7[%c0_17, %c9_18, %c0_19], %16 {strides = array<i32>} : memref<10x10x128xbf16, #tpu.memory_space<vmem>>, vector<10x1x128xbf16>,
    %19 = arith.truncf %12 : vector<8x8x128xf32> to vector<8x8x128xbf16>
    %c1 = arith.constant 1 : index
    %c1_20 = arith.constant 1 : index
    %c0_21 = arith.constant 0 : index
    %20 = vector.load %arg7[%c1, %c1_20, %c0_21] : memref<10x10x128xbf16, #tpu.memory_space<vmem>>, vector<8x8x128xbf16>
    tpu.vector_store %arg7[%c1, %c1_20, %c0_21], %19 {strides = array<i32>} : memref<10x10x128xbf16, #tpu.memory_space<vmem>>, vector<8x8x128xbf16>,
    %cst_22 = arith.constant 0.000000e+00 : f32
    %21 = vector.broadcast %cst_22 : f32 to vector<64x128xf32>
    %c0_23 = arith.constant 0 : index
    %c0_24 = arith.constant 0 : index
    %c0_25 = arith.constant 0 : index
    %22 = vector.load %arg7[%c0_23, %c0_24, %c0_25] : memref<10x10x128xbf16, #tpu.memory_space<vmem>>, vector<8x8x128xbf16>
    %23 = vector.shape_cast %22 : vector<8x8x128xbf16> to vector<64x128xbf16>
    %c0_26 = arith.constant 0 : index
    %c1_27 = arith.constant 1 : index
    %c0_28 = arith.constant 0 : index
    %24 = vector.load %arg7[%c0_26, %c1_27, %c0_28] : memref<10x10x128xbf16, #tpu.memory_space<vmem>>, vector<8x8x128xbf16>
    %25 = vector.shape_cast %24 : vector<8x8x128xbf16> to vector<64x128xbf16>
    %c0_29 = arith.constant 0 : index
    %c2 = arith.constant 2 : index
    %c0_30 = arith.constant 0 : index
    %26 = vector.load %arg7[%c0_29, %c2, %c0_30] : memref<10x10x128xbf16, #tpu.memory_space<vmem>>, vector<8x8x128xbf16>
    %27 = vector.shape_cast %26 : vector<8x8x128xbf16> to vector<64x128xbf16>
    %28 = tpu.concatenate %23, %25, %27 in 1 : vector<64x128xbf16>, vector<64x128xbf16>, vector<64x128xbf16> -> vector<64x384xbf16>
    %c0_31 = arith.constant 0 : index
    %c0_32 = arith.constant 0 : index
    %29 = vector.load %arg4[%c0_31, %c0_32] : memref<1152x128xbf16, #tpu.memory_space<vmem>>, vector<384x128xbf16>
    %cst_33 = arith.constant dense<0.000000e+00> : vector<64x128xf32>
    %30 = tpu.matmul %28, %29, %cst_33 {dimension_numbers = #tpu.dot_dimension_numbers<[1], [0], [0], [1], [0, 0, 1, 1], [], []>} : vector<64x384xbf16>, vector<384x128xbf16>, vector<64x128xf32> -> vector<64x128xf32>
    %31 = arith.addf %21, %30 : vector<64x128xf32>
    %c1_34 = arith.constant 1 : index
    %c0_35 = arith.constant 0 : index
    %c0_36 = arith.constant 0 : index
    %32 = vector.load %arg7[%c1_34, %c0_35, %c0_36] : memref<10x10x128xbf16, #tpu.memory_space<vmem>>, vector<8x8x128xbf16>
    %33 = vector.shape_cast %32 : vector<8x8x128xbf16> to vector<64x128xbf16>
    %c1_37 = arith.constant 1 : index
    %c1_38 = arith.constant 1 : index
    %c0_39 = arith.constant 0 : index
    %34 = vector.load %arg7[%c1_37, %c1_38, %c0_39] : memref<10x10x128xbf16, #tpu.memory_space<vmem>>, vector<8x8x128xbf16>
    %35 = vector.shape_cast %34 : vector<8x8x128xbf16> to vector<64x128xbf16>
    %c1_40 = arith.constant 1 : index
    %c2_41 = arith.constant 2 : index
    %c0_42 = arith.constant 0 : index
    %36 = vector.load %arg7[%c1_40, %c2_41, %c0_42] : memref<10x10x128xbf16, #tpu.memory_space<vmem>>, vector<8x8x128xbf16>
    %37 = vector.shape_cast %36 : vector<8x8x128xbf16> to vector<64x128xbf16>
    %38 = tpu.concatenate %33, %35, %37 in 1 : vector<64x128xbf16>, vector<64x128xbf16>, vector<64x128xbf16> -> vector<64x384xbf16>
    %c384 = arith.constant 384 : index
    %c0_43 = arith.constant 0 : index
    %39 = vector.load %arg4[%c384, %c0_43] : memref<1152x128xbf16, #tpu.memory_space<vmem>>, vector<384x128xbf16>
    %cst_44 = arith.constant dense<0.000000e+00> : vector<64x128xf32>
    %40 = tpu.matmul %38, %39, %cst_44 {dimension_numbers = #tpu.dot_dimension_numbers<[1], [0], [0], [1], [0, 0, 1, 1], [], []>} : vector<64x384xbf16>, vector<384x128xbf16>, vector<64x128xf32> -> vector<64x128xf32>
    %41 = arith.addf %31, %40 : vector<64x128xf32>
    %c2_45 = arith.constant 2 : index
    %c0_46 = arith.constant 0 : index
    %c0_47 = arith.constant 0 : index
    %42 = vector.load %arg7[%c2_45, %c0_46, %c0_47] : memref<10x10x128xbf16, #tpu.memory_space<vmem>>, vector<8x8x128xbf16>
    %43 = vector.shape_cast %42 : vector<8x8x128xbf16> to vector<64x128xbf16>
    %c2_48 = arith.constant 2 : index
    %c1_49 = arith.constant 1 : index
    %c0_50 = arith.constant 0 : index
    %44 = vector.load %arg7[%c2_48, %c1_49, %c0_50] : memref<10x10x128xbf16, #tpu.memory_space<vmem>>, vector<8x8x128xbf16>
    %45 = vector.shape_cast %44 : vector<8x8x128xbf16> to vector<64x128xbf16>
    %c2_51 = arith.constant 2 : index
    %c2_52 = arith.constant 2 : index
    %c0_53 = arith.constant 0 : index
    %46 = vector.load %arg7[%c2_51, %c2_52, %c0_53] : memref<10x10x128xbf16, #tpu.memory_space<vmem>>, vector<8x8x128xbf16>
    %47 = vector.shape_cast %46 : vector<8x8x128xbf16> to vector<64x128xbf16>
    %48 = tpu.concatenate %43, %45, %47 in 1 : vector<64x128xbf16>, vector<64x128xbf16>, vector<64x128xbf16> -> vector<64x384xbf16>
    %c768 = arith.constant 768 : index
    %c0_54 = arith.constant 0 : index
    %49 = vector.load %arg4[%c768, %c0_54] : memref<1152x128xbf16, #tpu.memory_space<vmem>>, vector<384x128xbf16>
    %cst_55 = arith.constant dense<0.000000e+00> : vector<64x128xf32>
    %50 = tpu.matmul %48, %49, %cst_55 {dimension_numbers = #tpu.dot_dimension_numbers<[1], [0], [0], [1], [0, 0, 1, 1], [], []>} : vector<64x384xbf16>, vector<384x128xbf16>, vector<64x128xf32> -> vector<64x128xf32>
    %51 = arith.addf %41, %50 : vector<64x128xf32>
    %52 = vector.shape_cast %51 : vector<64x128xf32> to vector<8x8x128xf32>
    %53 = arith.truncf %52 : vector<8x8x128xf32> to vector<8x8x128xbf16>
    %c0_56 = arith.constant 0 : index
    %c0_57 = arith.constant 0 : index
    %c0_58 = arith.constant 0 : index
    %c0_59 = arith.constant 0 : index
    %54 = vector.load %arg5[%c0_56, %c0_57, %c0_58, %c0_59] : memref<1x8x8x128xbf16, #tpu.memory_space<vmem>>, vector<1x8x8x128xbf16>
    %55 = vector.shape_cast %54 : vector<1x8x8x128xbf16> to vector<8x8x128xbf16>
    %56 = vector.shape_cast %53 : vector<8x8x128xbf16> to vector<1x8x8x128xbf16>
    tpu.vector_store %arg5[%c0_56, %c0_57, %c0_58, %c0_59], %56 {strides = array<i32>} : memref<1x8x8x128xbf16, #tpu.memory_space<vmem>>, vector<1x8x8x128xbf16>,
    %cst_60 = arith.constant 0.000000e+00 : f32
    %57 = vector.broadcast %cst_60 : f32 to vector<1x128xf32>
    %cst_61 = arith.constant 0.000000e+00 : f32
    %58 = vector.broadcast %cst_61 : f32 to vector<1x128xf32>
    %59 = vector.extract_strided_slice %51 {offsets = [0, 0], sizes = [8, 128], strides = [1, 1]} : vector<64x128xf32> to vector<8x128xf32>
    %cst_62 = arith.constant dense<0.000000e+00> : vector<128xf32>
    %60 = vector.multi_reduction <add>, %59, %cst_62 [0] : vector<8x128xf32> to vector<128xf32>
    %61 = vector.shape_cast %60 : vector<128xf32> to vector<1x128xf32>
    %62 = arith.addf %57, %61 : vector<1x128xf32>
    %63 = arith.mulf %59, %59 : vector<8x128xf32>
    %cst_63 = arith.constant dense<0.000000e+00> : vector<128xf32>
    %64 = vector.multi_reduction <add>, %63, %cst_63 [0] : vector<8x128xf32> to vector<128xf32>
    %65 = vector.shape_cast %64 : vector<128xf32> to vector<1x128xf32>
    %66 = arith.addf %58, %65 : vector<1x128xf32>
    %67 = vector.extract_strided_slice %51 {offsets = [8, 0], sizes = [8, 128], strides = [1, 1]} : vector<64x128xf32> to vector<8x128xf32>
    %cst_64 = arith.constant dense<0.000000e+00> : vector<128xf32>
    %68 = vector.multi_reduction <add>, %67, %cst_64 [0] : vector<8x128xf32> to vector<128xf32>
    %69 = vector.shape_cast %68 : vector<128xf32> to vector<1x128xf32>
    %70 = arith.addf %62, %69 : vector<1x128xf32>
    %71 = arith.mulf %67, %67 : vector<8x128xf32>
    %cst_65 = arith.constant dense<0.000000e+00> : vector<128xf32>
    %72 = vector.multi_reduction <add>, %71, %cst_65 [0] : vector<8x128xf32> to vector<128xf32>
    %73 = vector.shape_cast %72 : vector<128xf32> to vector<1x128xf32>
    %74 = arith.addf %66, %73 : vector<1x128xf32>
    %75 = vector.extract_strided_slice %51 {offsets = [16, 0], sizes = [8, 128], strides = [1, 1]} : vector<64x128xf32> to vector<8x128xf32>
    %cst_66 = arith.constant dense<0.000000e+00> : vector<128xf32>
    %76 = vector.multi_reduction <add>, %75, %cst_66 [0] : vector<8x128xf32> to vector<128xf32>
    %77 = vector.shape_cast %76 : vector<128xf32> to vector<1x128xf32>
    %78 = arith.addf %70, %77 : vector<1x128xf32>
    %79 = arith.mulf %75, %75 : vector<8x128xf32>
    %cst_67 = arith.constant dense<0.000000e+00> : vector<128xf32>
    %80 = vector.multi_reduction <add>, %79, %cst_67 [0] : vector<8x128xf32> to vector<128xf32>
    %81 = vector.shape_cast %80 : vector<128xf32> to vector<1x128xf32>
    %82 = arith.addf %74, %81 : vector<1x128xf32>
    %83 = vector.extract_strided_slice %51 {offsets = [24, 0], sizes = [8, 128], strides = [1, 1]} : vector<64x128xf32> to vector<8x128xf32>
    %cst_68 = arith.constant dense<0.000000e+00> : vector<128xf32>
    %84 = vector.multi_reduction <add>, %83, %cst_68 [0] : vector<8x128xf32> to vector<128xf32>
    %85 = vector.shape_cast %84 : vector<128xf32> to vector<1x128xf32>
    %86 = arith.addf %78, %85 : vector<1x128xf32>
    %87 = arith.mulf %83, %83 : vector<8x128xf32>
    %cst_69 = arith.constant dense<0.000000e+00> : vector<128xf32>
    %88 = vector.multi_reduction <add>, %87, %cst_69 [0] : vector<8x128xf32> to vector<128xf32>
    %89 = vector.shape_cast %88 : vector<128xf32> to vector<1x128xf32>
    %90 = arith.addf %82, %89 : vector<1x128xf32>
    %91 = vector.extract_strided_slice %51 {offsets = [32, 0], sizes = [8, 128], strides = [1, 1]} : vector<64x128xf32> to vector<8x128xf32>
    %cst_70 = arith.constant dense<0.000000e+00> : vector<128xf32>
    %92 = vector.multi_reduction <add>, %91, %cst_70 [0] : vector<8x128xf32> to vector<128xf32>
    %93 = vector.shape_cast %92 : vector<128xf32> to vector<1x128xf32>
    %94 = arith.addf %86, %93 : vector<1x128xf32>
    %95 = arith.mulf %91, %91 : vector<8x128xf32>
    %cst_71 = arith.constant dense<0.000000e+00> : vector<128xf32>
    %96 = vector.multi_reduction <add>, %95, %cst_71 [0] : vector<8x128xf32> to vector<128xf32>
    %97 = vector.shape_cast %96 : vector<128xf32> to vector<1x128xf32>
    %98 = arith.addf %90, %97 : vector<1x128xf32>
    %99 = vector.extract_strided_slice %51 {offsets = [40, 0], sizes = [8, 128], strides = [1, 1]} : vector<64x128xf32> to vector<8x128xf32>
    %cst_72 = arith.constant dense<0.000000e+00> : vector<128xf32>
    %100 = vector.multi_reduction <add>, %99, %cst_72 [0] : vector<8x128xf32> to vector<128xf32>
    %101 = vector.shape_cast %100 : vector<128xf32> to vector<1x128xf32>
    %102 = arith.addf %94, %101 : vector<1x128xf32>
    %103 = arith.mulf %99, %99 : vector<8x128xf32>
    %cst_73 = arith.constant dense<0.000000e+00> : vector<128xf32>
    %104 = vector.multi_reduction <add>, %103, %cst_73 [0] : vector<8x128xf32> to vector<128xf32>
    %105 = vector.shape_cast %104 : vector<128xf32> to vector<1x128xf32>
    %106 = arith.addf %98, %105 : vector<1x128xf32>
    %107 = vector.extract_strided_slice %51 {offsets = [48, 0], sizes = [8, 128], strides = [1, 1]} : vector<64x128xf32> to vector<8x128xf32>
    %cst_74 = arith.constant dense<0.000000e+00> : vector<128xf32>
    %108 = vector.multi_reduction <add>, %107, %cst_74 [0] : vector<8x128xf32> to vector<128xf32>
    %109 = vector.shape_cast %108 : vector<128xf32> to vector<1x128xf32>
    %110 = arith.addf %102, %109 : vector<1x128xf32>
    %111 = arith.mulf %107, %107 : vector<8x128xf32>
    %cst_75 = arith.constant dense<0.000000e+00> : vector<128xf32>
    %112 = vector.multi_reduction <add>, %111, %cst_75 [0] : vector<8x128xf32> to vector<128xf32>
    %113 = vector.shape_cast %112 : vector<128xf32> to vector<1x128xf32>
    %114 = arith.addf %106, %113 : vector<1x128xf32>
    %115 = vector.extract_strided_slice %51 {offsets = [56, 0], sizes = [8, 128], strides = [1, 1]} : vector<64x128xf32> to vector<8x128xf32>
    %cst_76 = arith.constant dense<0.000000e+00> : vector<128xf32>
    %116 = vector.multi_reduction <add>, %115, %cst_76 [0] : vector<8x128xf32> to vector<128xf32>
    %117 = vector.shape_cast %116 : vector<128xf32> to vector<1x128xf32>
    %118 = arith.addf %110, %117 : vector<1x128xf32>
    %119 = arith.mulf %115, %115 : vector<8x128xf32>
    %cst_77 = arith.constant dense<0.000000e+00> : vector<128xf32>
    %120 = vector.multi_reduction <add>, %119, %cst_77 [0] : vector<8x128xf32> to vector<128xf32>
    %121 = vector.shape_cast %120 : vector<128xf32> to vector<1x128xf32>
    %122 = arith.addf %114, %121 : vector<1x128xf32>
    %c0_78 = arith.constant 0 : index
    %c0_79 = arith.constant 0 : index
    %c0_80 = arith.constant 0 : index
    %123 = vector.load %arg6[%c0_78, %c0_79, %c0_80] : memref<1x2x128xf32, #tpu.memory_space<vmem>>, vector<1x1x128xf32>
    %124 = vector.shape_cast %123 : vector<1x1x128xf32> to vector<1x128xf32>
    %125 = vector.shape_cast %118 : vector<1x128xf32> to vector<1x1x128xf32>
    tpu.vector_store %arg6[%c0_78, %c0_79, %c0_80], %125 {strides = array<i32>} : memref<1x2x128xf32, #tpu.memory_space<vmem>>, vector<1x1x128xf32>,
    %c0_81 = arith.constant 0 : index
    %c1_82 = arith.constant 1 : index
    %c0_83 = arith.constant 0 : index
    %126 = vector.load %arg6[%c0_81, %c1_82, %c0_83] : memref<1x2x128xf32, #tpu.memory_space<vmem>>, vector<1x1x128xf32>
    %127 = vector.shape_cast %126 : vector<1x1x128xf32> to vector<1x128xf32>
    %128 = vector.shape_cast %122 : vector<1x128xf32> to vector<1x1x128xf32>
    tpu.vector_store %arg6[%c0_81, %c1_82, %c0_83], %128 {strides = array<i32>} : memref<1x2x128xf32, #tpu.memory_space<vmem>>, vector<1x1x128xf32>,
    return
  }
  func.func @transform_0(%arg0: i32) -> (i32, i32, i32, i32) {
    %c0_i32 = arith.constant 0 : i32
    %c0_i32_0 = arith.constant 0 : i32
    %c0_i32_1 = arith.constant 0 : i32
    %c0_i32_2 = arith.constant 0 : i32
    return %arg0, %c0_i32, %c0_i32_0, %c0_i32_1 : i32, i32, i32, i32
  }
  func.func @transform_1(%arg0: i32) -> (i32, i32) {
    %c0_i32 = arith.constant 0 : i32
    %c0_i32_0 = arith.constant 0 : i32
    %c0_i32_1 = arith.constant 0 : i32
    return %c0_i32, %c0_i32_0 : i32, i32
  }
  func.func @transform_2(%arg0: i32) -> (i32, i32) {
    %c0_i32 = arith.constant 0 : i32
    %c0_i32_0 = arith.constant 0 : i32
    %c0_i32_1 = arith.constant 0 : i32
    return %c0_i32, %c0_i32_0 : i32, i32
  }
  func.func @transform_3(%arg0: i32) -> (i32, i32) {
    %c0_i32 = arith.constant 0 : i32
    %c0_i32_0 = arith.constant 0 : i32
    %c0_i32_1 = arith.constant 0 : i32
    return %c0_i32, %c0_i32_0 : i32, i32
  }
  func.func @transform_4(%arg0: i32) -> (i32, i32, i32, i32) {
    %c0_i32 = arith.constant 0 : i32
    %c0_i32_0 = arith.constant 0 : i32
    %c0_i32_1 = arith.constant 0 : i32
    %c0_i32_2 = arith.constant 0 : i32
    return %arg0, %c0_i32, %c0_i32_0, %c0_i32_1 : i32, i32, i32, i32
  }
  func.func @transform_5(%arg0: i32) -> (i32, i32, i32) {
    %c0_i32 = arith.constant 0 : i32
    %c0_i32_0 = arith.constant 0 : i32
    %c0_i32_1 = arith.constant 0 : i32
    return %arg0, %c0_i32, %c0_i32_0 : i32, i32, i32
  }
}

</mosaic_0001>

<llo_original>
// kernel: tpu_custom_call.1
$region0: #{tpu_custom_call.1}
  #allocation0 [shape = 'u32[]', space=smem, size = 0x4, offset = 0x4, fixed_abs, tag = 'smem constant byte address 0x4 - core index']
  #allocation1 [shape = 'u32[72,128]{1,0:T(1,128)}', space=vmem, size = 0x9000, scoped, tag = 'internal scratch']
  %s0 = inlined_call_operand.hbm [shape: f32[8,128], index: 0, kind: input, shape index: {}]
  %s1 = inlined_call_operand.hbm [shape: f32[8,128], index: 1, kind: output, shape index: {}]
  %s2 = sld [smem:[#allocation0]]
  $region41: #{tpu_custom_call.1} parent=0
    _
  %s4 = ssub.s32 1, %s2
  %s5 = scalar_select 0, %s4, %s2
  $region1: #{tpu_custom_call.1} parent=0
    #allocation2 [shape = 'u8[4096]{0}', space=vmem, size = 0x1000, scoped, tag = 'input window, operand 0, single buffered']
    #allocation3 [shape = 's32[2]{0}', space=sflag, size = 0x8, scoped, tag = 'scoped memory for tpu_custom_call.1']
    #allocation4 [shape = 's32[2]{0}', space=sflag, size = 0x8, scoped, tag = 'scoped memory for tpu_custom_call.1']
    #allocation5 [shape = 'u8[4096]{0}', space=vmem, size = 0x1000, scoped, tag = 'output window, operand 0, single buffered']
    %6 = vsyncpa [#allocation3], 0
    %7 = vsyncpa [#allocation4], 0
    loop: start=0, step=1, limit=4
    $region2: #{tpu_custom_call.1} parent=1 // loop_pre_header
      _
    $region3: #{tpu_custom_call.1} parent=1 // loop_header
      %s9 = sphi 0, %s13
      %p10 = scmp.ge.s32.totalorder %s9, 4
      %s17 = sphi 0, %s17
      %s19 = sphi 0, %s17
      %s20 = sphi 0, %s19
      %s34 = sphi 0, %s20
      %s38 = sphi 0, %s38
      %s40 = sphi 0, %s38
      %s41 = sphi 0, %s40
      %s55 = sphi 0, %s41
    $region4: #{tpu_custom_call.1} parent=1 // loop_header_branch
      %12 = sbr.rel (%p10) target = $region8
    $region5: #{tpu_custom_call.1} parent=1 // loop_body
      %s14 = ssub.s32 %s9, 1
      %s15 = ssub.s32 %s9, 2
      %s16 = sadd.s32 %s9, 1
      %s18 = sadd.s32 %s17, 1
      %p21 = scmp.eq.s32.totalorder %s9, 1
      %p22 = scmp.ne.s32.totalorder %s17, %s19
      %p23 = scmp.eq.s32.totalorder %s9, 0
      %p24 = por %p22, %p23
      %p25 = scmp.ne.s32.totalorder %s17, %s19
      %p26 = scmp.eq.s32.totalorder %s14, 1
      %p27 = por %p25, %p26
      %p28 = scmp.ne.s32.totalorder %s19, %s20
      %p29 = scmp.eq.s32.totalorder %s14, 0
      %p30 = por %p28, %p29
      %p31 = scmp.ne.s32.totalorder %s19, %s20
      %p32 = scmp.eq.s32.totalorder %s15, 1
      %p33 = por %p31, %p32
      %p35 = scmp.ne.s32.totalorder %s20, %s34
      %p36 = scmp.eq.s32.totalorder %s15, 0
      %p37 = por %p35, %p36
      %s39 = sadd.s32 %s38, 1
      %p42 = scmp.eq.s32.totalorder %s9, 1
      %p43 = scmp.ne.s32.totalorder %s38, %s40
      %p44 = scmp.eq.s32.totalorder %s9, 0
      %p45 = por %p43, %p44
      %p46 = scmp.ne.s32.totalorder %s38, %s40
      %p47 = scmp.eq.s32.totalorder %s14, 1
      %p48 = por %p46, %p47
      %p49 = scmp.ne.s32.totalorder %s40, %s41
      %p50 = scmp.eq.s32.totalorder %s14, 0
      %p51 = por %p49, %p50
      %p52 = scmp.ne.s32.totalorder %s40, %s41
      %p53 = scmp.eq.s32.totalorder %s15, 1
      %p54 = por %p52, %p53
      %p56 = scmp.ne.s32.totalorder %s41, %s55
      %p57 = scmp.eq.s32.totalorder %s15, 0
      %p58 = por %p56, %p57
      %p59 = scmp.le.s32.totalorder 1, %s9
      %p60 = scmp.lt.s32.totalorder %s9, 3
      %p61 = pnand %p59, %p60
      %p62 = pneg %p61
      // Predicated region
      $region9: #{tpu_custom_call.1} parent=5 // pred_check
        _
      $region10: #{tpu_custom_call.1} parent=5 // pred_check_branch
        %64 = sbr.rel (%p61) target = $region12
      $region11: #{tpu_custom_call.1} parent=5 // pred_region
        %s65 = ssub.s32 %s9, 1
        // Predicated region
        $region13: #{tpu_custom_call.1} parent=11 // pred_check
          %p66 = pneg %p30
        $region14: #{tpu_custom_call.1} parent=11 // pred_check_branch
          %68 = sbr.rel (%p66) target = $region16
        $region15: #{tpu_custom_call.1} parent=11 // pred_region
          %70 = vsyncadd [#allocation3], 0
          %s72 = sshll.u32 %s0, 4
          %s73 = int_to_ptr.hbm [resolvable:$true] %s72
          %s74 = sshll.u32 [#allocation2], 4
          %s75 = int_to_ptr.vmem [resolvable:$true] %s74
          %77 = dma.hbm_to_vmem [thread:$0]  %s73, 128, %s75, [#allocation3]
        $region16: #{tpu_custom_call.1} parent=11 // pred_fallthru
          _
      $region12: #{tpu_custom_call.1} parent=5 // pred_fallthru
        _
      %p78 = scmp.lt.s32.totalorder %s9, 2
      // Predicated region
      $region17: #{tpu_custom_call.1} parent=5 // pred_check
        %p79 = pneg %p78
      $region18: #{tpu_custom_call.1} parent=5 // pred_check_branch
        %81 = sbr.rel (%p79) target = $region20
      $region19: #{tpu_custom_call.1} parent=5 // pred_region
        _
      $region20: #{tpu_custom_call.1} parent=5 // pred_fallthru
        _
      %p82 = scmp.le.s32.totalorder 1, %s9
      %p83 = scmp.lt.s32.totalorder %s9, 3
      %p84 = pnand %p82, %p83
      %p85 = pneg %p84
      // Predicated region
      $region21: #{tpu_custom_call.1} parent=5 // pred_check
        _
      $region22: #{tpu_custom_call.1} parent=5 // pred_check_branch
        %87 = sbr.rel (%p84) target = $region24
      $region23: #{tpu_custom_call.1} parent=5 // pred_region
        %s88 = ssub.s32 %s9, 1
        // Predicated region
        $region25: #{tpu_custom_call.1} parent=23 // pred_check
          %p89 = pneg %p30
        $region26: #{tpu_custom_call.1} parent=23 // pred_check_branch
          %91 = sbr.rel (%p89) target = $region28
        $region27: #{tpu_custom_call.1} parent=23 // pred_region
          %93 = dma.done [#allocation3], 128
        $region28: #{tpu_custom_call.1} parent=23 // pred_fallthru
          _
        %p94 = pneg %p30
        %p95 = pneg %p27
        %p96 = pneg %p51
        %p97 = pneg %p48
        %v98 = vld [vmem:[#allocation2] sm:$0xff]
        %v99 = vadd.f32 %v98, 1.0
        %100 = vst [vmem:[#allocation5] sm:$0xff] %v99
        // Predicated region
        $region29: #{tpu_custom_call.1} parent=23 // pred_check
          %p101 = pneg %p48
        $region30: #{tpu_custom_call.1} parent=23 // pred_check_branch
          %103 = sbr.rel (%p101) target = $region32
        $region31: #{tpu_custom_call.1} parent=23 // pred_region
          %105 = vsyncadd [#allocation4], 0
          %s107 = sshll.u32 [#allocation5], 4
          %s108 = int_to_ptr.vmem [resolvable:$true] %s107
          %s109 = sshll.u32 %s1, 4
          %s110 = int_to_ptr.hbm [resolvable:$true] %s109
          %112 = dma.vmem_to_hbm [thread:$0]  %s108, 128, %s110, [#allocation4]
        $region32: #{tpu_custom_call.1} parent=23 // pred_fallthru
          _
        // Predicated region
        $region33: #{tpu_custom_call.1} parent=23 // pred_check
          %p113 = pneg %p48
        $region34: #{tpu_custom_call.1} parent=23 // pred_check_branch
          %115 = sbr.rel (%p113) target = $region36
        $region35: #{tpu_custom_call.1} parent=23 // pred_region
          %117 = dma.done [#allocation4], 128
        $region36: #{tpu_custom_call.1} parent=23 // pred_fallthru
          _
      $region24: #{tpu_custom_call.1} parent=5 // pred_fallthru
        _
      %p118 = scmp.le.s32.totalorder 2, %s9
      // Predicated region
      $region37: #{tpu_custom_call.1} parent=5 // pred_check
        %p119 = pneg %p118
      $region38: #{tpu_custom_call.1} parent=5 // pred_check_branch
        %121 = sbr.rel (%p119) target = $region40
      $region39: #{tpu_custom_call.1} parent=5 // pred_region
        %s122 = ssub.s32 %s9, 2
      $region40: #{tpu_custom_call.1} parent=5 // pred_fallthru
        _
    $region6: #{tpu_custom_call.1} parent=1 // loop_footer
      %s13 = sadd.s32 1, %s9
    $region7: #{tpu_custom_call.1} parent=1 // loop_footer_branch
      %8 = sbr.rel target = $region3
    $region8: #{tpu_custom_call.1} parent=1 // loop_exit
      _
    %123 = vsyncpa [#allocation3], 1
    %s124 = scalar_lea.sflag [#allocation3], 1
    %125 = vsyncpa %s124, 1
    %126 = vsyncpa [#allocation4], 1
    %s127 = scalar_lea.sflag [#allocation4], 1
    %128 = vsyncpa %s127, 1

// kernel: down_forward.5
$region0: #{down_forward.5}
  #allocation0 [shape = 'u32[]', space=smem, size = 0x4, offset = 0x4, fixed_abs, tag = 'smem constant byte address 0x4 - core index']
  #allocation1 [shape = 'u32[72,128]{1,0:T(1,128)}', space=vmem, size = 0x9000, scoped, tag = 'internal scratch']
  %s0 = inlined_call_operand.vmem [shape: bf16[2,8,8,128], index: 0, kind: input, shape index: {}]
  %s1 = inlined_call_operand.vmem [shape: f32[1,128], index: 1, kind: input, shape index: {}]
  %s2 = inlined_call_operand.vmem [shape: f32[1,128], index: 2, kind: input, shape index: {}]
  %s3 = inlined_call_operand.vmem [shape: f32[2,8,8,128], index: 3, kind: output, shape index: {}]
  %s4 = sld [smem:[#allocation0]]
  $region45: #{down_forward.5} parent=0
    _
  %s6 = ssub.s32 1, %s4
  %s7 = scalar_select 0, %s6, %s4
  loop: start=0, step=1, limit=4
  $region2: #{down_forward.5} parent=0 // loop_pre_header
    _
  $region3: #{down_forward.5} parent=0 // loop_header
    %s9 = sphi 0, %s13
    %p10 = scmp.ge.s32.totalorder %s9, 4
    %s19 = sphi 0, %s21
    %s22 = sphi 0, %s19
    %s23 = sphi 0, %s22
    %s39 = sphi 0, %s23
    %s43 = sphi 0, %s43
    %s45 = sphi 0, %s43
    %s46 = sphi 0, %s45
    %s60 = sphi 0, %s46
    %s64 = sphi 0, %s64
    %s66 = sphi 0, %s64
    %s67 = sphi 0, %s66
    %s81 = sphi 0, %s67
    %s87 = sphi 0, %s89
    %s90 = sphi 0, %s87
    %s91 = sphi 0, %s90
    %s107 = sphi 0, %s91
  $region4: #{down_forward.5} parent=0 // loop_header_branch
    %12 = sbr.rel (%p10) target = $region8
  $region5: #{down_forward.5} parent=0 // loop_body
    %s14 = ssub.s32 %s9, 1
    %s15 = ssub.s32 %s9, 2
    %s16 = sadd.s32 %s9, 1
    %s17 = ssub.s32 %s9, %s16
    %p18 = scmp.eq.s32.totalorder %s17, 0
    %s20 = sadd.s32 %s19, 1
    %s21 = scalar_select %p18, %s19, %s20
    %p24 = pneg %p18
    %p25 = scmp.eq.s32.totalorder %s9, 1
    %p26 = por %p24, %p25
    %p27 = scmp.ne.s32.totalorder %s19, %s22
    %p28 = scmp.eq.s32.totalorder %s9, 0
    %p29 = por %p27, %p28
    %p30 = scmp.ne.s32.totalorder %s19, %s22
    %p31 = scmp.eq.s32.totalorder %s14, 1
    %p32 = por %p30, %p31
    %p33 = scmp.ne.s32.totalorder %s22, %s23
    %p34 = scmp.eq.s32.totalorder %s14, 0
    %p35 = por %p33, %p34
    %p36 = scmp.ne.s32.totalorder %s22, %s23
    %p37 = scmp.eq.s32.totalorder %s15, 1
    %p38 = por %p36, %p37
    %p40 = scmp.ne.s32.totalorder %s23, %s39
    %p41 = scmp.eq.s32.totalorder %s15, 0
    %p42 = por %p40, %p41
    %s44 = sadd.s32 %s43, 1
    %p47 = scmp.eq.s32.totalorder %s9, 1
    %p48 = scmp.ne.s32.totalorder %s43, %s45
    %p49 = scmp.eq.s32.totalorder %s9, 0
    %p50 = por %p48, %p49
    %p51 = scmp.ne.s32.totalorder %s43, %s45
    %p52 = scmp.eq.s32.totalorder %s14, 1
    %p53 = por %p51, %p52
    %p54 = scmp.ne.s32.totalorder %s45, %s46
    %p55 = scmp.eq.s32.totalorder %s14, 0
    %p56 = por %p54, %p55
    %p57 = scmp.ne.s32.totalorder %s45, %s46
    %p58 = scmp.eq.s32.totalorder %s15, 1
    %p59 = por %p57, %p58
    %p61 = scmp.ne.s32.totalorder %s46, %s60
    %p62 = scmp.eq.s32.totalorder %s15, 0
    %p63 = por %p61, %p62
    %s65 = sadd.s32 %s64, 1
    %p68 = scmp.eq.s32.totalorder %s9, 1
    %p69 = scmp.ne.s32.totalorder %s64, %s66
    %p70 = scmp.eq.s32.totalorder %s9, 0
    %p71 = por %p69, %p70
    %p72 = scmp.ne.s32.totalorder %s64, %s66
    %p73 = scmp.eq.s32.totalorder %s14, 1
    %p74 = por %p72, %p73
    %p75 = scmp.ne.s32.totalorder %s66, %s67
    %p76 = scmp.eq.s32.totalorder %s14, 0
    %p77 = por %p75, %p76
    %p78 = scmp.ne.s32.totalorder %s66, %s67
    %p79 = scmp.eq.s32.totalorder %s15, 1
    %p80 = por %p78, %p79
    %p82 = scmp.ne.s32.totalorder %s67, %s81
    %p83 = scmp.eq.s32.totalorder %s15, 0
    %p84 = por %p82, %p83
    %s85 = ssub.s32 %s9, %s16
    %p86 = scmp.eq.s32.totalorder %s85, 0
    %s88 = sadd.s32 %s87, 1
    %s89 = scalar_select %p86, %s87, %s88
    %p92 = pneg %p86
    %p93 = scmp.eq.s32.totalorder %s9, 1
    %p94 = por %p92, %p93
    %p95 = scmp.ne.s32.totalorder %s87, %s90
    %p96 = scmp.eq.s32.totalorder %s9, 0
    %p97 = por %p95, %p96
    %p98 = scmp.ne.s32.totalorder %s87, %s90
    %p99 = scmp.eq.s32.totalorder %s14, 1
    %p100 = por %p98, %p99
    %p101 = scmp.ne.s32.totalorder %s90, %s91
    %p102 = scmp.eq.s32.totalorder %s14, 0
    %p103 = por %p101, %p102
    %p104 = scmp.ne.s32.totalorder %s90, %s91
    %p105 = scmp.eq.s32.totalorder %s15, 1
    %p106 = por %p104, %p105
    %p108 = scmp.ne.s32.totalorder %s91, %s107
    %p109 = scmp.eq.s32.totalorder %s15, 0
    %p110 = por %p108, %p109
    %p111 = scmp.le.s32.totalorder 1, %s9
    %p112 = scmp.lt.s32.totalorder %s9, 3
    %p113 = pnand %p111, %p112
    %p114 = pneg %p113
    // Predicated region
    $region9: #{down_forward.5} parent=5 // pred_check
      _
    $region10: #{down_forward.5} parent=5 // pred_check_branch
      %116 = sbr.rel (%p113) target = $region12
    $region11: #{down_forward.5} parent=5 // pred_region
      %s117 = ssub.s32 %s9, 1
      // Predicated region
      $region13: #{down_forward.5} parent=11 // pred_check
        %p118 = pneg %p56
      $region14: #{down_forward.5} parent=11 // pred_check_branch
        %120 = sbr.rel (%p118) target = $region16
      $region15: #{down_forward.5} parent=11 // pred_region
        _
      $region16: #{down_forward.5} parent=11 // pred_fallthru
        _
      // Predicated region
      $region17: #{down_forward.5} parent=11 // pred_check
        %p121 = pneg %p77
      $region18: #{down_forward.5} parent=11 // pred_check_branch
        %123 = sbr.rel (%p121) target = $region20
      $region19: #{down_forward.5} parent=11 // pred_region
        _
      $region20: #{down_forward.5} parent=11 // pred_fallthru
        _
    $region12: #{down_forward.5} parent=5 // pred_fallthru
      _
    %p124 = scmp.lt.s32.totalorder %s9, 2
    // Predicated region
    $region21: #{down_forward.5} parent=5 // pred_check
      %p125 = pneg %p124
    $region22: #{down_forward.5} parent=5 // pred_check_branch
      %127 = sbr.rel (%p125) target = $region24
    $region23: #{down_forward.5} parent=5 // pred_region
      // Predicated region
      $region25: #{down_forward.5} parent=23 // pred_check
        %p128 = pneg %p29
      $region26: #{down_forward.5} parent=23 // pred_check_branch
        %130 = sbr.rel (%p128) target = $region28
      $region27: #{down_forward.5} parent=23 // pred_region
        %p131 = scmp.lt.s32.totalorder %s9, 1
        %s132 = scalar_select %p131, %s9, 1
        %s133 = smul.addr %s132, 8
        %s134 = smul.addr %s133, 4
        %s135 = scalar_lea.vmem %s0, %s134
      $region28: #{down_forward.5} parent=23 // pred_fallthru
        _
    $region24: #{down_forward.5} parent=5 // pred_fallthru
      _
    %p136 = scmp.le.s32.totalorder 1, %s9
    %p137 = scmp.lt.s32.totalorder %s9, 3
    %p138 = pnand %p136, %p137
    %p139 = pneg %p138
    // Predicated region
    $region29: #{down_forward.5} parent=5 // pred_check
      _
    $region30: #{down_forward.5} parent=5 // pred_check_branch
      %141 = sbr.rel (%p138) target = $region32
    $region31: #{down_forward.5} parent=5 // pred_region
      %s142 = ssub.s32 %s9, 1
      %p143 = scmp.lt.s32.totalorder %s14, 1
      %s144 = scalar_select %p143, %s14, 1
      %s145 = smul.addr %s144, 8
      %s146 = smul.addr %s145, 4
      %s147 = scalar_lea.vmem %s0, %s146
      %p148 = pneg %p35
      %p149 = pneg %p32
      %p150 = pneg %p56
      %p151 = pneg %p53
      %p152 = pneg %p77
      %p153 = pneg %p74
      %p154 = pneg %p103
      %p155 = pneg %p100
      %p156 = scmp.lt.s32.totalorder %s14, 1
      %s157 = scalar_select %p156, %s14, 1
      %s158 = smul.addr %s157, 8
      %s159 = smul.addr %s158, 8
      %s160 = scalar_lea.vmem %s3, %s159
      %p161 = scmp.lt.s32.totalorder %s14, 1
      %s162 = scalar_select %p161, %s14, 1
      %s163 = smul.addr %s162, 8
      %s164 = smul.addr %s163, 4
      %s165 = scalar_lea.vmem %s0, %s164
      %p166 = scmp.lt.s32.totalorder %s14, 1
      %s167 = scalar_select %p166, %s14, 1
      %s168 = smul.addr %s167, 8
      %s169 = smul.addr %s168, 8
      %s170 = scalar_lea.vmem %s3, %s169
      %v171 = vld [vmem:[%s165] sm:$0xf]
      %v172 = vld [vmem:[%s165 + $0x4] sm:$0xf]
      %v173 = vld [vmem:[%s165 + $0x8] sm:$0xf]
      %v174 = vld [vmem:[%s165 + $0xc] sm:$0xf]
      %v175 = vld [vmem:[%s165 + $0x10] sm:$0xf]
      %v176 = vld [vmem:[%s165 + $0x14] sm:$0xf]
      %v177 = vld [vmem:[%s165 + $0x18] sm:$0xf]
      %v178 = vld [vmem:[%s165 + $0x1c] sm:$0xf]
      %v179 = vunpack.c.l.bf16 %v171
      %v180 = vunpack.c.l.bf16 %v172
      %v181 = vunpack.c.l.bf16 %v173
      %v182 = vunpack.c.l.bf16 %v174
      %v183 = vunpack.c.l.bf16 %v175
      %v184 = vunpack.c.l.bf16 %v176
      %v185 = vunpack.c.l.bf16 %v177
      %v186 = vunpack.c.l.bf16 %v178
      %v187 = vld [vmem:[%s1] sm:$0x1]
      %v189 = vperm.slane %v187, 0
      %v191 = vmul.f32 %v179, %v189
      %v192 = vmul.f32 %v180, %v189
      %v193 = vmul.f32 %v181, %v189
      %v194 = vmul.f32 %v182, %v189
      %v195 = vmul.f32 %v183, %v189
      %v196 = vmul.f32 %v184, %v189
      %v197 = vmul.f32 %v185, %v189
      %v198 = vmul.f32 %v186, %v189
      %v199 = vld [vmem:[%s2] sm:$0x1]
      %v201 = vperm.slane %v199, 0
      %v203 = vadd.f32 %v191, %v201
      %v204 = vadd.f32 %v192, %v201
      %v205 = vadd.f32 %v193, %v201
      %v206 = vadd.f32 %v194, %v201
      %v207 = vadd.f32 %v195, %v201
      %v208 = vadd.f32 %v196, %v201
      %v209 = vadd.f32 %v197, %v201
      %v210 = vadd.f32 %v198, %v201
      %v211 = vmax.f32 %v203, 0.0
      %v212 = vmax.f32 %v204, 0.0
      %v213 = vmax.f32 %v205, 0.0
      %v214 = vmax.f32 %v206, 0.0
      %v215 = vmax.f32 %v207, 0.0
      %v216 = vmax.f32 %v208, 0.0
      %v217 = vmax.f32 %v209, 0.0
      %v218 = vmax.f32 %v210, 0.0
      %219 = vst [vmem:[%s170] sm:$0xff] %v211
      %220 = vst [vmem:[%s170 + $0x8] sm:$0xff] %v212
      %221 = vst [vmem:[%s170 + $0x10] sm:$0xff] %v213
      %222 = vst [vmem:[%s170 + $0x18] sm:$0xff] %v214
      %223 = vst [vmem:[%s170 + $0x20] sm:$0xff] %v215
      %224 = vst [vmem:[%s170 + $0x28] sm:$0xff] %v216
      %225 = vst [vmem:[%s170 + $0x30] sm:$0xff] %v217
      %226 = vst [vmem:[%s170 + $0x38] sm:$0xff] %v218
      %p227 = scmp.lt.s32.totalorder %s14, 1
      %s228 = scalar_select %p227, %s14, 1
      %s229 = smul.addr %s228, 8
      %s230 = smul.addr %s229, 8
      %s231 = scalar_lea.vmem %s3, %s230
      // Predicated region
      $region33: #{down_forward.5} parent=31 // pred_check
        %p232 = pneg %p100
      $region34: #{down_forward.5} parent=31 // pred_check_branch
        %234 = sbr.rel (%p232) target = $region36
      $region35: #{down_forward.5} parent=31 // pred_region
        _
      $region36: #{down_forward.5} parent=31 // pred_fallthru
        _
    $region32: #{down_forward.5} parent=5 // pred_fallthru
      _
    %p235 = scmp.le.s32.totalorder 2, %s9
    // Predicated region
    $region37: #{down_forward.5} parent=5 // pred_check
      %p236 = pneg %p235
    $region38: #{down_forward.5} parent=5 // pred_check_branch
      %238 = sbr.rel (%p236) target = $region40
    $region39: #{down_forward.5} parent=5 // pred_region
      %s239 = ssub.s32 %s9, 2
      // Predicated region
      $region41: #{down_forward.5} parent=39 // pred_check
        %p240 = pneg %p106
      $region42: #{down_forward.5} parent=39 // pred_check_branch
        %242 = sbr.rel (%p240) target = $region44
      $region43: #{down_forward.5} parent=39 // pred_region
        %p243 = scmp.lt.s32.totalorder %s15, 1
        %s244 = scalar_select %p243, %s15, 1
        %s245 = smul.addr %s244, 8
        %s246 = smul.addr %s245, 8
        %s247 = scalar_lea.vmem %s3, %s246
      $region44: #{down_forward.5} parent=39 // pred_fallthru
        _
    $region40: #{down_forward.5} parent=5 // pred_fallthru
      _
  $region6: #{down_forward.5} parent=0 // loop_footer
    %s13 = sadd.s32 1, %s9
  $region7: #{down_forward.5} parent=0 // loop_footer_branch
    %8 = sbr.rel target = $region3
  $region8: #{down_forward.5} parent=0 // loop_exit
    _

// kernel: down_forward.3
$region0: #{down_forward.3}
  #allocation0 [shape = 'u32[]', space=smem, size = 0x4, offset = 0x4, fixed_abs, tag = 'smem constant byte address 0x4 - core index']
  #allocation1 [shape = 'u32[72,128]{1,0:T(1,128)}', space=vmem, size = 0x9000, scoped, tag = 'internal scratch']
  #allocation2 [shape = 'bf16[10,10,128]{2,1,0:T(8,128)(2,1)}', space=vmem, size = 0xa000, scoped, tag = 'scratch operand']
  %s0 = inlined_call_operand.vmem [shape: f32[2,16,8,256], index: 0, kind: input, shape index: {}]
  %s1 = inlined_call_operand.vmem [shape: bf16[1152,128], index: 1, kind: input, shape index: {}]
  %s2 = inlined_call_operand.vmem [shape: bf16[2,8,8,128], index: 2, kind: output, shape index: {0}]
  %s3 = inlined_call_operand.vmem [shape: f32[2,2,128], index: 3, kind: output, shape index: {1}]
  %4 = xla_tuple %s2, %s3
  %s5 = sld [smem:[#allocation0]]
  $region49: #{down_forward.3} parent=0
    _
  %s7 = ssub.s32 1, %s5
  %s8 = scalar_select 0, %s7, %s5
  loop: start=0, step=1, limit=4
  $region2: #{down_forward.3} parent=0 // loop_pre_header
    _
  $region3: #{down_forward.3} parent=0 // loop_header
    %s10 = sphi 0, %s14
    %p11 = scmp.ge.s32.totalorder %s10, 4
    %s20 = sphi 0, %s22
    %s23 = sphi 0, %s20
    %s24 = sphi 0, %s23
    %s40 = sphi 0, %s24
    %s44 = sphi 0, %s44
    %s46 = sphi 0, %s44
    %s47 = sphi 0, %s46
    %s61 = sphi 0, %s47
    %s67 = sphi 0, %s69
    %s70 = sphi 0, %s67
    %s71 = sphi 0, %s70
    %s87 = sphi 0, %s71
    %s93 = sphi 0, %s95
    %s96 = sphi 0, %s93
    %s97 = sphi 0, %s96
    %s113 = sphi 0, %s97
  $region4: #{down_forward.3} parent=0 // loop_header_branch
    %13 = sbr.rel (%p11) target = $region8
  $region5: #{down_forward.3} parent=0 // loop_body
    %s15 = ssub.s32 %s10, 1
    %s16 = ssub.s32 %s10, 2
    %s17 = sadd.s32 %s10, 1
    %s18 = ssub.s32 %s10, %s17
    %p19 = scmp.eq.s32.totalorder %s18, 0
    %s21 = sadd.s32 %s20, 1
    %s22 = scalar_select %p19, %s20, %s21
    %p25 = pneg %p19
    %p26 = scmp.eq.s32.totalorder %s10, 1
    %p27 = por %p25, %p26
    %p28 = scmp.ne.s32.totalorder %s20, %s23
    %p29 = scmp.eq.s32.totalorder %s10, 0
    %p30 = por %p28, %p29
    %p31 = scmp.ne.s32.totalorder %s20, %s23
    %p32 = scmp.eq.s32.totalorder %s15, 1
    %p33 = por %p31, %p32
    %p34 = scmp.ne.s32.totalorder %s23, %s24
    %p35 = scmp.eq.s32.totalorder %s15, 0
    %p36 = por %p34, %p35
    %p37 = scmp.ne.s32.totalorder %s23, %s24
    %p38 = scmp.eq.s32.totalorder %s16, 1
    %p39 = por %p37, %p38
    %p41 = scmp.ne.s32.totalorder %s24, %s40
    %p42 = scmp.eq.s32.totalorder %s16, 0
    %p43 = por %p41, %p42
    %s45 = sadd.s32 %s44, 1
    %p48 = scmp.eq.s32.totalorder %s10, 1
    %p49 = scmp.ne.s32.totalorder %s44, %s46
    %p50 = scmp.eq.s32.totalorder %s10, 0
    %p51 = por %p49, %p50
    %p52 = scmp.ne.s32.totalorder %s44, %s46
    %p53 = scmp.eq.s32.totalorder %s15, 1
    %p54 = por %p52, %p53
    %p55 = scmp.ne.s32.totalorder %s46, %s47
    %p56 = scmp.eq.s32.totalorder %s15, 0
    %p57 = por %p55, %p56
    %p58 = scmp.ne.s32.totalorder %s46, %s47
    %p59 = scmp.eq.s32.totalorder %s16, 1
    %p60 = por %p58, %p59
    %p62 = scmp.ne.s32.totalorder %s47, %s61
    %p63 = scmp.eq.s32.totalorder %s16, 0
    %p64 = por %p62, %p63
    %s65 = ssub.s32 %s10, %s17
    %p66 = scmp.eq.s32.totalorder %s65, 0
    %s68 = sadd.s32 %s67, 1
    %s69 = scalar_select %p66, %s67, %s68
    %p72 = pneg %p66
    %p73 = scmp.eq.s32.totalorder %s10, 1
    %p74 = por %p72, %p73
    %p75 = scmp.ne.s32.totalorder %s67, %s70
    %p76 = scmp.eq.s32.totalorder %s10, 0
    %p77 = por %p75, %p76
    %p78 = scmp.ne.s32.totalorder %s67, %s70
    %p79 = scmp.eq.s32.totalorder %s15, 1
    %p80 = por %p78, %p79
    %p81 = scmp.ne.s32.totalorder %s70, %s71
    %p82 = scmp.eq.s32.totalorder %s15, 0
    %p83 = por %p81, %p82
    %p84 = scmp.ne.s32.totalorder %s70, %s71
    %p85 = scmp.eq.s32.totalorder %s16, 1
    %p86 = por %p84, %p85
    %p88 = scmp.ne.s32.totalorder %s71, %s87
    %p89 = scmp.eq.s32.totalorder %s16, 0
    %p90 = por %p88, %p89
    %s91 = ssub.s32 %s10, %s17
    %p92 = scmp.eq.s32.totalorder %s91, 0
    %s94 = sadd.s32 %s93, 1
    %s95 = scalar_select %p92, %s93, %s94
    %p98 = pneg %p92
    %p99 = scmp.eq.s32.totalorder %s10, 1
    %p100 = por %p98, %p99
    %p101 = scmp.ne.s32.totalorder %s93, %s96
    %p102 = scmp.eq.s32.totalorder %s10, 0
    %p103 = por %p101, %p102
    %p104 = scmp.ne.s32.totalorder %s93, %s96
    %p105 = scmp.eq.s32.totalorder %s15, 1
    %p106 = por %p104, %p105
    %p107 = scmp.ne.s32.totalorder %s96, %s97
    %p108 = scmp.eq.s32.totalorder %s15, 0
    %p109 = por %p107, %p108
    %p110 = scmp.ne.s32.totalorder %s96, %s97
    %p111 = scmp.eq.s32.totalorder %s16, 1
    %p112 = por %p110, %p111
    %p114 = scmp.ne.s32.totalorder %s97, %s113
    %p115 = scmp.eq.s32.totalorder %s16, 0
    %p116 = por %p114, %p115
    %p117 = scmp.le.s32.totalorder 1, %s10
    %p118 = scmp.lt.s32.totalorder %s10, 3
    %p119 = pnand %p117, %p118
    %p120 = pneg %p119
    // Predicated region
    $region9: #{down_forward.3} parent=5 // pred_check
      _
    $region10: #{down_forward.3} parent=5 // pred_check_branch
      %122 = sbr.rel (%p119) target = $region12
    $region11: #{down_forward.3} parent=5 // pred_region
      %s123 = ssub.s32 %s10, 1
      // Predicated region
      $region13: #{down_forward.3} parent=11 // pred_check
        %p124 = pneg %p57
      $region14: #{down_forward.3} parent=11 // pred_check_branch
        %126 = sbr.rel (%p124) target = $region16
      $region15: #{down_forward.3} parent=11 // pred_region
        _
      $region16: #{down_forward.3} parent=11 // pred_fallthru
        _
    $region12: #{down_forward.3} parent=5 // pred_fallthru
      _
    %p127 = scmp.lt.s32.totalorder %s10, 2
    // Predicated region
    $region17: #{down_forward.3} parent=5 // pred_check
      %p128 = pneg %p127
    $region18: #{down_forward.3} parent=5 // pred_check_branch
      %130 = sbr.rel (%p128) target = $region20
    $region19: #{down_forward.3} parent=5 // pred_region
      // Predicated region
      $region21: #{down_forward.3} parent=19 // pred_check
        %p131 = pneg %p30
      $region22: #{down_forward.3} parent=19 // pred_check_branch
        %133 = sbr.rel (%p131) target = $region24
      $region23: #{down_forward.3} parent=19 // pred_region
        %p134 = scmp.lt.s32.totalorder %s10, 1
        %s135 = scalar_select %p134, %s10, 1
        %s136 = smul.addr %s135, 32
        %s137 = smul.addr %s136, 8
        %s138 = scalar_lea.vmem %s0, %s137
      $region24: #{down_forward.3} parent=19 // pred_fallthru
        _
    $region20: #{down_forward.3} parent=5 // pred_fallthru
      _
    %p139 = scmp.le.s32.totalorder 1, %s10
    %p140 = scmp.lt.s32.totalorder %s10, 3
    %p141 = pnand %p139, %p140
    %p142 = pneg %p141
    // Predicated region
    $region25: #{down_forward.3} parent=5 // pred_check
      _
    $region26: #{down_forward.3} parent=5 // pred_check_branch
      %144 = sbr.rel (%p141) target = $region28
    $region27: #{down_forward.3} parent=5 // pred_region
      %s145 = ssub.s32 %s10, 1
      %p146 = scmp.lt.s32.totalorder %s15, 1
      %s147 = scalar_select %p146, %s15, 1
      %s148 = smul.addr %s147, 32
      %s149 = smul.addr %s148, 8
      %s150 = scalar_lea.vmem %s0, %s149
      %p151 = pneg %p36
      %p152 = pneg %p33
      %p153 = pneg %p57
      %p154 = pneg %p54
      %p155 = pneg %p83
      %p156 = pneg %p80
      %p157 = scmp.lt.s32.totalorder %s15, 1
      %s158 = scalar_select %p157, %s15, 1
      %s159 = smul.addr %s158, 8
      %s160 = smul.addr %s159, 4
      %s161 = scalar_lea.vmem %s2, %s160
      %p162 = pneg %p109
      %p163 = pneg %p106
      %p164 = scmp.lt.s32.totalorder %s15, 1
      %s165 = scalar_select %p164, %s15, 1
      %s166 = smul.addr %s165, 2
      %s167 = scalar_lea.vmem %s3, %s166
      %p168 = scmp.lt.s32.totalorder %s15, 1
      %s169 = scalar_select %p168, %s15, 1
      %s170 = smul.addr %s169, 32
      %s171 = smul.addr %s170, 8
      %s172 = scalar_lea.vmem %s0, %s171
      %p173 = scmp.lt.s32.totalorder %s15, 1
      %s174 = scalar_select %p173, %s15, 1
      %s175 = smul.addr %s174, 8
      %s176 = smul.addr %s175, 4
      %s177 = scalar_lea.vmem %s2, %s176
      %p178 = scmp.lt.s32.totalorder %s15, 1
      %s179 = scalar_select %p178, %s15, 1
      %s180 = smul.addr %s179, 2
      %s181 = scalar_lea.vmem %s3, %s180
      %v183 = vld [vmem:[%s172] sm:$0xff]
      %v184 = vld [vmem:[%s172 + $0x8] sm:$0xff]
      %v185 = vld [vmem:[%s172 + $0x10] sm:$0xff]
      %v186 = vld [vmem:[%s172 + $0x18] sm:$0xff]
      %v187 = vld [vmem:[%s172 + $0x20] sm:$0xff]
      %v188 = vld [vmem:[%s172 + $0x28] sm:$0xff]
      %v189 = vld [vmem:[%s172 + $0x30] sm:$0xff]
      %v190 = vld [vmem:[%s172 + $0x38] sm:$0xff]
      %v191 = vld [vmem:[%s172 + $0x40] sm:$0xff]
      %v192 = vld [vmem:[%s172 + $0x48] sm:$0xff]
      %v193 = vld [vmem:[%s172 + $0x50] sm:$0xff]
      %v194 = vld [vmem:[%s172 + $0x58] sm:$0xff]
      %v195 = vld [vmem:[%s172 + $0x60] sm:$0xff]
      %v196 = vld [vmem:[%s172 + $0x68] sm:$0xff]
      %v197 = vld [vmem:[%s172 + $0x70] sm:$0xff]
      %v198 = vld [vmem:[%s172 + $0x78] sm:$0xff]
      %v199 = vld [vmem:[%s172 + $0x80] sm:$0xff]
      %v200 = vld [vmem:[%s172 + $0x88] sm:$0xff]
      %v201 = vld [vmem:[%s172 + $0x90] sm:$0xff]
      %v202 = vld [vmem:[%s172 + $0x98] sm:$0xff]
      %v203 = vld [vmem:[%s172 + $0xa0] sm:$0xff]
      %v204 = vld [vmem:[%s172 + $0xa8] sm:$0xff]
      %v205 = vld [vmem:[%s172 + $0xb0] sm:$0xff]
      %v206 = vld [vmem:[%s172 + $0xb8] sm:$0xff]
      %v207 = vld [vmem:[%s172 + $0xc0] sm:$0xff]
      %v208 = vld [vmem:[%s172 + $0xc8] sm:$0xff]
      %v209 = vld [vmem:[%s172 + $0xd0] sm:$0xff]
      %v210 = vld [vmem:[%s172 + $0xd8] sm:$0xff]
      %v211 = vld [vmem:[%s172 + $0xe0] sm:$0xff]
      %v212 = vld [vmem:[%s172 + $0xe8] sm:$0xff]
      %v213 = vld [vmem:[%s172 + $0xf0] sm:$0xff]
      %v214 = vld [vmem:[%s172 + $0xf8] sm:$0xff]
      %v215 = vmax.f32 %v183, %v184
      %v216 = vmax.f32 %v185, %v186
      %v217 = vmax.f32 %v187, %v188
      %v218 = vmax.f32 %v189, %v190
      %v219 = vmax.f32 %v191, %v192
      %v220 = vmax.f32 %v193, %v194
      %v221 = vmax.f32 %v195, %v196
      %v222 = vmax.f32 %v197, %v198
      %v223 = vmax.f32 %v199, %v200
      %v224 = vmax.f32 %v201, %v202
      %v225 = vmax.f32 %v203, %v204
      %v226 = vmax.f32 %v205, %v206
      %v227 = vmax.f32 %v207, %v208
      %v228 = vmax.f32 %v209, %v210
      %v229 = vmax.f32 %v211, %v212
      %v230 = vmax.f32 %v213, %v214
      %v231 = vmax.f32 %v215, %v216
      %v232 = vmax.f32 %v217, %v218
      %v233 = vmax.f32 %v219, %v220
      %v234 = vmax.f32 %v221, %v222
      %v235 = vmax.f32 %v223, %v224
      %v236 = vmax.f32 %v225, %v226
      %v237 = vmax.f32 %v227, %v228
      %v238 = vmax.f32 %v229, %v230
      %239 = vst [vmem:[#allocation2] sm:$0xf] 0
      %240 = vst [vmem:[#allocation2 + $0x4] sm:$0x1] 0
      %s241 = scalar_lea.vmem [#allocation2], 72
      %242 = vst [vmem:[%s241] sm:$0xf] 0
      %243 = vst [vmem:[%s241 + $0x4] sm:$0x1] 0
      %vm244 = vcmask 1040384
      %vm245 = vsmask.f32 256
      %vm246 = vmand %vm244, %vm245
      %v247 = vld [vmem:[#allocation2] sm:$0x1]
      %v248 = vsel %vm246, 0, %v247
      %249 = vst [vmem:[#allocation2] sm:$0x1] %v248
      %v250 = vld [vmem:[#allocation2 + $0x8] sm:$0x1]
      %v251 = vsel %vm246, 0, %v250
      %252 = vst [vmem:[#allocation2 + $0x8] sm:$0x1] %v251
      %v253 = vld [vmem:[#allocation2 + $0x10] sm:$0x1]
      %v254 = vsel %vm246, 0, %v253
      %255 = vst [vmem:[#allocation2 + $0x10] sm:$0x1] %v254
      %v256 = vld [vmem:[#allocation2 + $0x18] sm:$0x1]
      %v257 = vsel %vm246, 0, %v256
      %258 = vst [vmem:[#allocation2 + $0x18] sm:$0x1] %v257
      %v259 = vld [vmem:[#allocation2 + $0x20] sm:$0x1]
      %v260 = vsel %vm246, 0, %v259
      %261 = vst [vmem:[#allocation2 + $0x20] sm:$0x1] %v260
      %v262 = vld [vmem:[#allocation2 + $0x28] sm:$0x1]
      %v263 = vsel %vm246, 0, %v262
      %264 = vst [vmem:[#allocation2 + $0x28] sm:$0x1] %v263
      %v265 = vld [vmem:[#allocation2 + $0x30] sm:$0x1]
      %v266 = vsel %vm246, 0, %v265
      %267 = vst [vmem:[#allocation2 + $0x30] sm:$0x1] %v266
      %v268 = vld [vmem:[#allocation2 + $0x38] sm:$0x1]
      %v269 = vsel %vm246, 0, %v268
      %270 = vst [vmem:[#allocation2 + $0x38] sm:$0x1] %v269
      %v271 = vld [vmem:[#allocation2 + $0x40] sm:$0x1]
      %v272 = vsel %vm246, 0, %v271
      %273 = vst [vmem:[#allocation2 + $0x40] sm:$0x1] %v272
      %v274 = vld [vmem:[#allocation2 + $0x48] sm:$0x1]
      %v275 = vsel %vm246, 0, %v274
      %276 = vst [vmem:[#allocation2 + $0x48] sm:$0x1] %v275
      %vm277 = vsmask.f32 7938
      %vm278 = vmand %vm244, %vm277
      %v279 = vld [vmem:[#allocation2 + $0x4] sm:$0x1]
      %v280 = vsel %vm278, 0, %v279
      %281 = vst [vmem:[#allocation2 + $0x4] sm:$0x1] %v280
      %v282 = vld [vmem:[#allocation2 + $0xc] sm:$0x1]
      %v283 = vsel %vm278, 0, %v282
      %284 = vst [vmem:[#allocation2 + $0xc] sm:$0x1] %v283
      %v285 = vld [vmem:[#allocation2 + $0x14] sm:$0x1]
      %v286 = vsel %vm278, 0, %v285
      %287 = vst [vmem:[#allocation2 + $0x14] sm:$0x1] %v286
      %v288 = vld [vmem:[#allocation2 + $0x1c] sm:$0x1]
      %v289 = vsel %vm278, 0, %v288
      %290 = vst [vmem:[#allocation2 + $0x1c] sm:$0x1] %v289
      %v291 = vld [vmem:[#allocation2 + $0x24] sm:$0x1]
      %v292 = vsel %vm278, 0, %v291
      %293 = vst [vmem:[#allocation2 + $0x24] sm:$0x1] %v292
      %v294 = vld [vmem:[#allocation2 + $0x2c] sm:$0x1]
      %v295 = vsel %vm278, 0, %v294
      %296 = vst [vmem:[#allocation2 + $0x2c] sm:$0x1] %v295
      %v297 = vld [vmem:[#allocation2 + $0x34] sm:$0x1]
      %v298 = vsel %vm278, 0, %v297
      %299 = vst [vmem:[#allocation2 + $0x34] sm:$0x1] %v298
      %v300 = vld [vmem:[#allocation2 + $0x3c] sm:$0x1]
      %v301 = vsel %vm278, 0, %v300
      %302 = vst [vmem:[#allocation2 + $0x3c] sm:$0x1] %v301
      %v303 = vld [vmem:[#allocation2 + $0x44] sm:$0x1]
      %v304 = vsel %vm278, 0, %v303
      %305 = vst [vmem:[#allocation2 + $0x44] sm:$0x1] %v304
      %v306 = vld [vmem:[#allocation2 + $0x4c] sm:$0x1]
      %v307 = vsel %vm278, 0, %v306
      %308 = vst [vmem:[#allocation2 + $0x4c] sm:$0x1] %v307
      %v309 = vpack.c.bf16 %v231, %v231
      %v310 = vpack.c.bf16 %v232, %v232
      %v311 = vpack.c.bf16 %v233, %v233
      %v312 = vpack.c.bf16 %v234, %v234
      %v313 = vpack.c.bf16 %v235, %v235
      %v314 = vpack.c.bf16 %v236, %v236
      %v315 = vpack.c.bf16 %v237, %v237
      %v316 = vpack.c.bf16 %v238, %v238
      %v318 = vshrl.u32 %v309, 16
      %v320 = vrot.slane %v318, 7
      %v321 = vshll.u32 %v309, 16
      %v323 = vor.u32 %v320, %v321
      %v324 = vrot.slane %v320, 4
      %v326 = vshrl.u32 %v310, 16
      %v328 = vrot.slane %v326, 7
      %v329 = vshll.u32 %v310, 16
      %v331 = vor.u32 %v328, %v329
      %v332 = vrot.slane %v328, 4
      %v334 = vshrl.u32 %v311, 16
      %v336 = vrot.slane %v334, 7
      %v337 = vshll.u32 %v311, 16
      %v339 = vor.u32 %v336, %v337
      %v340 = vrot.slane %v336, 4
      %v342 = vshrl.u32 %v312, 16
      %v344 = vrot.slane %v342, 7
      %v345 = vshll.u32 %v312, 16
      %v347 = vor.u32 %v344, %v345
      %v348 = vrot.slane %v344, 4
      %v350 = vshrl.u32 %v313, 16
      %v352 = vrot.slane %v350, 7
      %v353 = vshll.u32 %v313, 16
      %v355 = vor.u32 %v352, %v353
      %v356 = vrot.slane %v352, 4
      %v358 = vshrl.u32 %v314, 16
      %v360 = vrot.slane %v358, 7
      %v361 = vshll.u32 %v314, 16
      %v363 = vor.u32 %v360, %v361
      %v364 = vrot.slane %v360, 4
      %v366 = vshrl.u32 %v315, 16
      %v368 = vrot.slane %v366, 7
      %v369 = vshll.u32 %v315, 16
      %v371 = vor.u32 %v368, %v369
      %v372 = vrot.slane %v368, 4
      %v374 = vshrl.u32 %v316, 16
      %v376 = vrot.slane %v374, 7
      %v377 = vshll.u32 %v316, 16
      %v379 = vor.u32 %v376, %v377
      %v380 = vrot.slane %v376, 4
      %s397 = scalar_lea.vmem [#allocation2], 8
      %vm398 = vcmask 1043456
      %vm399 = vmand %vm398, %vm277
      %v400 = vld [vmem:[%s397] sm:$0xf]
      %v401 = vsel %vm399, %v323, %v400
      %402 = vst [vmem:[%s397] sm:$0xf] %v401
      %v403 = vld [vmem:[%s397 + $0x4] sm:$0x1]
      %v404 = vsel %vm246, %v324, %v403
      %405 = vst [vmem:[%s397 + $0x4] sm:$0x1] %v404
      %v406 = vld [vmem:[%s397 + $0x8] sm:$0xf]
      %v407 = vsel %vm399, %v331, %v406
      %408 = vst [vmem:[%s397 + $0x8] sm:$0xf] %v407
      %v409 = vld [vmem:[%s397 + $0xc] sm:$0x1]
      %v410 = vsel %vm246, %v332, %v409
      %411 = vst [vmem:[%s397 + $0xc] sm:$0x1] %v410
      %v412 = vld [vmem:[%s397 + $0x10] sm:$0xf]
      %v413 = vsel %vm399, %v339, %v412
      %414 = vst [vmem:[%s397 + $0x10] sm:$0xf] %v413
      %v415 = vld [vmem:[%s397 + $0x14] sm:$0x1]
      %v416 = vsel %vm246, %v340, %v415
      %417 = vst [vmem:[%s397 + $0x14] sm:$0x1] %v416
      %v418 = vld [vmem:[%s397 + $0x18] sm:$0xf]
      %v419 = vsel %vm399, %v347, %v418
      %420 = vst [vmem:[%s397 + $0x18] sm:$0xf] %v419
      %v421 = vld [vmem:[%s397 + $0x1c] sm:$0x1]
      %v422 = vsel %vm246, %v348, %v421
      %423 = vst [vmem:[%s397 + $0x1c] sm:$0x1] %v422
      %v424 = vld [vmem:[%s397 + $0x20] sm:$0xf]
      %v425 = vsel %vm399, %v355, %v424
      %426 = vst [vmem:[%s397 + $0x20] sm:$0xf] %v425
      %v427 = vld [vmem:[%s397 + $0x24] sm:$0x1]
      %v428 = vsel %vm246, %v356, %v427
      %429 = vst [vmem:[%s397 + $0x24] sm:$0x1] %v428
      %v430 = vld [vmem:[%s397 + $0x28] sm:$0xf]
      %v431 = vsel %vm399, %v363, %v430
      %432 = vst [vmem:[%s397 + $0x28] sm:$0xf] %v431
      %v433 = vld [vmem:[%s397 + $0x2c] sm:$0x1]
      %v434 = vsel %vm246, %v364, %v433
      %435 = vst [vmem:[%s397 + $0x2c] sm:$0x1] %v434
      %v436 = vld [vmem:[%s397 + $0x30] sm:$0xf]
      %v437 = vsel %vm399, %v371, %v436
      %438 = vst [vmem:[%s397 + $0x30] sm:$0xf] %v437
      %v439 = vld [vmem:[%s397 + $0x34] sm:$0x1]
      %v440 = vsel %vm246, %v372, %v439
      %441 = vst [vmem:[%s397 + $0x34] sm:$0x1] %v440
      %v442 = vld [vmem:[%s397 + $0x38] sm:$0xf]
      %v443 = vsel %vm399, %v379, %v442
      %444 = vst [vmem:[%s397 + $0x38] sm:$0xf] %v443
      %v445 = vld [vmem:[%s397 + $0x3c] sm:$0x1]
      %v446 = vsel %vm246, %v380, %v445
      %447 = vst [vmem:[%s397 + $0x3c] sm:$0x1] %v446
      %v448 = vld [vmem:[#allocation2] sm:$0xf]
      %v449 = vld [vmem:[#allocation2 + $0x8] sm:$0xf]
      %v450 = vld [vmem:[#allocation2 + $0x10] sm:$0xf]
      %v451 = vld [vmem:[#allocation2 + $0x18] sm:$0xf]
      %v452 = vld [vmem:[#allocation2 + $0x20] sm:$0xf]
      %v453 = vld [vmem:[#allocation2 + $0x28] sm:$0xf]
      %v454 = vld [vmem:[#allocation2 + $0x30] sm:$0xf]
      %v455 = vld [vmem:[#allocation2 + $0x38] sm:$0xf]
      %v456 = vld [vmem:[#allocation2 + $0x4] sm:$0x1]
      %v457 = vld [vmem:[#allocation2 + $0xc] sm:$0x1]
      %v458 = vld [vmem:[#allocation2 + $0x14] sm:$0x1]
      %v459 = vld [vmem:[#allocation2 + $0x1c] sm:$0x1]
      %v460 = vld [vmem:[#allocation2 + $0x24] sm:$0x1]
      %v461 = vld [vmem:[#allocation2 + $0x2c] sm:$0x1]
      %v462 = vld [vmem:[#allocation2 + $0x34] sm:$0x1]
      %v463 = vld [vmem:[#allocation2 + $0x3c] sm:$0x1]
      %vm464 = vsmask.f32 3328
      %vm465 = vsmask.f32 7440
      %vm466 = vmor %vm464, %vm465
      %v468 = vshrl.u32 %v448, 16
      %v470 = vrot.slane %v468, 4
      %v471 = vshll.u32 %v448, 16
      %v473 = vrot.slane %v471, 5
      %v474 = vor.u32 %v470, %v473
      %v475 = vrot.slane %v474, 4
      %v477 = vshll.u32 %v456, 16
      %v479 = vrot.slane %v477, 5
      %v480 = vsel %vm466, %v475, %v479
      %v482 = vshrl.u32 %v449, 16
      %v484 = vrot.slane %v482, 4
      %v485 = vshll.u32 %v449, 16
      %v487 = vrot.slane %v485, 5
      %v488 = vor.u32 %v484, %v487
      %v489 = vrot.slane %v488, 4
      %v491 = vshll.u32 %v457, 16
      %v493 = vrot.slane %v491, 5
      %v494 = vsel %vm466, %v489, %v493
      %v496 = vshrl.u32 %v450, 16
      %v498 = vrot.slane %v496, 4
      %v499 = vshll.u32 %v450, 16
      %v501 = vrot.slane %v499, 5
      %v502 = vor.u32 %v498, %v501
      %v503 = vrot.slane %v502, 4
      %v505 = vshll.u32 %v458, 16
      %v507 = vrot.slane %v505, 5
      %v508 = vsel %vm466, %v503, %v507
      %v510 = vshrl.u32 %v451, 16
      %v512 = vrot.slane %v510, 4
      %v513 = vshll.u32 %v451, 16
      %v515 = vrot.slane %v513, 5
      %v516 = vor.u32 %v512, %v515
      %v517 = vrot.slane %v516, 4
      %v519 = vshll.u32 %v459, 16
      %v521 = vrot.slane %v519, 5
      %v522 = vsel %vm466, %v517, %v521
      %v524 = vshrl.u32 %v452, 16
      %v526 = vrot.slane %v524, 4
      %v527 = vshll.u32 %v452, 16
      %v529 = vrot.slane %v527, 5
      %v530 = vor.u32 %v526, %v529
      %v531 = vrot.slane %v530, 4
      %v533 = vshll.u32 %v460, 16
      %v535 = vrot.slane %v533, 5
      %v536 = vsel %vm466, %v531, %v535
      %v538 = vshrl.u32 %v453, 16
      %v540 = vrot.slane %v538, 4
      %v541 = vshll.u32 %v453, 16
      %v543 = vrot.slane %v541, 5
      %v544 = vor.u32 %v540, %v543
      %v545 = vrot.slane %v544, 4
      %v547 = vshll.u32 %v461, 16
      %v549 = vrot.slane %v547, 5
      %v550 = vsel %vm466, %v545, %v549
      %v552 = vshrl.u32 %v454, 16
      %v554 = vrot.slane %v552, 4
      %v555 = vshll.u32 %v454, 16
      %v557 = vrot.slane %v555, 5
      %v558 = vor.u32 %v554, %v557
      %v559 = vrot.slane %v558, 4
      %v561 = vshll.u32 %v462, 16
      %v563 = vrot.slane %v561, 5
      %v564 = vsel %vm466, %v559, %v563
      %v566 = vshrl.u32 %v455, 16
      %v568 = vrot.slane %v566, 4
      %v569 = vshll.u32 %v455, 16
      %v571 = vrot.slane %v569, 5
      %v572 = vor.u32 %v568, %v571
      %v573 = vrot.slane %v572, 4
      %v575 = vshll.u32 %v463, 16
      %v577 = vrot.slane %v575, 5
      %v578 = vsel %vm466, %v573, %v577
      %v579 = vld [vmem:[#allocation2] sm:$0xe]
      %v580 = vld [vmem:[#allocation2 + $0x8] sm:$0xe]
      %v581 = vld [vmem:[#allocation2 + $0x10] sm:$0xe]
      %v582 = vld [vmem:[#allocation2 + $0x18] sm:$0xe]
      %v583 = vld [vmem:[#allocation2 + $0x20] sm:$0xe]
      %v584 = vld [vmem:[#allocation2 + $0x28] sm:$0xe]
      %v585 = vld [vmem:[#allocation2 + $0x30] sm:$0xe]
      %v586 = vld [vmem:[#allocation2 + $0x38] sm:$0xe]
      %vm603 = vcmask 1042432
      %vm604 = vcmask 1046532
      %vm605 = vmor %vm603, %vm604
      %v606 = vrot.slane %v579, 5
      %v607 = vrot.slane %v606, 4
      %v608 = vrot.slane %v456, 5
      %v609 = vsel %vm605, %v607, %v608
      %v610 = vrot.slane %v580, 5
      %v611 = vrot.slane %v610, 4
      %v612 = vrot.slane %v457, 5
      %v613 = vsel %vm605, %v611, %v612
      %v614 = vrot.slane %v581, 5
      %v615 = vrot.slane %v614, 4
      %v616 = vrot.slane %v458, 5
      %v617 = vsel %vm605, %v615, %v616
      %v618 = vrot.slane %v582, 5
      %v619 = vrot.slane %v618, 4
      %v620 = vrot.slane %v459, 5
      %v621 = vsel %vm605, %v619, %v620
      %v622 = vrot.slane %v583, 5
      %v623 = vrot.slane %v622, 4
      %v624 = vrot.slane %v460, 5
      %v625 = vsel %vm605, %v623, %v624
      %v626 = vrot.slane %v584, 5
      %v627 = vrot.slane %v626, 4
      %v628 = vrot.slane %v461, 5
      %v629 = vsel %vm605, %v627, %v628
      %v630 = vrot.slane %v585, 5
      %v631 = vrot.slane %v630, 4
      %v632 = vrot.slane %v462, 5
      %v633 = vsel %vm605, %v631, %v632
      %v634 = vrot.slane %v586, 5
      %v635 = vrot.slane %v634, 4
      %v636 = vrot.slane %v463, 5
      %v637 = vsel %vm605, %v635, %v636
      %v646 = vunpack.c.l.b16 %v448
      %v647 = vunpack.c.l.b16 %v449
      %v648 = vunpack.c.l.b16 %v450
      %v649 = vunpack.c.l.b16 %v451
      %v650 = vunpack.c.l.b16 %v452
      %v651 = vunpack.c.l.b16 %v453
      %v652 = vunpack.c.l.b16 %v454
      %v653 = vunpack.c.l.b16 %v455
      %v654 = vpack.c.b16 %v647, %v646
      %v655 = vpack.c.b16 %v649, %v648
      %v656 = vpack.c.b16 %v651, %v650
      %v657 = vpack.c.b16 %v653, %v652
      %v662 = vunpack.c.l.b16 %v480
      %v663 = vunpack.c.l.b16 %v494
      %v664 = vunpack.c.l.b16 %v508
      %v665 = vunpack.c.l.b16 %v522
      %v666 = vunpack.c.l.b16 %v536
      %v667 = vunpack.c.l.b16 %v550
      %v668 = vunpack.c.l.b16 %v564
      %v669 = vunpack.c.l.b16 %v578
      %v670 = vpack.c.b16 %v663, %v662
      %v671 = vpack.c.b16 %v665, %v664
      %v672 = vpack.c.b16 %v667, %v666
      %v673 = vpack.c.b16 %v669, %v668
      %v678 = vunpack.c.l.b16 %v609
      %v679 = vunpack.c.l.b16 %v613
      %v680 = vunpack.c.l.b16 %v617
      %v681 = vunpack.c.l.b16 %v621
      %v682 = vunpack.c.l.b16 %v625
      %v683 = vunpack.c.l.b16 %v629
      %v684 = vunpack.c.l.b16 %v633
      %v685 = vunpack.c.l.b16 %v637
      %v686 = vpack.c.b16 %v679, %v678
      %v687 = vpack.c.b16 %v681, %v680
      %v688 = vpack.c.b16 %v683, %v682
      %v689 = vpack.c.b16 %v685, %v684
      %v694 = vld [vmem:[%s1] sm:$0xf]
      %v695 = vld [vmem:[%s1 + $0x4] sm:$0xf]
      %v696 = vld [vmem:[%s1 + $0x8] sm:$0xf]
      %v697 = vld [vmem:[%s1 + $0xc] sm:$0xf]
      %v698 = vld [vmem:[%s1 + $0x10] sm:$0xf]
      %v699 = vld [vmem:[%s1 + $0x14] sm:$0xf]
      %v700 = vld [vmem:[%s1 + $0x18] sm:$0xf]
      %v701 = vld [vmem:[%s1 + $0x1c] sm:$0xf]
      %v702 = vld [vmem:[%s1 + $0x20] sm:$0xf]
      %v703 = vld [vmem:[%s1 + $0x24] sm:$0xf]
      %v704 = vld [vmem:[%s1 + $0x28] sm:$0xf]
      %v705 = vld [vmem:[%s1 + $0x2c] sm:$0xf]
      %v706 = vld [vmem:[%s1 + $0x30] sm:$0xf]
      %v707 = vld [vmem:[%s1 + $0x34] sm:$0xf]
      %v708 = vld [vmem:[%s1 + $0x38] sm:$0xf]
      %v709 = vld [vmem:[%s1 + $0x3c] sm:$0xf]
      %v710 = vld [vmem:[%s1 + $0x40] sm:$0xf]
      %v711 = vld [vmem:[%s1 + $0x44] sm:$0xf]
      %v712 = vld [vmem:[%s1 + $0x48] sm:$0xf]
      %v713 = vld [vmem:[%s1 + $0x4c] sm:$0xf]
      %v714 = vld [vmem:[%s1 + $0x50] sm:$0xf]
      %v715 = vld [vmem:[%s1 + $0x54] sm:$0xf]
      %v716 = vld [vmem:[%s1 + $0x58] sm:$0xf]
      %v717 = vld [vmem:[%s1 + $0x5c] sm:$0xf]
      %v718 = vld [vmem:[%s1 + $0x60] sm:$0xf]
      %v719 = vld [vmem:[%s1 + $0x64] sm:$0xf]
      %v720 = vld [vmem:[%s1 + $0x68] sm:$0xf]
      %v721 = vld [vmem:[%s1 + $0x6c] sm:$0xf]
      %v722 = vld [vmem:[%s1 + $0x70] sm:$0xf]
      %v723 = vld [vmem:[%s1 + $0x74] sm:$0xf]
      %v724 = vld [vmem:[%s1 + $0x78] sm:$0xf]
      %v725 = vld [vmem:[%s1 + $0x7c] sm:$0xf]
      %v726 = vld [vmem:[%s1 + $0x80] sm:$0xf]
      %v727 = vld [vmem:[%s1 + $0x84] sm:$0xf]
      %v728 = vld [vmem:[%s1 + $0x88] sm:$0xf]
      %v729 = vld [vmem:[%s1 + $0x8c] sm:$0xf]
      %v730 = vld [vmem:[%s1 + $0x90] sm:$0xf]
      %v731 = vld [vmem:[%s1 + $0x94] sm:$0xf]
      %v732 = vld [vmem:[%s1 + $0x98] sm:$0xf]
      %v733 = vld [vmem:[%s1 + $0x9c] sm:$0xf]
      %v734 = vld [vmem:[%s1 + $0xa0] sm:$0xf]
      %v735 = vld [vmem:[%s1 + $0xa4] sm:$0xf]
      %v736 = vld [vmem:[%s1 + $0xa8] sm:$0xf]
      %v737 = vld [vmem:[%s1 + $0xac] sm:$0xf]
      %v738 = vld [vmem:[%s1 + $0xb0] sm:$0xf]
      %v739 = vld [vmem:[%s1 + $0xb4] sm:$0xf]
      %v740 = vld [vmem:[%s1 + $0xb8] sm:$0xf]
      %v741 = vld [vmem:[%s1 + $0xbc] sm:$0xf]
      %v742 = vld [vmem:[%s397] sm:$0xf]
      %v743 = vld [vmem:[%s397 + $0x8] sm:$0xf]
      %v744 = vld [vmem:[%s397 + $0x10] sm:$0xf]
      %v745 = vld [vmem:[%s397 + $0x18] sm:$0xf]
      %v746 = vld [vmem:[%s397 + $0x20] sm:$0xf]
      %v747 = vld [vmem:[%s397 + $0x28] sm:$0xf]
      %v748 = vld [vmem:[%s397 + $0x30] sm:$0xf]
      %v749 = vld [vmem:[%s397 + $0x38] sm:$0xf]
      %v750 = vld [vmem:[%s397 + $0x4] sm:$0x1]
      %v751 = vld [vmem:[%s397 + $0xc] sm:$0x1]
      %v752 = vld [vmem:[%s397 + $0x14] sm:$0x1]
      %v753 = vld [vmem:[%s397 + $0x1c] sm:$0x1]
      %v754 = vld [vmem:[%s397 + $0x24] sm:$0x1]
      %v755 = vld [vmem:[%s397 + $0x2c] sm:$0x1]
      %v756 = vld [vmem:[%s397 + $0x34] sm:$0x1]
      %v757 = vld [vmem:[%s397 + $0x3c] sm:$0x1]
      %v759 = vshrl.u32 %v742, 16
      %v761 = vrot.slane %v759, 4
      %v762 = vshll.u32 %v742, 16
      %v764 = vrot.slane %v762, 5
      %v765 = vor.u32 %v761, %v764
      %v766 = vrot.slane %v765, 4
      %v768 = vshll.u32 %v750, 16
      %v770 = vrot.slane %v768, 5
      %v771 = vsel %vm466, %v766, %v770
      %v773 = vshrl.u32 %v743, 16
      %v775 = vrot.slane %v773, 4
      %v776 = vshll.u32 %v743, 16
      %v778 = vrot.slane %v776, 5
      %v779 = vor.u32 %v775, %v778
      %v780 = vrot.slane %v779, 4
      %v782 = vshll.u32 %v751, 16
      %v784 = vrot.slane %v782, 5
      %v785 = vsel %vm466, %v780, %v784
      %v787 = vshrl.u32 %v744, 16
      %v789 = vrot.slane %v787, 4
      %v790 = vshll.u32 %v744, 16
      %v792 = vrot.slane %v790, 5
      %v793 = vor.u32 %v789, %v792
      %v794 = vrot.slane %v793, 4
      %v796 = vshll.u32 %v752, 16
      %v798 = vrot.slane %v796, 5
      %v799 = vsel %vm466, %v794, %v798
      %v801 = vshrl.u32 %v745, 16
      %v803 = vrot.slane %v801, 4
      %v804 = vshll.u32 %v745, 16
      %v806 = vrot.slane %v804, 5
      %v807 = vor.u32 %v803, %v806
      %v808 = vrot.slane %v807, 4
      %v810 = vshll.u32 %v753, 16
      %v812 = vrot.slane %v810, 5
      %v813 = vsel %vm466, %v808, %v812
      %v815 = vshrl.u32 %v746, 16
      %v817 = vrot.slane %v815, 4
      %v818 = vshll.u32 %v746, 16
      %v820 = vrot.slane %v818, 5
      %v821 = vor.u32 %v817, %v820
      %v822 = vrot.slane %v821, 4
      %v824 = vshll.u32 %v754, 16
      %v826 = vrot.slane %v824, 5
      %v827 = vsel %vm466, %v822, %v826
      %v829 = vshrl.u32 %v747, 16
      %v831 = vrot.slane %v829, 4
      %v832 = vshll.u32 %v747, 16
      %v834 = vrot.slane %v832, 5
      %v835 = vor.u32 %v831, %v834
      %v836 = vrot.slane %v835, 4
      %v838 = vshll.u32 %v755, 16
      %v840 = vrot.slane %v838, 5
      %v841 = vsel %vm466, %v836, %v840
      %v843 = vshrl.u32 %v748, 16
      %v845 = vrot.slane %v843, 4
      %v846 = vshll.u32 %v748, 16
      %v848 = vrot.slane %v846, 5
      %v849 = vor.u32 %v845, %v848
      %v850 = vrot.slane %v849, 4
      %v852 = vshll.u32 %v756, 16
      %v854 = vrot.slane %v852, 5
      %v855 = vsel %vm466, %v850, %v854
      %v857 = vshrl.u32 %v749, 16
      %v859 = vrot.slane %v857, 4
      %v860 = vshll.u32 %v749, 16
      %v862 = vrot.slane %v860, 5
      %v863 = vor.u32 %v859, %v862
      %v864 = vrot.slane %v863, 4
      %v866 = vshll.u32 %v757, 16
      %v868 = vrot.slane %v866, 5
      %v869 = vsel %vm466, %v864, %v868
      %v870 = vld [vmem:[%s397] sm:$0xe]
      %v871 = vld [vmem:[%s397 + $0x8] sm:$0xe]
      %v872 = vld [vmem:[%s397 + $0x10] sm:$0xe]
      %v873 = vld [vmem:[%s397 + $0x18] sm:$0xe]
      %v874 = vld [vmem:[%s397 + $0x20] sm:$0xe]
      %v875 = vld [vmem:[%s397 + $0x28] sm:$0xe]
      %v876 = vld [vmem:[%s397 + $0x30] sm:$0xe]
      %v877 = vld [vmem:[%s397 + $0x38] sm:$0xe]
      %v894 = vrot.slane %v870, 5
      %v895 = vrot.slane %v894, 4
      %v896 = vrot.slane %v750, 5
      %v897 = vsel %vm605, %v895, %v896
      %v898 = vrot.slane %v871, 5
      %v899 = vrot.slane %v898, 4
      %v900 = vrot.slane %v751, 5
      %v901 = vsel %vm605, %v899, %v900
      %v902 = vrot.slane %v872, 5
      %v903 = vrot.slane %v902, 4
      %v904 = vrot.slane %v752, 5
      %v905 = vsel %vm605, %v903, %v904
      %v906 = vrot.slane %v873, 5
      %v907 = vrot.slane %v906, 4
      %v908 = vrot.slane %v753, 5
      %v909 = vsel %vm605, %v907, %v908
      %v910 = vrot.slane %v874, 5
      %v911 = vrot.slane %v910, 4
      %v912 = vrot.slane %v754, 5
      %v913 = vsel %vm605, %v911, %v912
      %v914 = vrot.slane %v875, 5
      %v915 = vrot.slane %v914, 4
      %v916 = vrot.slane %v755, 5
      %v917 = vsel %vm605, %v915, %v916
      %v918 = vrot.slane %v876, 5
      %v919 = vrot.slane %v918, 4
      %v920 = vrot.slane %v756, 5
      %v921 = vsel %vm605, %v919, %v920
      %v922 = vrot.slane %v877, 5
      %v923 = vrot.slane %v922, 4
      %v924 = vrot.slane %v757, 5
      %v925 = vsel %vm605, %v923, %v924
      %v934 = vunpack.c.l.b16 %v742
      %v935 = vunpack.c.l.b16 %v743
      %v936 = vunpack.c.l.b16 %v744
      %v937 = vunpack.c.l.b16 %v745
      %v938 = vunpack.c.l.b16 %v746
      %v939 = vunpack.c.l.b16 %v747
      %v940 = vunpack.c.l.b16 %v748
      %v941 = vunpack.c.l.b16 %v749
      %v942 = vpack.c.b16 %v935, %v934
      %v943 = vpack.c.b16 %v937, %v936
      %v944 = vpack.c.b16 %v939, %v938
      %v945 = vpack.c.b16 %v941, %v940
      %v950 = vunpack.c.l.b16 %v771
      %v951 = vunpack.c.l.b16 %v785
      %v952 = vunpack.c.l.b16 %v799
      %v953 = vunpack.c.l.b16 %v813
      %v954 = vunpack.c.l.b16 %v827
      %v955 = vunpack.c.l.b16 %v841
      %v956 = vunpack.c.l.b16 %v855
      %v957 = vunpack.c.l.b16 %v869
      %v958 = vpack.c.b16 %v951, %v950
      %v959 = vpack.c.b16 %v953, %v952
      %v960 = vpack.c.b16 %v955, %v954
      %v961 = vpack.c.b16 %v957, %v956
      %v966 = vunpack.c.l.b16 %v897
      %v967 = vunpack.c.l.b16 %v901
      %v968 = vunpack.c.l.b16 %v905
      %v969 = vunpack.c.l.b16 %v909
      %v970 = vunpack.c.l.b16 %v913
      %v971 = vunpack.c.l.b16 %v917
      %v972 = vunpack.c.l.b16 %v921
      %v973 = vunpack.c.l.b16 %v925
      %v974 = vpack.c.b16 %v967, %v966
      %v975 = vpack.c.b16 %v969, %v968
      %v976 = vpack.c.b16 %v971, %v970
      %v977 = vpack.c.b16 %v973, %v972
      %v982 = vld [vmem:[%s1 + $0xc0] sm:$0xf]
      %v983 = vld [vmem:[%s1 + $0xc4] sm:$0xf]
      %v984 = vld [vmem:[%s1 + $0xc8] sm:$0xf]
      %v985 = vld [vmem:[%s1 + $0xcc] sm:$0xf]
      %v986 = vld [vmem:[%s1 + $0xd0] sm:$0xf]
      %v987 = vld [vmem:[%s1 + $0xd4] sm:$0xf]
      %v988 = vld [vmem:[%s1 + $0xd8] sm:$0xf]
      %v989 = vld [vmem:[%s1 + $0xdc] sm:$0xf]
      %v990 = vld [vmem:[%s1 + $0xe0] sm:$0xf]
      %v991 = vld [vmem:[%s1 + $0xe4] sm:$0xf]
      %v992 = vld [vmem:[%s1 + $0xe8] sm:$0xf]
      %v993 = vld [vmem:[%s1 + $0xec] sm:$0xf]
      %v994 = vld [vmem:[%s1 + $0xf0] sm:$0xf]
      %v995 = vld [vmem:[%s1 + $0xf4] sm:$0xf]
      %v996 = vld [vmem:[%s1 + $0xf8] sm:$0xf]
      %v997 = vld [vmem:[%s1 + $0xfc] sm:$0xf]
      %v998 = vld [vmem:[%s1 + $0x100] sm:$0xf]
      %v999 = vld [vmem:[%s1 + $0x104] sm:$0xf]
      %v1000 = vld [vmem:[%s1 + $0x108] sm:$0xf]
      %v1001 = vld [vmem:[%s1 + $0x10c] sm:$0xf]
      %v1002 = vld [vmem:[%s1 + $0x110] sm:$0xf]
      %v1003 = vld [vmem:[%s1 + $0x114] sm:$0xf]
      %v1004 = vld [vmem:[%s1 + $0x118] sm:$0xf]
      %v1005 = vld [vmem:[%s1 + $0x11c] sm:$0xf]
      %v1006 = vld [vmem:[%s1 + $0x120] sm:$0xf]
      %v1007 = vld [vmem:[%s1 + $0x124] sm:$0xf]
      %v1008 = vld [vmem:[%s1 + $0x128] sm:$0xf]
      %v1009 = vld [vmem:[%s1 + $0x12c] sm:$0xf]
      %v1010 = vld [vmem:[%s1 + $0x130] sm:$0xf]
      %v1011 = vld [vmem:[%s1 + $0x134] sm:$0xf]
      %v1012 = vld [vmem:[%s1 + $0x138] sm:$0xf]
      %v1013 = vld [vmem:[%s1 + $0x13c] sm:$0xf]
      %v1014 = vld [vmem:[%s1 + $0x140] sm:$0xf]
      %v1015 = vld [vmem:[%s1 + $0x144] sm:$0xf]
      %v1016 = vld [vmem:[%s1 + $0x148] sm:$0xf]
      %v1017 = vld [vmem:[%s1 + $0x14c] sm:$0xf]
      %v1018 = vld [vmem:[%s1 + $0x150] sm:$0xf]
      %v1019 = vld [vmem:[%s1 + $0x154] sm:$0xf]
      %v1020 = vld [vmem:[%s1 + $0x158] sm:$0xf]
      %v1021 = vld [vmem:[%s1 + $0x15c] sm:$0xf]
      %v1022 = vld [vmem:[%s1 + $0x160] sm:$0xf]
      %v1023 = vld [vmem:[%s1 + $0x164] sm:$0xf]
      %v1024 = vld [vmem:[%s1 + $0x168] sm:$0xf]
      %v1025 = vld [vmem:[%s1 + $0x16c] sm:$0xf]
      %v1026 = vld [vmem:[%s1 + $0x170] sm:$0xf]
      %v1027 = vld [vmem:[%s1 + $0x174] sm:$0xf]
      %v1028 = vld [vmem:[%s1 + $0x178] sm:$0xf]
      %v1029 = vld [vmem:[%s1 + $0x17c] sm:$0xf]
      %v1078 = vunpack.c.l.b16 %v982
      %v1079 = vunpack.c.l.b16 %v983
      %v1080 = vunpack.c.l.b16 %v984
      %v1081 = vunpack.c.l.b16 %v985
      %v1082 = vunpack.c.l.b16 %v986
      %v1083 = vunpack.c.l.b16 %v987
      %v1084 = vunpack.c.l.b16 %v988
      %v1085 = vunpack.c.l.b16 %v989
      %v1086 = vunpack.c.l.b16 %v990
      %v1087 = vunpack.c.l.b16 %v991
      %v1088 = vunpack.c.l.b16 %v992
      %v1089 = vunpack.c.l.b16 %v993
      %v1090 = vunpack.c.l.b16 %v994
      %v1091 = vunpack.c.l.b16 %v995
      %v1092 = vunpack.c.l.b16 %v996
      %v1093 = vunpack.c.l.b16 %v997
      %v1094 = vunpack.c.l.b16 %v998
      %v1095 = vunpack.c.l.b16 %v999
      %v1096 = vunpack.c.l.b16 %v1000
      %v1097 = vunpack.c.l.b16 %v1001
      %v1098 = vunpack.c.l.b16 %v1002
      %v1099 = vunpack.c.l.b16 %v1003
      %v1100 = vunpack.c.l.b16 %v1004
      %v1101 = vunpack.c.l.b16 %v1005
      %v1102 = vunpack.c.l.b16 %v1006
      %v1103 = vunpack.c.l.b16 %v1007
      %v1104 = vunpack.c.l.b16 %v1008
      %v1105 = vunpack.c.l.b16 %v1009
      %v1106 = vunpack.c.l.b16 %v1010
      %v1107 = vunpack.c.l.b16 %v1011
      %v1108 = vunpack.c.l.b16 %v1012
      %v1109 = vunpack.c.l.b16 %v1013
      %v1110 = vunpack.c.l.b16 %v1014
      %v1111 = vunpack.c.l.b16 %v1015
      %v1112 = vunpack.c.l.b16 %v1016
      %v1113 = vunpack.c.l.b16 %v1017
      %v1114 = vunpack.c.l.b16 %v1018
      %v1115 = vunpack.c.l.b16 %v1019
      %v1116 = vunpack.c.l.b16 %v1020
      %v1117 = vunpack.c.l.b16 %v1021
      %v1118 = vunpack.c.l.b16 %v1022
      %v1119 = vunpack.c.l.b16 %v1023
      %v1120 = vunpack.c.l.b16 %v1024
      %v1121 = vunpack.c.l.b16 %v1025
      %v1122 = vunpack.c.l.b16 %v1026
      %v1123 = vunpack.c.l.b16 %v1027
      %v1124 = vunpack.c.l.b16 %v1028
      %v1125 = vunpack.c.l.b16 %v1029
      %v1126 = vpack.c.b16 %v1079, %v1078
      %v1127 = vpack.c.b16 %v1081, %v1080
      %v1128 = vpack.c.b16 %v1083, %v1082
      %v1129 = vpack.c.b16 %v1085, %v1084
      %v1130 = vpack.c.b16 %v1087, %v1086
      %v1131 = vpack.c.b16 %v1089, %v1088
      %v1132 = vpack.c.b16 %v1091, %v1090
      %v1133 = vpack.c.b16 %v1093, %v1092
      %v1134 = vpack.c.b16 %v1095, %v1094
      %v1135 = vpack.c.b16 %v1097, %v1096
      %v1136 = vpack.c.b16 %v1099, %v1098
      %v1137 = vpack.c.b16 %v1101, %v1100
      %v1138 = vpack.c.b16 %v1103, %v1102
      %v1139 = vpack.c.b16 %v1105, %v1104
      %v1140 = vpack.c.b16 %v1107, %v1106
      %v1141 = vpack.c.b16 %v1109, %v1108
      %v1142 = vpack.c.b16 %v1111, %v1110
      %v1143 = vpack.c.b16 %v1113, %v1112
      %v1144 = vpack.c.b16 %v1115, %v1114
      %v1145 = vpack.c.b16 %v1117, %v1116
      %v1146 = vpack.c.b16 %v1119, %v1118
      %v1147 = vpack.c.b16 %v1121, %v1120
      %v1148 = vpack.c.b16 %v1123, %v1122
      %v1149 = vpack.c.b16 %v1125, %v1124
      %1174 = vmatpush.bf16.msra.mxu0 %v1133
      %1175 = vmatpush.bf16.msra.mxu0 %v1132
      %1176 = vmatpush.bf16.msra.mxu0 %v1131
      %1177 = vmatpush.bf16.msra.mxu0 %v1130
      %1178 = vmatpush.bf16.msra.mxu0 %v1129
      %1179 = vmatpush.bf16.msra.mxu0 %v1128
      %1180 = vmatpush.bf16.msra.mxu0 %v1127
      %1181 = vmatpush.bf16.msra.mxu0 %v1126
      %1182 = vmatmul.bf16.gmra.mxu0 %v942
      %v1183 = vpop.f32.mrf.mxu0
      %v1184 = vadd.f32 0.0, %v1183
      %v1185 = vpop.f32.mrf.mxu0
      %v1186 = vadd.f32 0.0, %v1185
      %1187 = vmatmul.bf16.gmra.mxu0 %v943
      %v1188 = vpop.f32.mrf.mxu0
      %v1189 = vadd.f32 0.0, %v1188
      %v1190 = vpop.f32.mrf.mxu0
      %v1191 = vadd.f32 0.0, %v1190
      %1192 = vmatmul.bf16.gmra.mxu0 %v944
      %v1193 = vpop.f32.mrf.mxu0
      %v1194 = vadd.f32 0.0, %v1193
      %v1195 = vpop.f32.mrf.mxu0
      %v1196 = vadd.f32 0.0, %v1195
      %1197 = vmatmul.bf16.gmra.mxu0 %v945
      %v1198 = vpop.f32.mrf.mxu0
      %v1199 = vadd.f32 0.0, %v1198
      %v1200 = vpop.f32.mrf.mxu0
      %v1201 = vadd.f32 0.0, %v1200
      %1202 = vdwg.mxu0
      %1203 = vmatpush.bf16.msra.mxu0 %v1141
      %1204 = vmatpush.bf16.msra.mxu0 %v1140
      %1205 = vmatpush.bf16.msra.mxu0 %v1139
      %1206 = vmatpush.bf16.msra.mxu0 %v1138
      %1207 = vmatpush.bf16.msra.mxu0 %v1137
      %1208 = vmatpush.bf16.msra.mxu0 %v1136
      %1209 = vmatpush.bf16.msra.mxu0 %v1135
      %1210 = vmatpush.bf16.msra.mxu0 %v1134
      %1211 = vmatmul.bf16.gmra.mxu0 %v958
      %v1212 = vpop.f32.mrf.mxu0
      %v1213 = vadd.f32 %v1184, %v1212
      %v1214 = vpop.f32.mrf.mxu0
      %v1215 = vadd.f32 %v1186, %v1214
      %1216 = vmatmul.bf16.gmra.mxu0 %v959
      %v1217 = vpop.f32.mrf.mxu0
      %v1218 = vadd.f32 %v1189, %v1217
      %v1219 = vpop.f32.mrf.mxu0
      %v1220 = vadd.f32 %v1191, %v1219
      %1221 = vmatmul.bf16.gmra.mxu0 %v960
      %v1222 = vpop.f32.mrf.mxu0
      %v1223 = vadd.f32 %v1194, %v1222
      %v1224 = vpop.f32.mrf.mxu0
      %v1225 = vadd.f32 %v1196, %v1224
      %1226 = vmatmul.bf16.gmra.mxu0 %v961
      %v1227 = vpop.f32.mrf.mxu0
      %v1228 = vadd.f32 %v1199, %v1227
      %v1229 = vpop.f32.mrf.mxu0
      %v1230 = vadd.f32 %v1201, %v1229
      %1231 = vdwg.mxu0
      %1232 = vmatpush.bf16.msra.mxu0 %v1149
      %1233 = vmatpush.bf16.msra.mxu0 %v1148
      %1234 = vmatpush.bf16.msra.mxu0 %v1147
      %1235 = vmatpush.bf16.msra.mxu0 %v1146
      %1236 = vmatpush.bf16.msra.mxu0 %v1145
      %1237 = vmatpush.bf16.msra.mxu0 %v1144
      %1238 = vmatpush.bf16.msra.mxu0 %v1143
      %1239 = vmatpush.bf16.msra.mxu0 %v1142
      %1240 = vmatmul.bf16.gmra.mxu0 %v974
      %v1241 = vpop.f32.mrf.mxu0
      %v1242 = vadd.f32 %v1213, %v1241
      %v1243 = vpop.f32.mrf.mxu0
      %v1244 = vadd.f32 %v1215, %v1243
      %1245 = vmatmul.bf16.gmra.mxu0 %v975
      %v1246 = vpop.f32.mrf.mxu0
      %v1247 = vadd.f32 %v1218, %v1246
      %v1248 = vpop.f32.mrf.mxu0
      %v1249 = vadd.f32 %v1220, %v1248
      %1250 = vmatmul.bf16.gmra.mxu0 %v976
      %v1251 = vpop.f32.mrf.mxu0
      %v1252 = vadd.f32 %v1223, %v1251
      %v1253 = vpop.f32.mrf.mxu0
      %v1254 = vadd.f32 %v1225, %v1253
      %1255 = vmatmul.bf16.gmra.mxu0 %v977
      %v1256 = vpop.f32.mrf.mxu0
      %v1257 = vadd.f32 %v1228, %v1256
      %v1258 = vpop.f32.mrf.mxu0
      %v1259 = vadd.f32 %v1230, %v1258
      %1260 = vdwg.mxu0
      %v1309 = vunpack.c.l.b16 %v694
      %v1310 = vunpack.c.l.b16 %v695
      %v1311 = vunpack.c.l.b16 %v696
      %v1312 = vunpack.c.l.b16 %v697
      %v1313 = vunpack.c.l.b16 %v698
      %v1314 = vunpack.c.l.b16 %v699
      %v1315 = vunpack.c.l.b16 %v700
      %v1316 = vunpack.c.l.b16 %v701
      %v1317 = vunpack.c.l.b16 %v702
      %v1318 = vunpack.c.l.b16 %v703
      %v1319 = vunpack.c.l.b16 %v704
      %v1320 = vunpack.c.l.b16 %v705
      %v1321 = vunpack.c.l.b16 %v706
      %v1322 = vunpack.c.l.b16 %v707
      %v1323 = vunpack.c.l.b16 %v708
      %v1324 = vunpack.c.l.b16 %v709
      %v1325 = vunpack.c.l.b16 %v710
      %v1326 = vunpack.c.l.b16 %v711
      %v1327 = vunpack.c.l.b16 %v712
      %v1328 = vunpack.c.l.b16 %v713
      %v1329 = vunpack.c.l.b16 %v714
      %v1330 = vunpack.c.l.b16 %v715
      %v1331 = vunpack.c.l.b16 %v716
      %v1332 = vunpack.c.l.b16 %v717
      %v1333 = vunpack.c.l.b16 %v718
      %v1334 = vunpack.c.l.b16 %v719
      %v1335 = vunpack.c.l.b16 %v720
      %v1336 = vunpack.c.l.b16 %v721
      %v1337 = vunpack.c.l.b16 %v722
      %v1338 = vunpack.c.l.b16 %v723
      %v1339 = vunpack.c.l.b16 %v724
      %v1340 = vunpack.c.l.b16 %v725
      %v1341 = vunpack.c.l.b16 %v726
      %v1342 = vunpack.c.l.b16 %v727
      %v1343 = vunpack.c.l.b16 %v728
      %v1344 = vunpack.c.l.b16 %v729
      %v1345 = vunpack.c.l.b16 %v730
      %v1346 = vunpack.c.l.b16 %v731
      %v1347 = vunpack.c.l.b16 %v732
      %v1348 = vunpack.c.l.b16 %v733
      %v1349 = vunpack.c.l.b16 %v734
      %v1350 = vunpack.c.l.b16 %v735
      %v1351 = vunpack.c.l.b16 %v736
      %v1352 = vunpack.c.l.b16 %v737
      %v1353 = vunpack.c.l.b16 %v738
      %v1354 = vunpack.c.l.b16 %v739
      %v1355 = vunpack.c.l.b16 %v740
      %v1356 = vunpack.c.l.b16 %v741
      %v1357 = vpack.c.b16 %v1310, %v1309
      %v1358 = vpack.c.b16 %v1312, %v1311
      %v1359 = vpack.c.b16 %v1314, %v1313
      %v1360 = vpack.c.b16 %v1316, %v1315
      %v1361 = vpack.c.b16 %v1318, %v1317
      %v1362 = vpack.c.b16 %v1320, %v1319
      %v1363 = vpack.c.b16 %v1322, %v1321
      %v1364 = vpack.c.b16 %v1324, %v1323
      %v1365 = vpack.c.b16 %v1326, %v1325
      %v1366 = vpack.c.b16 %v1328, %v1327
      %v1367 = vpack.c.b16 %v1330, %v1329
      %v1368 = vpack.c.b16 %v1332, %v1331
      %v1369 = vpack.c.b16 %v1334, %v1333
      %v1370 = vpack.c.b16 %v1336, %v1335
      %v1371 = vpack.c.b16 %v1338, %v1337
      %v1372 = vpack.c.b16 %v1340, %v1339
      %v1373 = vpack.c.b16 %v1342, %v1341
      %v1374 = vpack.c.b16 %v1344, %v1343
      %v1375 = vpack.c.b16 %v1346, %v1345
      %v1376 = vpack.c.b16 %v1348, %v1347
      %v1377 = vpack.c.b16 %v1350, %v1349
      %v1378 = vpack.c.b16 %v1352, %v1351
      %v1379 = vpack.c.b16 %v1354, %v1353
      %v1380 = vpack.c.b16 %v1356, %v1355
      %1405 = vmatpush.bf16.msra.mxu0 %v1364
      %1406 = vmatpush.bf16.msra.mxu0 %v1363
      %1407 = vmatpush.bf16.msra.mxu0 %v1362
      %1408 = vmatpush.bf16.msra.mxu0 %v1361
      %1409 = vmatpush.bf16.msra.mxu0 %v1360
      %1410 = vmatpush.bf16.msra.mxu0 %v1359
      %1411 = vmatpush.bf16.msra.mxu0 %v1358
      %1412 = vmatpush.bf16.msra.mxu0 %v1357
      %1413 = vmatmul.bf16.gmra.mxu0 %v654
      %v1414 = vpop.f32.mrf.mxu0
      %v1415 = vadd.f32 %v1242, %v1414
      %v1416 = vpop.f32.mrf.mxu0
      %v1417 = vadd.f32 %v1244, %v1416
      %1418 = vmatmul.bf16.gmra.mxu0 %v655
      %v1419 = vpop.f32.mrf.mxu0
      %v1420 = vadd.f32 %v1247, %v1419
      %v1421 = vpop.f32.mrf.mxu0
      %v1422 = vadd.f32 %v1249, %v1421
      %1423 = vmatmul.bf16.gmra.mxu0 %v656
      %v1424 = vpop.f32.mrf.mxu0
      %v1425 = vadd.f32 %v1252, %v1424
      %v1426 = vpop.f32.mrf.mxu0
      %v1427 = vadd.f32 %v1254, %v1426
      %1428 = vmatmul.bf16.gmra.mxu0 %v657
      %v1429 = vpop.f32.mrf.mxu0
      %v1430 = vadd.f32 %v1257, %v1429
      %v1431 = vpop.f32.mrf.mxu0
      %v1432 = vadd.f32 %v1259, %v1431
      %1433 = vdwg.mxu0
      %1434 = vmatpush.bf16.msra.mxu0 %v1372
      %1435 = vmatpush.bf16.msra.mxu0 %v1371
      %1436 = vmatpush.bf16.msra.mxu0 %v1370
      %1437 = vmatpush.bf16.msra.mxu0 %v1369
      %1438 = vmatpush.bf16.msra.mxu0 %v1368
      %1439 = vmatpush.bf16.msra.mxu0 %v1367
      %1440 = vmatpush.bf16.msra.mxu0 %v1366
      %1441 = vmatpush.bf16.msra.mxu0 %v1365
      %1442 = vmatmul.bf16.gmra.mxu0 %v670
      %v1443 = vpop.f32.mrf.mxu0
      %v1444 = vadd.f32 %v1415, %v1443
      %v1445 = vpop.f32.mrf.mxu0
      %v1446 = vadd.f32 %v1417, %v1445
      %1447 = vmatmul.bf16.gmra.mxu0 %v671
      %v1448 = vpop.f32.mrf.mxu0
      %v1449 = vadd.f32 %v1420, %v1448
      %v1450 = vpop.f32.mrf.mxu0
      %v1451 = vadd.f32 %v1422, %v1450
      %1452 = vmatmul.bf16.gmra.mxu0 %v672
      %v1453 = vpop.f32.mrf.mxu0
      %v1454 = vadd.f32 %v1425, %v1453
      %v1455 = vpop.f32.mrf.mxu0
      %v1456 = vadd.f32 %v1427, %v1455
      %1457 = vmatmul.bf16.gmra.mxu0 %v673
      %v1458 = vpop.f32.mrf.mxu0
      %v1459 = vadd.f32 %v1430, %v1458
      %v1460 = vpop.f32.mrf.mxu0
      %v1461 = vadd.f32 %v1432, %v1460
      %1462 = vdwg.mxu0
      %1463 = vmatpush.bf16.msra.mxu0 %v1380
      %1464 = vmatpush.bf16.msra.mxu0 %v1379
      %1465 = vmatpush.bf16.msra.mxu0 %v1378
      %1466 = vmatpush.bf16.msra.mxu0 %v1377
      %1467 = vmatpush.bf16.msra.mxu0 %v1376
      %1468 = vmatpush.bf16.msra.mxu0 %v1375
      %1469 = vmatpush.bf16.msra.mxu0 %v1374
      %1470 = vmatpush.bf16.msra.mxu0 %v1373
      %1471 = vmatmul.bf16.gmra.mxu0 %v686
      %v1472 = vpop.f32.mrf.mxu0
      %v1473 = vadd.f32 %v1444, %v1472
      %v1474 = vpop.f32.mrf.mxu0
      %v1475 = vadd.f32 %v1446, %v1474
      %1476 = vmatmul.bf16.gmra.mxu0 %v687
      %v1477 = vpop.f32.mrf.mxu0
      %v1478 = vadd.f32 %v1449, %v1477
      %v1479 = vpop.f32.mrf.mxu0
      %v1480 = vadd.f32 %v1451, %v1479
      %1481 = vmatmul.bf16.gmra.mxu0 %v688
      %v1482 = vpop.f32.mrf.mxu0
      %v1483 = vadd.f32 %v1454, %v1482
      %v1484 = vpop.f32.mrf.mxu0
      %v1485 = vadd.f32 %v1456, %v1484
      %1486 = vmatmul.bf16.gmra.mxu0 %v689
      %v1487 = vpop.f32.mrf.mxu0
      %v1488 = vadd.f32 %v1459, %v1487
      %v1489 = vpop.f32.mrf.mxu0
      %v1490 = vadd.f32 %v1461, %v1489
      %1491 = vdwg.mxu0
      %s1492 = scalar_lea.vmem [#allocation2], 16
      %v1493 = vld [vmem:[%s1492] sm:$0xf]
      %v1494 = vld [vmem:[%s1492 + $0x8] sm:$0xf]
      %v1495 = vld [vmem:[%s1492 + $0x10] sm:$0xf]
      %v1496 = vld [vmem:[%s1492 + $0x18] sm:$0xf]
      %v1497 = vld [vmem:[%s1492 + $0x20] sm:$0xf]
      %v1498 = vld [vmem:[%s1492 + $0x28] sm:$0xf]
      %v1499 = vld [vmem:[%s1492 + $0x30] sm:$0xf]
      %v1500 = vld [vmem:[%s1492 + $0x38] sm:$0xf]
      %v1501 = vld [vmem:[%s1492 + $0x4] sm:$0x1]
      %v1502 = vld [vmem:[%s1492 + $0xc] sm:$0x1]
      %v1503 = vld [vmem:[%s1492 + $0x14] sm:$0x1]
      %v1504 = vld [vmem:[%s1492 + $0x1c] sm:$0x1]
      %v1505 = vld [vmem:[%s1492 + $0x24] sm:$0x1]
      %v1506 = vld [vmem:[%s1492 + $0x2c] sm:$0x1]
      %v1507 = vld [vmem:[%s1492 + $0x34] sm:$0x1]
      %v1508 = vld [vmem:[%s1492 + $0x3c] sm:$0x1]
      %v1510 = vshrl.u32 %v1493, 16
      %v1512 = vrot.slane %v1510, 4
      %v1513 = vshll.u32 %v1493, 16
      %v1515 = vrot.slane %v1513, 5
      %v1516 = vor.u32 %v1512, %v1515
      %v1517 = vrot.slane %v1516, 4
      %v1519 = vshll.u32 %v1501, 16
      %v1521 = vrot.slane %v1519, 5
      %v1522 = vsel %vm466, %v1517, %v1521
      %v1524 = vshrl.u32 %v1494, 16
      %v1526 = vrot.slane %v1524, 4
      %v1527 = vshll.u32 %v1494, 16
      %v1529 = vrot.slane %v1527, 5
      %v1530 = vor.u32 %v1526, %v1529
      %v1531 = vrot.slane %v1530, 4
      %v1533 = vshll.u32 %v1502, 16
      %v1535 = vrot.slane %v1533, 5
      %v1536 = vsel %vm466, %v1531, %v1535
      %v1538 = vshrl.u32 %v1495, 16
      %v1540 = vrot.slane %v1538, 4
      %v1541 = vshll.u32 %v1495, 16
      %v1543 = vrot.slane %v1541, 5
      %v1544 = vor.u32 %v1540, %v1543
      %v1545 = vrot.slane %v1544, 4
      %v1547 = vshll.u32 %v1503, 16
      %v1549 = vrot.slane %v1547, 5
      %v1550 = vsel %vm466, %v1545, %v1549
      %v1552 = vshrl.u32 %v1496, 16
      %v1554 = vrot.slane %v1552, 4
      %v1555 = vshll.u32 %v1496, 16
      %v1557 = vrot.slane %v1555, 5
      %v1558 = vor.u32 %v1554, %v1557
      %v1559 = vrot.slane %v1558, 4
      %v1561 = vshll.u32 %v1504, 16
      %v1563 = vrot.slane %v1561, 5
      %v1564 = vsel %vm466, %v1559, %v1563
      %v1566 = vshrl.u32 %v1497, 16
      %v1568 = vrot.slane %v1566, 4
      %v1569 = vshll.u32 %v1497, 16
      %v1571 = vrot.slane %v1569, 5
      %v1572 = vor.u32 %v1568, %v1571
      %v1573 = vrot.slane %v1572, 4
      %v1575 = vshll.u32 %v1505, 16
      %v1577 = vrot.slane %v1575, 5
      %v1578 = vsel %vm466, %v1573, %v1577
      %v1580 = vshrl.u32 %v1498, 16
      %v1582 = vrot.slane %v1580, 4
      %v1583 = vshll.u32 %v1498, 16
      %v1585 = vrot.slane %v1583, 5
      %v1586 = vor.u32 %v1582, %v1585
      %v1587 = vrot.slane %v1586, 4
      %v1589 = vshll.u32 %v1506, 16
      %v1591 = vrot.slane %v1589, 5
      %v1592 = vsel %vm466, %v1587, %v1591
      %v1594 = vshrl.u32 %v1499, 16
      %v1596 = vrot.slane %v1594, 4
      %v1597 = vshll.u32 %v1499, 16
      %v1599 = vrot.slane %v1597, 5
      %v1600 = vor.u32 %v1596, %v1599
      %v1601 = vrot.slane %v1600, 4
      %v1603 = vshll.u32 %v1507, 16
      %v1605 = vrot.slane %v1603, 5
      %v1606 = vsel %vm466, %v1601, %v1605
      %v1608 = vshrl.u32 %v1500, 16
      %v1610 = vrot.slane %v1608, 4
      %v1611 = vshll.u32 %v1500, 16
      %v1613 = vrot.slane %v1611, 5
      %v1614 = vor.u32 %v1610, %v1613
      %v1615 = vrot.slane %v1614, 4
      %v1617 = vshll.u32 %v1508, 16
      %v1619 = vrot.slane %v1617, 5
      %v1620 = vsel %vm466, %v1615, %v1619
      %v1621 = vld [vmem:[%s1492] sm:$0xe]
      %v1622 = vld [vmem:[%s1492 + $0x8] sm:$0xe]
      %v1623 = vld [vmem:[%s1492 + $0x10] sm:$0xe]
      %v1624 = vld [vmem:[%s1492 + $0x18] sm:$0xe]
      %v1625 = vld [vmem:[%s1492 + $0x20] sm:$0xe]
      %v1626 = vld [vmem:[%s1492 + $0x28] sm:$0xe]
      %v1627 = vld [vmem:[%s1492 + $0x30] sm:$0xe]
      %v1628 = vld [vmem:[%s1492 + $0x38] sm:$0xe]
      %v1645 = vrot.slane %v1621, 5
      %v1646 = vrot.slane %v1645, 4
      %v1647 = vrot.slane %v1501, 5
      %v1648 = vsel %vm605, %v1646, %v1647
      %v1649 = vrot.slane %v1622, 5
      %v1650 = vrot.slane %v1649, 4
      %v1651 = vrot.slane %v1502, 5
      %v1652 = vsel %vm605, %v1650, %v1651
      %v1653 = vrot.slane %v1623, 5
      %v1654 = vrot.slane %v1653, 4
      %v1655 = vrot.slane %v1503, 5
      %v1656 = vsel %vm605, %v1654, %v1655
      %v1657 = vrot.slane %v1624, 5
      %v1658 = vrot.slane %v1657, 4
      %v1659 = vrot.slane %v1504, 5
      %v1660 = vsel %vm605, %v1658, %v1659
      %v1661 = vrot.slane %v1625, 5
      %v1662 = vrot.slane %v1661, 4
      %v1663 = vrot.slane %v1505, 5
      %v1664 = vsel %vm605, %v1662, %v1663
      %v1665 = vrot.slane %v1626, 5
      %v1666 = vrot.slane %v1665, 4
      %v1667 = vrot.slane %v1506, 5
      %v1668 = vsel %vm605, %v1666, %v1667
      %v1669 = vrot.slane %v1627, 5
      %v1670 = vrot.slane %v1669, 4
      %v1671 = vrot.slane %v1507, 5
      %v1672 = vsel %vm605, %v1670, %v1671
      %v1673 = vrot.slane %v1628, 5
      %v1674 = vrot.slane %v1673, 4
      %v1675 = vrot.slane %v1508, 5
      %v1676 = vsel %vm605, %v1674, %v1675
      %v1685 = vunpack.c.l.b16 %v1493
      %v1686 = vunpack.c.l.b16 %v1494
      %v1687 = vunpack.c.l.b16 %v1495
      %v1688 = vunpack.c.l.b16 %v1496
      %v1689 = vunpack.c.l.b16 %v1497
      %v1690 = vunpack.c.l.b16 %v1498
      %v1691 = vunpack.c.l.b16 %v1499
      %v1692 = vunpack.c.l.b16 %v1500
      %v1693 = vpack.c.b16 %v1686, %v1685
      %v1694 = vpack.c.b16 %v1688, %v1687
      %v1695 = vpack.c.b16 %v1690, %v1689
      %v1696 = vpack.c.b16 %v1692, %v1691
      %v1701 = vunpack.c.l.b16 %v1522
      %v1702 = vunpack.c.l.b16 %v1536
      %v1703 = vunpack.c.l.b16 %v1550
      %v1704 = vunpack.c.l.b16 %v1564
      %v1705 = vunpack.c.l.b16 %v1578
      %v1706 = vunpack.c.l.b16 %v1592
      %v1707 = vunpack.c.l.b16 %v1606
      %v1708 = vunpack.c.l.b16 %v1620
      %v1709 = vpack.c.b16 %v1702, %v1701
      %v1710 = vpack.c.b16 %v1704, %v1703
      %v1711 = vpack.c.b16 %v1706, %v1705
      %v1712 = vpack.c.b16 %v1708, %v1707
      %v1717 = vunpack.c.l.b16 %v1648
      %v1718 = vunpack.c.l.b16 %v1652
      %v1719 = vunpack.c.l.b16 %v1656
      %v1720 = vunpack.c.l.b16 %v1660
      %v1721 = vunpack.c.l.b16 %v1664
      %v1722 = vunpack.c.l.b16 %v1668
      %v1723 = vunpack.c.l.b16 %v1672
      %v1724 = vunpack.c.l.b16 %v1676
      %v1725 = vpack.c.b16 %v1718, %v1717
      %v1726 = vpack.c.b16 %v1720, %v1719
      %v1727 = vpack.c.b16 %v1722, %v1721
      %v1728 = vpack.c.b16 %v1724, %v1723
      %v1733 = vld [vmem:[%s1 + $0x180] sm:$0xf]
      %v1734 = vld [vmem:[%s1 + $0x184] sm:$0xf]
      %v1735 = vld [vmem:[%s1 + $0x188] sm:$0xf]
      %v1736 = vld [vmem:[%s1 + $0x18c] sm:$0xf]
      %v1737 = vld [vmem:[%s1 + $0x190] sm:$0xf]
      %v1738 = vld [vmem:[%s1 + $0x194] sm:$0xf]
      %v1739 = vld [vmem:[%s1 + $0x198] sm:$0xf]
      %v1740 = vld [vmem:[%s1 + $0x19c] sm:$0xf]
      %v1741 = vld [vmem:[%s1 + $0x1a0] sm:$0xf]
      %v1742 = vld [vmem:[%s1 + $0x1a4] sm:$0xf]
      %v1743 = vld [vmem:[%s1 + $0x1a8] sm:$0xf]
      %v1744 = vld [vmem:[%s1 + $0x1ac] sm:$0xf]
      %v1745 = vld [vmem:[%s1 + $0x1b0] sm:$0xf]
      %v1746 = vld [vmem:[%s1 + $0x1b4] sm:$0xf]
      %v1747 = vld [vmem:[%s1 + $0x1b8] sm:$0xf]
      %v1748 = vld [vmem:[%s1 + $0x1bc] sm:$0xf]
      %v1749 = vld [vmem:[%s1 + $0x1c0] sm:$0xf]
      %v1750 = vld [vmem:[%s1 + $0x1c4] sm:$0xf]
      %v1751 = vld [vmem:[%s1 + $0x1c8] sm:$0xf]
      %v1752 = vld [vmem:[%s1 + $0x1cc] sm:$0xf]
      %v1753 = vld [vmem:[%s1 + $0x1d0] sm:$0xf]
      %v1754 = vld [vmem:[%s1 + $0x1d4] sm:$0xf]
      %v1755 = vld [vmem:[%s1 + $0x1d8] sm:$0xf]
      %v1756 = vld [vmem:[%s1 + $0x1dc] sm:$0xf]
      %v1757 = vld [vmem:[%s1 + $0x1e0] sm:$0xf]
      %v1758 = vld [vmem:[%s1 + $0x1e4] sm:$0xf]
      %v1759 = vld [vmem:[%s1 + $0x1e8] sm:$0xf]
      %v1760 = vld [vmem:[%s1 + $0x1ec] sm:$0xf]
      %v1761 = vld [vmem:[%s1 + $0x1f0] sm:$0xf]
      %v1762 = vld [vmem:[%s1 + $0x1f4] sm:$0xf]
      %v1763 = vld [vmem:[%s1 + $0x1f8] sm:$0xf]
      %v1764 = vld [vmem:[%s1 + $0x1fc] sm:$0xf]
      %v1765 = vld [vmem:[%s1 + $0x200] sm:$0xf]
      %v1766 = vld [vmem:[%s1 + $0x204] sm:$0xf]
      %v1767 = vld [vmem:[%s1 + $0x208] sm:$0xf]
      %v1768 = vld [vmem:[%s1 + $0x20c] sm:$0xf]
      %v1769 = vld [vmem:[%s1 + $0x210] sm:$0xf]
      %v1770 = vld [vmem:[%s1 + $0x214] sm:$0xf]
      %v1771 = vld [vmem:[%s1 + $0x218] sm:$0xf]
      %v1772 = vld [vmem:[%s1 + $0x21c] sm:$0xf]
      %v1773 = vld [vmem:[%s1 + $0x220] sm:$0xf]
      %v1774 = vld [vmem:[%s1 + $0x224] sm:$0xf]
      %v1775 = vld [vmem:[%s1 + $0x228] sm:$0xf]
      %v1776 = vld [vmem:[%s1 + $0x22c] sm:$0xf]
      %v1777 = vld [vmem:[%s1 + $0x230] sm:$0xf]
      %v1778 = vld [vmem:[%s1 + $0x234] sm:$0xf]
      %v1779 = vld [vmem:[%s1 + $0x238] sm:$0xf]
      %v1780 = vld [vmem:[%s1 + $0x23c] sm:$0xf]
      %v1829 = vunpack.c.l.b16 %v1733
      %v1830 = vunpack.c.l.b16 %v1734
      %v1831 = vunpack.c.l.b16 %v1735
      %v1832 = vunpack.c.l.b16 %v1736
      %v1833 = vunpack.c.l.b16 %v1737
      %v1834 = vunpack.c.l.b16 %v1738
      %v1835 = vunpack.c.l.b16 %v1739
      %v1836 = vunpack.c.l.b16 %v1740
      %v1837 = vunpack.c.l.b16 %v1741
      %v1838 = vunpack.c.l.b16 %v1742
      %v1839 = vunpack.c.l.b16 %v1743
      %v1840 = vunpack.c.l.b16 %v1744
      %v1841 = vunpack.c.l.b16 %v1745
      %v1842 = vunpack.c.l.b16 %v1746
      %v1843 = vunpack.c.l.b16 %v1747
      %v1844 = vunpack.c.l.b16 %v1748
      %v1845 = vunpack.c.l.b16 %v1749
      %v1846 = vunpack.c.l.b16 %v1750
      %v1847 = vunpack.c.l.b16 %v1751
      %v1848 = vunpack.c.l.b16 %v1752
      %v1849 = vunpack.c.l.b16 %v1753
      %v1850 = vunpack.c.l.b16 %v1754
      %v1851 = vunpack.c.l.b16 %v1755
      %v1852 = vunpack.c.l.b16 %v1756
      %v1853 = vunpack.c.l.b16 %v1757
      %v1854 = vunpack.c.l.b16 %v1758
      %v1855 = vunpack.c.l.b16 %v1759
      %v1856 = vunpack.c.l.b16 %v1760
      %v1857 = vunpack.c.l.b16 %v1761
      %v1858 = vunpack.c.l.b16 %v1762
      %v1859 = vunpack.c.l.b16 %v1763
      %v1860 = vunpack.c.l.b16 %v1764
      %v1861 = vunpack.c.l.b16 %v1765
      %v1862 = vunpack.c.l.b16 %v1766
      %v1863 = vunpack.c.l.b16 %v1767
      %v1864 = vunpack.c.l.b16 %v1768
      %v1865 = vunpack.c.l.b16 %v1769
      %v1866 = vunpack.c.l.b16 %v1770
      %v1867 = vunpack.c.l.b16 %v1771
      %v1868 = vunpack.c.l.b16 %v1772
      %v1869 = vunpack.c.l.b16 %v1773
      %v1870 = vunpack.c.l.b16 %v1774
      %v1871 = vunpack.c.l.b16 %v1775
      %v1872 = vunpack.c.l.b16 %v1776
      %v1873 = vunpack.c.l.b16 %v1777
      %v1874 = vunpack.c.l.b16 %v1778
      %v1875 = vunpack.c.l.b16 %v1779
      %v1876 = vunpack.c.l.b16 %v1780
      %v1877 = vpack.c.b16 %v1830, %v1829
      %v1878 = vpack.c.b16 %v1832, %v1831
      %v1879 = vpack.c.b16 %v1834, %v1833
      %v1880 = vpack.c.b16 %v1836, %v1835
      %v1881 = vpack.c.b16 %v1838, %v1837
      %v1882 = vpack.c.b16 %v1840, %v1839
      %v1883 = vpack.c.b16 %v1842, %v1841
      %v1884 = vpack.c.b16 %v1844, %v1843
      %v1885 = vpack.c.b16 %v1846, %v1845
      %v1886 = vpack.c.b16 %v1848, %v1847
      %v1887 = vpack.c.b16 %v1850, %v1849
      %v1888 = vpack.c.b16 %v1852, %v1851
      %v1889 = vpack.c.b16 %v1854, %v1853
      %v1890 = vpack.c.b16 %v1856, %v1855
      %v1891 = vpack.c.b16 %v1858, %v1857
      %v1892 = vpack.c.b16 %v1860, %v1859
      %v1893 = vpack.c.b16 %v1862, %v1861
      %v1894 = vpack.c.b16 %v1864, %v1863
      %v1895 = vpack.c.b16 %v1866, %v1865
      %v1896 = vpack.c.b16 %v1868, %v1867
      %v1897 = vpack.c.b16 %v1870, %v1869
      %v1898 = vpack.c.b16 %v1872, %v1871
      %v1899 = vpack.c.b16 %v1874, %v1873
      %v1900 = vpack.c.b16 %v1876, %v1875
      %1925 = vmatpush.bf16.msra.mxu0 %v1884
      %1926 = vmatpush.bf16.msra.mxu0 %v1883
      %1927 = vmatpush.bf16.msra.mxu0 %v1882
      %1928 = vmatpush.bf16.msra.mxu0 %v1881
      %1929 = vmatpush.bf16.msra.mxu0 %v1880
      %1930 = vmatpush.bf16.msra.mxu0 %v1879
      %1931 = vmatpush.bf16.msra.mxu0 %v1878
      %1932 = vmatpush.bf16.msra.mxu0 %v1877
      %1933 = vmatmul.bf16.gmra.mxu0 %v1693
      %v1934 = vpop.f32.mrf.mxu0
      %v1935 = vadd.f32 0.0, %v1934
      %v1936 = vpop.f32.mrf.mxu0
      %v1937 = vadd.f32 0.0, %v1936
      %1938 = vmatmul.bf16.gmra.mxu0 %v1694
      %v1939 = vpop.f32.mrf.mxu0
      %v1940 = vadd.f32 0.0, %v1939
      %v1941 = vpop.f32.mrf.mxu0
      %v1942 = vadd.f32 0.0, %v1941
      %1943 = vmatmul.bf16.gmra.mxu0 %v1695
      %v1944 = vpop.f32.mrf.mxu0
      %v1945 = vadd.f32 0.0, %v1944
      %v1946 = vpop.f32.mrf.mxu0
      %v1947 = vadd.f32 0.0, %v1946
      %1948 = vmatmul.bf16.gmra.mxu0 %v1696
      %v1949 = vpop.f32.mrf.mxu0
      %v1950 = vadd.f32 0.0, %v1949
      %v1951 = vpop.f32.mrf.mxu0
      %v1952 = vadd.f32 0.0, %v1951
      %1953 = vdwg.mxu0
      %1954 = vmatpush.bf16.msra.mxu0 %v1892
      %1955 = vmatpush.bf16.msra.mxu0 %v1891
      %1956 = vmatpush.bf16.msra.mxu0 %v1890
      %1957 = vmatpush.bf16.msra.mxu0 %v1889
      %1958 = vmatpush.bf16.msra.mxu0 %v1888
      %1959 = vmatpush.bf16.msra.mxu0 %v1887
      %1960 = vmatpush.bf16.msra.mxu0 %v1886
      %1961 = vmatpush.bf16.msra.mxu0 %v1885
      %1962 = vmatmul.bf16.gmra.mxu0 %v1709
      %v1963 = vpop.f32.mrf.mxu0
      %v1964 = vadd.f32 %v1935, %v1963
      %v1965 = vpop.f32.mrf.mxu0
      %v1966 = vadd.f32 %v1937, %v1965
      %1967 = vmatmul.bf16.gmra.mxu0 %v1710
      %v1968 = vpop.f32.mrf.mxu0
      %v1969 = vadd.f32 %v1940, %v1968
      %v1970 = vpop.f32.mrf.mxu0
      %v1971 = vadd.f32 %v1942, %v1970
      %1972 = vmatmul.bf16.gmra.mxu0 %v1711
      %v1973 = vpop.f32.mrf.mxu0
      %v1974 = vadd.f32 %v1945, %v1973
      %v1975 = vpop.f32.mrf.mxu0
      %v1976 = vadd.f32 %v1947, %v1975
      %1977 = vmatmul.bf16.gmra.mxu0 %v1712
      %v1978 = vpop.f32.mrf.mxu0
      %v1979 = vadd.f32 %v1950, %v1978
      %v1980 = vpop.f32.mrf.mxu0
      %v1981 = vadd.f32 %v1952, %v1980
      %1982 = vdwg.mxu0
      %1983 = vmatpush.bf16.msra.mxu0 %v1900
      %1984 = vmatpush.bf16.msra.mxu0 %v1899
      %1985 = vmatpush.bf16.msra.mxu0 %v1898
      %1986 = vmatpush.bf16.msra.mxu0 %v1897
      %1987 = vmatpush.bf16.msra.mxu0 %v1896
      %1988 = vmatpush.bf16.msra.mxu0 %v1895
      %1989 = vmatpush.bf16.msra.mxu0 %v1894
      %1990 = vmatpush.bf16.msra.mxu0 %v1893
      %1991 = vmatmul.bf16.gmra.mxu0 %v1725
      %v1992 = vpop.f32.mrf.mxu0
      %v1993 = vadd.f32 %v1964, %v1992
      %v1994 = vpop.f32.mrf.mxu0
      %v1995 = vadd.f32 %v1966, %v1994
      %1996 = vmatmul.bf16.gmra.mxu0 %v1726
      %v1997 = vpop.f32.mrf.mxu0
      %v1998 = vadd.f32 %v1969, %v1997
      %v1999 = vpop.f32.mrf.mxu0
      %v2000 = vadd.f32 %v1971, %v1999
      %2001 = vmatmul.bf16.gmra.mxu0 %v1727
      %v2002 = vpop.f32.mrf.mxu0
      %v2003 = vadd.f32 %v1974, %v2002
      %v2004 = vpop.f32.mrf.mxu0
      %v2005 = vadd.f32 %v1976, %v2004
      %2006 = vmatmul.bf16.gmra.mxu0 %v1728
      %v2007 = vpop.f32.mrf.mxu0
      %v2008 = vadd.f32 %v1979, %v2007
      %v2009 = vpop.f32.mrf.mxu0
      %v2010 = vadd.f32 %v1981, %v2009
      %2011 = vdwg.mxu0
      %v2012 = vadd.f32 %v1473, %v1993
      %v2013 = vadd.f32 %v1475, %v1995
      %v2014 = vadd.f32 %v1478, %v1998
      %v2015 = vadd.f32 %v1480, %v2000
      %v2016 = vadd.f32 %v1483, %v2003
      %v2017 = vadd.f32 %v1485, %v2005
      %v2018 = vadd.f32 %v1488, %v2008
      %v2019 = vadd.f32 %v1490, %v2010
      %v2020 = vpack.c.bf16 %v2012, %v2012
      %v2021 = vpack.c.bf16 %v2013, %v2013
      %v2022 = vpack.c.bf16 %v2014, %v2014
      %v2023 = vpack.c.bf16 %v2015, %v2015
      %v2024 = vpack.c.bf16 %v2016, %v2016
      %v2025 = vpack.c.bf16 %v2017, %v2017
      %v2026 = vpack.c.bf16 %v2018, %v2018
      %v2027 = vpack.c.bf16 %v2019, %v2019
      %2028 = vst [vmem:[%s177] sm:$0xf] %v2020
      %2029 = vst [vmem:[%s177 + $0x4] sm:$0xf] %v2021
      %2030 = vst [vmem:[%s177 + $0x8] sm:$0xf] %v2022
      %2031 = vst [vmem:[%s177 + $0xc] sm:$0xf] %v2023
      %2032 = vst [vmem:[%s177 + $0x10] sm:$0xf] %v2024
      %2033 = vst [vmem:[%s177 + $0x14] sm:$0xf] %v2025
      %2034 = vst [vmem:[%s177 + $0x18] sm:$0xf] %v2026
      %2035 = vst [vmem:[%s177 + $0x1c] sm:$0xf] %v2027
      %v2036 = vrot.slane %v2012, 4
      %v2037 = vadd.f32 %v2012, %v2036
      %v2038 = vrot.slane %v2037, 2
      %v2039 = vadd.f32 %v2037, %v2038
      %v2040 = vrot.slane %v2039, 1
      %v2041 = vadd.f32 %v2039, %v2040
      %v2042 = vadd.f32 %v2041, 0.0
      %v2043 = vmul.f32 %v2012, %v2012
      %v2044 = vrot.slane %v2043, 4
      %v2045 = vadd.f32 %v2043, %v2044
      %v2046 = vrot.slane %v2045, 2
      %v2047 = vadd.f32 %v2045, %v2046
      %v2048 = vrot.slane %v2047, 1
      %v2049 = vadd.f32 %v2047, %v2048
      %v2050 = vadd.f32 %v2049, 0.0
      %v2051 = vrot.slane %v2013, 4
      %v2052 = vadd.f32 %v2013, %v2051
      %v2053 = vrot.slane %v2052, 2
      %v2054 = vadd.f32 %v2052, %v2053
      %v2055 = vrot.slane %v2054, 1
      %v2056 = vadd.f32 %v2054, %v2055
      %v2057 = vadd.f32 %v2042, %v2056
      %v2058 = vmul.f32 %v2013, %v2013
      %v2059 = vrot.slane %v2058, 4
      %v2060 = vadd.f32 %v2058, %v2059
      %v2061 = vrot.slane %v2060, 2
      %v2062 = vadd.f32 %v2060, %v2061
      %v2063 = vrot.slane %v2062, 1
      %v2064 = vadd.f32 %v2062, %v2063
      %v2065 = vadd.f32 %v2050, %v2064
      %v2066 = vrot.slane %v2014, 4
      %v2067 = vadd.f32 %v2014, %v2066
      %v2068 = vrot.slane %v2067, 2
      %v2069 = vadd.f32 %v2067, %v2068
      %v2070 = vrot.slane %v2069, 1
      %v2071 = vadd.f32 %v2069, %v2070
      %v2072 = vadd.f32 %v2057, %v2071
      %v2073 = vmul.f32 %v2014, %v2014
      %v2074 = vrot.slane %v2073, 4
      %v2075 = vadd.f32 %v2073, %v2074
      %v2076 = vrot.slane %v2075, 2
      %v2077 = vadd.f32 %v2075, %v2076
      %v2078 = vrot.slane %v2077, 1
      %v2079 = vadd.f32 %v2077, %v2078
      %v2080 = vadd.f32 %v2065, %v2079
      %v2081 = vrot.slane %v2015, 4
      %v2082 = vadd.f32 %v2015, %v2081
      %v2083 = vrot.slane %v2082, 2
      %v2084 = vadd.f32 %v2082, %v2083
      %v2085 = vrot.slane %v2084, 1
      %v2086 = vadd.f32 %v2084, %v2085
      %v2087 = vadd.f32 %v2072, %v2086
      %v2088 = vmul.f32 %v2015, %v2015
      %v2089 = vrot.slane %v2088, 4
      %v2090 = vadd.f32 %v2088, %v2089
      %v2091 = vrot.slane %v2090, 2
      %v2092 = vadd.f32 %v2090, %v2091
      %v2093 = vrot.slane %v2092, 1
      %v2094 = vadd.f32 %v2092, %v2093
      %v2095 = vadd.f32 %v2080, %v2094
      %v2096 = vrot.slane %v2016, 4
      %v2097 = vadd.f32 %v2016, %v2096
      %v2098 = vrot.slane %v2097, 2
      %v2099 = vadd.f32 %v2097, %v2098
      %v2100 = vrot.slane %v2099, 1
      %v2101 = vadd.f32 %v2099, %v2100
      %v2102 = vadd.f32 %v2087, %v2101
      %v2103 = vmul.f32 %v2016, %v2016
      %v2104 = vrot.slane %v2103, 4
      %v2105 = vadd.f32 %v2103, %v2104
      %v2106 = vrot.slane %v2105, 2
      %v2107 = vadd.f32 %v2105, %v2106
      %v2108 = vrot.slane %v2107, 1
      %v2109 = vadd.f32 %v2107, %v2108
      %v2110 = vadd.f32 %v2095, %v2109
      %v2111 = vrot.slane %v2017, 4
      %v2112 = vadd.f32 %v2017, %v2111
      %v2113 = vrot.slane %v2112, 2
      %v2114 = vadd.f32 %v2112, %v2113
      %v2115 = vrot.slane %v2114, 1
      %v2116 = vadd.f32 %v2114, %v2115
      %v2117 = vadd.f32 %v2102, %v2116
      %v2118 = vmul.f32 %v2017, %v2017
      %v2119 = vrot.slane %v2118, 4
      %v2120 = vadd.f32 %v2118, %v2119
      %v2121 = vrot.slane %v2120, 2
      %v2122 = vadd.f32 %v2120, %v2121
      %v2123 = vrot.slane %v2122, 1
      %v2124 = vadd.f32 %v2122, %v2123
      %v2125 = vadd.f32 %v2110, %v2124
      %v2126 = vrot.slane %v2018, 4
      %v2127 = vadd.f32 %v2018, %v2126
      %v2128 = vrot.slane %v2127, 2
      %v2129 = vadd.f32 %v2127, %v2128
      %v2130 = vrot.slane %v2129, 1
      %v2131 = vadd.f32 %v2129, %v2130
      %v2132 = vadd.f32 %v2117, %v2131
      %v2133 = vmul.f32 %v2018, %v2018
      %v2134 = vrot.slane %v2133, 4
      %v2135 = vadd.f32 %v2133, %v2134
      %v2136 = vrot.slane %v2135, 2
      %v2137 = vadd.f32 %v2135, %v2136
      %v2138 = vrot.slane %v2137, 1
      %v2139 = vadd.f32 %v2137, %v2138
      %v2140 = vadd.f32 %v2125, %v2139
      %v2141 = vrot.slane %v2019, 4
      %v2142 = vadd.f32 %v2019, %v2141
      %v2143 = vrot.slane %v2142, 2
      %v2144 = vadd.f32 %v2142, %v2143
      %v2145 = vrot.slane %v2144, 1
      %v2146 = vadd.f32 %v2144, %v2145
      %v2147 = vadd.f32 %v2132, %v2146
      %v2148 = vmul.f32 %v2019, %v2019
      %v2149 = vrot.slane %v2148, 4
      %v2150 = vadd.f32 %v2148, %v2149
      %v2151 = vrot.slane %v2150, 2
      %v2152 = vadd.f32 %v2150, %v2151
      %v2153 = vrot.slane %v2152, 1
      %v2154 = vadd.f32 %v2152, %v2153
      %v2155 = vadd.f32 %v2140, %v2154
      %2156 = vst [vmem:[%s181] sm:$0x1] %v2147
      %2157 = vst [vmem:[%s181 + $0x1] sm:$0x1] %v2155
      %p2158 = scmp.lt.s32.totalorder %s15, 1
      %s2159 = scalar_select %p2158, %s15, 1
      %s2160 = smul.addr %s2159, 8
      %s2161 = smul.addr %s2160, 4
      %s2162 = scalar_lea.vmem %s2, %s2161
      %p2163 = scmp.lt.s32.totalorder %s15, 1
      %s2164 = scalar_select %p2163, %s15, 1
      %s2165 = smul.addr %s2164, 2
      %s2166 = scalar_lea.vmem %s3, %s2165
      // Predicated region
      $region29: #{down_forward.3} parent=27 // pred_check
        %p2167 = pneg %p80
      $region30: #{down_forward.3} parent=27 // pred_check_branch
        %2169 = sbr.rel (%p2167) target = $region32
      $region31: #{down_forward.3} parent=27 // pred_region
        _
      $region32: #{down_forward.3} parent=27 // pred_fallthru
        _
      // Predicated region
      $region33: #{down_forward.3} parent=27 // pred_check
        %p2170 = pneg %p106
      $region34: #{down_forward.3} parent=27 // pred_check_branch
        %2172 = sbr.rel (%p2170) target = $region36
      $region35: #{down_forward.3} parent=27 // pred_region
        _
      $region36: #{down_forward.3} parent=27 // pred_fallthru
        _
    $region28: #{down_forward.3} parent=5 // pred_fallthru
      _
    %p2173 = scmp.le.s32.totalorder 2, %s10
    // Predicated region
    $region37: #{down_forward.3} parent=5 // pred_check
      %p2174 = pneg %p2173
    $region38: #{down_forward.3} parent=5 // pred_check_branch
      %2176 = sbr.rel (%p2174) target = $region40
    $region39: #{down_forward.3} parent=5 // pred_region
      %s2177 = ssub.s32 %s10, 2
      // Predicated region
      $region41: #{down_forward.3} parent=39 // pred_check
        %p2178 = pneg %p86
      $region42: #{down_forward.3} parent=39 // pred_check_branch
        %2180 = sbr.rel (%p2178) target = $region44
      $region43: #{down_forward.3} parent=39 // pred_region
        %p2181 = scmp.lt.s32.totalorder %s16, 1
        %s2182 = scalar_select %p2181, %s16, 1
        %s2183 = smul.addr %s2182, 8
        %s2184 = smul.addr %s2183, 4
        %s2185 = scalar_lea.vmem %s2, %s2184
      $region44: #{down_forward.3} parent=39 // pred_fallthru
        _
      // Predicated region
      $region45: #{down_forward.3} parent=39 // pred_check
        %p2186 = pneg %p112
      $region46: #{down_forward.3} parent=39 // pred_check_branch
        %2188 = sbr.rel (%p2186) target = $region48
      $region47: #{down_forward.3} parent=39 // pred_region
        %p2189 = scmp.lt.s32.totalorder %s16, 1
        %s2190 = scalar_select %p2189, %s16, 1
        %s2191 = smul.addr %s2190, 2
        %s2192 = scalar_lea.vmem %s3, %s2191
      $region48: #{down_forward.3} parent=39 // pred_fallthru
        _
    $region40: #{down_forward.3} parent=5 // pred_fallthru
      _
  $region6: #{down_forward.3} parent=0 // loop_footer
    %s14 = sadd.s32 1, %s10
  $region7: #{down_forward.3} parent=0 // loop_footer_branch
    %9 = sbr.rel target = $region3
  $region8: #{down_forward.3} parent=0 // loop_exit
    _

// kernel: down_forward.4
$region0: #{down_forward.4}
  #allocation0 [shape = 'u32[]', space=smem, size = 0x4, offset = 0x4, fixed_abs, tag = 'smem constant byte address 0x4 - core index']
  #allocation1 [shape = 'u32[72,128]{1,0:T(1,128)}', space=vmem, size = 0x9000, scoped, tag = 'internal scratch']
  #allocation2 [shape = 'bf16[10,10,128]{2,1,0:T(8,128)(2,1)}', space=vmem, size = 0xa000, scoped, tag = 'scratch operand']
  %s0 = inlined_call_operand.vmem [shape: bf16[2,8,8,128], index: 0, kind: input, shape index: {}]
  %s1 = inlined_call_operand.vmem [shape: f32[1,128], index: 1, kind: input, shape index: {}]
  %s2 = inlined_call_operand.vmem [shape: f32[1,128], index: 2, kind: input, shape index: {}]
  %s3 = inlined_call_operand.vmem [shape: bf16[1152,128], index: 3, kind: input, shape index: {}]
  %s4 = inlined_call_operand.vmem [shape: bf16[2,8,8,128], index: 4, kind: output, shape index: {0}]
  %s5 = inlined_call_operand.vmem [shape: f32[2,2,128], index: 5, kind: output, shape index: {1}]
  %6 = xla_tuple %s4, %s5
  %s7 = sld [smem:[#allocation0]]
  $region57: #{down_forward.4} parent=0
    _
  %s9 = ssub.s32 1, %s7
  %s10 = scalar_select 0, %s9, %s7
  loop: start=0, step=1, limit=4
  $region2: #{down_forward.4} parent=0 // loop_pre_header
    _
  $region3: #{down_forward.4} parent=0 // loop_header
    %s12 = sphi 0, %s16
    %p13 = scmp.ge.s32.totalorder %s12, 4
    %s22 = sphi 0, %s24
    %s25 = sphi 0, %s22
    %s26 = sphi 0, %s25
    %s42 = sphi 0, %s26
    %s46 = sphi 0, %s46
    %s48 = sphi 0, %s46
    %s49 = sphi 0, %s48
    %s63 = sphi 0, %s49
    %s67 = sphi 0, %s67
    %s69 = sphi 0, %s67
    %s70 = sphi 0, %s69
    %s84 = sphi 0, %s70
    %s88 = sphi 0, %s88
    %s90 = sphi 0, %s88
    %s91 = sphi 0, %s90
    %s105 = sphi 0, %s91
    %s111 = sphi 0, %s113
    %s114 = sphi 0, %s111
    %s115 = sphi 0, %s114
    %s131 = sphi 0, %s115
    %s137 = sphi 0, %s139
    %s140 = sphi 0, %s137
    %s141 = sphi 0, %s140
    %s157 = sphi 0, %s141
  $region4: #{down_forward.4} parent=0 // loop_header_branch
    %15 = sbr.rel (%p13) target = $region8
  $region5: #{down_forward.4} parent=0 // loop_body
    %s17 = ssub.s32 %s12, 1
    %s18 = ssub.s32 %s12, 2
    %s19 = sadd.s32 %s12, 1
    %s20 = ssub.s32 %s12, %s19
    %p21 = scmp.eq.s32.totalorder %s20, 0
    %s23 = sadd.s32 %s22, 1
    %s24 = scalar_select %p21, %s22, %s23
    %p27 = pneg %p21
    %p28 = scmp.eq.s32.totalorder %s12, 1
    %p29 = por %p27, %p28
    %p30 = scmp.ne.s32.totalorder %s22, %s25
    %p31 = scmp.eq.s32.totalorder %s12, 0
    %p32 = por %p30, %p31
    %p33 = scmp.ne.s32.totalorder %s22, %s25
    %p34 = scmp.eq.s32.totalorder %s17, 1
    %p35 = por %p33, %p34
    %p36 = scmp.ne.s32.totalorder %s25, %s26
    %p37 = scmp.eq.s32.totalorder %s17, 0
    %p38 = por %p36, %p37
    %p39 = scmp.ne.s32.totalorder %s25, %s26
    %p40 = scmp.eq.s32.totalorder %s18, 1
    %p41 = por %p39, %p40
    %p43 = scmp.ne.s32.totalorder %s26, %s42
    %p44 = scmp.eq.s32.totalorder %s18, 0
    %p45 = por %p43, %p44
    %s47 = sadd.s32 %s46, 1
    %p50 = scmp.eq.s32.totalorder %s12, 1
    %p51 = scmp.ne.s32.totalorder %s46, %s48
    %p52 = scmp.eq.s32.totalorder %s12, 0
    %p53 = por %p51, %p52
    %p54 = scmp.ne.s32.totalorder %s46, %s48
    %p55 = scmp.eq.s32.totalorder %s17, 1
    %p56 = por %p54, %p55
    %p57 = scmp.ne.s32.totalorder %s48, %s49
    %p58 = scmp.eq.s32.totalorder %s17, 0
    %p59 = por %p57, %p58
    %p60 = scmp.ne.s32.totalorder %s48, %s49
    %p61 = scmp.eq.s32.totalorder %s18, 1
    %p62 = por %p60, %p61
    %p64 = scmp.ne.s32.totalorder %s49, %s63
    %p65 = scmp.eq.s32.totalorder %s18, 0
    %p66 = por %p64, %p65
    %s68 = sadd.s32 %s67, 1
    %p71 = scmp.eq.s32.totalorder %s12, 1
    %p72 = scmp.ne.s32.totalorder %s67, %s69
    %p73 = scmp.eq.s32.totalorder %s12, 0
    %p74 = por %p72, %p73
    %p75 = scmp.ne.s32.totalorder %s67, %s69
    %p76 = scmp.eq.s32.totalorder %s17, 1
    %p77 = por %p75, %p76
    %p78 = scmp.ne.s32.totalorder %s69, %s70
    %p79 = scmp.eq.s32.totalorder %s17, 0
    %p80 = por %p78, %p79
    %p81 = scmp.ne.s32.totalorder %s69, %s70
    %p82 = scmp.eq.s32.totalorder %s18, 1
    %p83 = por %p81, %p82
    %p85 = scmp.ne.s32.totalorder %s70, %s84
    %p86 = scmp.eq.s32.totalorder %s18, 0
    %p87 = por %p85, %p86
    %s89 = sadd.s32 %s88, 1
    %p92 = scmp.eq.s32.totalorder %s12, 1
    %p93 = scmp.ne.s32.totalorder %s88, %s90
    %p94 = scmp.eq.s32.totalorder %s12, 0
    %p95 = por %p93, %p94
    %p96 = scmp.ne.s32.totalorder %s88, %s90
    %p97 = scmp.eq.s32.totalorder %s17, 1
    %p98 = por %p96, %p97
    %p99 = scmp.ne.s32.totalorder %s90, %s91
    %p100 = scmp.eq.s32.totalorder %s17, 0
    %p101 = por %p99, %p100
    %p102 = scmp.ne.s32.totalorder %s90, %s91
    %p103 = scmp.eq.s32.totalorder %s18, 1
    %p104 = por %p102, %p103
    %p106 = scmp.ne.s32.totalorder %s91, %s105
    %p107 = scmp.eq.s32.totalorder %s18, 0
    %p108 = por %p106, %p107
    %s109 = ssub.s32 %s12, %s19
    %p110 = scmp.eq.s32.totalorder %s109, 0
    %s112 = sadd.s32 %s111, 1
    %s113 = scalar_select %p110, %s111, %s112
    %p116 = pneg %p110
    %p117 = scmp.eq.s32.totalorder %s12, 1
    %p118 = por %p116, %p117
    %p119 = scmp.ne.s32.totalorder %s111, %s114
    %p120 = scmp.eq.s32.totalorder %s12, 0
    %p121 = por %p119, %p120
    %p122 = scmp.ne.s32.totalorder %s111, %s114
    %p123 = scmp.eq.s32.totalorder %s17, 1
    %p124 = por %p122, %p123
    %p125 = scmp.ne.s32.totalorder %s114, %s115
    %p126 = scmp.eq.s32.totalorder %s17, 0
    %p127 = por %p125, %p126
    %p128 = scmp.ne.s32.totalorder %s114, %s115
    %p129 = scmp.eq.s32.totalorder %s18, 1
    %p130 = por %p128, %p129
    %p132 = scmp.ne.s32.totalorder %s115, %s131
    %p133 = scmp.eq.s32.totalorder %s18, 0
    %p134 = por %p132, %p133
    %s135 = ssub.s32 %s12, %s19
    %p136 = scmp.eq.s32.totalorder %s135, 0
    %s138 = sadd.s32 %s137, 1
    %s139 = scalar_select %p136, %s137, %s138
    %p142 = pneg %p136
    %p143 = scmp.eq.s32.totalorder %s12, 1
    %p144 = por %p142, %p143
    %p145 = scmp.ne.s32.totalorder %s137, %s140
    %p146 = scmp.eq.s32.totalorder %s12, 0
    %p147 = por %p145, %p146
    %p148 = scmp.ne.s32.totalorder %s137, %s140
    %p149 = scmp.eq.s32.totalorder %s17, 1
    %p150 = por %p148, %p149
    %p151 = scmp.ne.s32.totalorder %s140, %s141
    %p152 = scmp.eq.s32.totalorder %s17, 0
    %p153 = por %p151, %p152
    %p154 = scmp.ne.s32.totalorder %s140, %s141
    %p155 = scmp.eq.s32.totalorder %s18, 1
    %p156 = por %p154, %p155
    %p158 = scmp.ne.s32.totalorder %s141, %s157
    %p159 = scmp.eq.s32.totalorder %s18, 0
    %p160 = por %p158, %p159
    %p161 = scmp.le.s32.totalorder 1, %s12
    %p162 = scmp.lt.s32.totalorder %s12, 3
    %p163 = pnand %p161, %p162
    %p164 = pneg %p163
    // Predicated region
    $region9: #{down_forward.4} parent=5 // pred_check
      _
    $region10: #{down_forward.4} parent=5 // pred_check_branch
      %166 = sbr.rel (%p163) target = $region12
    $region11: #{down_forward.4} parent=5 // pred_region
      %s167 = ssub.s32 %s12, 1
      // Predicated region
      $region13: #{down_forward.4} parent=11 // pred_check
        %p168 = pneg %p59
      $region14: #{down_forward.4} parent=11 // pred_check_branch
        %170 = sbr.rel (%p168) target = $region16
      $region15: #{down_forward.4} parent=11 // pred_region
        _
      $region16: #{down_forward.4} parent=11 // pred_fallthru
        _
      // Predicated region
      $region17: #{down_forward.4} parent=11 // pred_check
        %p171 = pneg %p80
      $region18: #{down_forward.4} parent=11 // pred_check_branch
        %173 = sbr.rel (%p171) target = $region20
      $region19: #{down_forward.4} parent=11 // pred_region
        _
      $region20: #{down_forward.4} parent=11 // pred_fallthru
        _
      // Predicated region
      $region21: #{down_forward.4} parent=11 // pred_check
        %p174 = pneg %p101
      $region22: #{down_forward.4} parent=11 // pred_check_branch
        %176 = sbr.rel (%p174) target = $region24
      $region23: #{down_forward.4} parent=11 // pred_region
        _
      $region24: #{down_forward.4} parent=11 // pred_fallthru
        _
    $region12: #{down_forward.4} parent=5 // pred_fallthru
      _
    %p177 = scmp.lt.s32.totalorder %s12, 2
    // Predicated region
    $region25: #{down_forward.4} parent=5 // pred_check
      %p178 = pneg %p177
    $region26: #{down_forward.4} parent=5 // pred_check_branch
      %180 = sbr.rel (%p178) target = $region28
    $region27: #{down_forward.4} parent=5 // pred_region
      // Predicated region
      $region29: #{down_forward.4} parent=27 // pred_check
        %p181 = pneg %p32
      $region30: #{down_forward.4} parent=27 // pred_check_branch
        %183 = sbr.rel (%p181) target = $region32
      $region31: #{down_forward.4} parent=27 // pred_region
        %p184 = scmp.lt.s32.totalorder %s12, 1
        %s185 = scalar_select %p184, %s12, 1
        %s186 = smul.addr %s185, 8
        %s187 = smul.addr %s186, 4
        %s188 = scalar_lea.vmem %s0, %s187
      $region32: #{down_forward.4} parent=27 // pred_fallthru
        _
    $region28: #{down_forward.4} parent=5 // pred_fallthru
      _
    %p189 = scmp.le.s32.totalorder 1, %s12
    %p190 = scmp.lt.s32.totalorder %s12, 3
    %p191 = pnand %p189, %p190
    %p192 = pneg %p191
    // Predicated region
    $region33: #{down_forward.4} parent=5 // pred_check
      _
    $region34: #{down_forward.4} parent=5 // pred_check_branch
      %194 = sbr.rel (%p191) target = $region36
    $region35: #{down_forward.4} parent=5 // pred_region
      %s195 = ssub.s32 %s12, 1
      %p196 = scmp.lt.s32.totalorder %s17, 1
      %s197 = scalar_select %p196, %s17, 1
      %s198 = smul.addr %s197, 8
      %s199 = smul.addr %s198, 4
      %s200 = scalar_lea.vmem %s0, %s199
      %p201 = pneg %p38
      %p202 = pneg %p35
      %p203 = pneg %p59
      %p204 = pneg %p56
      %p205 = pneg %p80
      %p206 = pneg %p77
      %p207 = pneg %p101
      %p208 = pneg %p98
      %p209 = pneg %p127
      %p210 = pneg %p124
      %p211 = scmp.lt.s32.totalorder %s17, 1
      %s212 = scalar_select %p211, %s17, 1
      %s213 = smul.addr %s212, 8
      %s214 = smul.addr %s213, 4
      %s215 = scalar_lea.vmem %s4, %s214
      %p216 = pneg %p153
      %p217 = pneg %p150
      %p218 = scmp.lt.s32.totalorder %s17, 1
      %s219 = scalar_select %p218, %s17, 1
      %s220 = smul.addr %s219, 2
      %s221 = scalar_lea.vmem %s5, %s220
      %p222 = scmp.lt.s32.totalorder %s17, 1
      %s223 = scalar_select %p222, %s17, 1
      %s224 = smul.addr %s223, 8
      %s225 = smul.addr %s224, 4
      %s226 = scalar_lea.vmem %s0, %s225
      %p227 = scmp.lt.s32.totalorder %s17, 1
      %s228 = scalar_select %p227, %s17, 1
      %s229 = smul.addr %s228, 8
      %s230 = smul.addr %s229, 4
      %s231 = scalar_lea.vmem %s4, %s230
      %p232 = scmp.lt.s32.totalorder %s17, 1
      %s233 = scalar_select %p232, %s17, 1
      %s234 = smul.addr %s233, 2
      %s235 = scalar_lea.vmem %s5, %s234
      %v237 = vld [vmem:[%s226] sm:$0xf]
      %v238 = vld [vmem:[%s226 + $0x4] sm:$0xf]
      %v239 = vld [vmem:[%s226 + $0x8] sm:$0xf]
      %v240 = vld [vmem:[%s226 + $0xc] sm:$0xf]
      %v241 = vld [vmem:[%s226 + $0x10] sm:$0xf]
      %v242 = vld [vmem:[%s226 + $0x14] sm:$0xf]
      %v243 = vld [vmem:[%s226 + $0x18] sm:$0xf]
      %v244 = vld [vmem:[%s226 + $0x1c] sm:$0xf]
      %v245 = vunpack.c.l.bf16 %v237
      %v246 = vunpack.c.l.bf16 %v238
      %v247 = vunpack.c.l.bf16 %v239
      %v248 = vunpack.c.l.bf16 %v240
      %v249 = vunpack.c.l.bf16 %v241
      %v250 = vunpack.c.l.bf16 %v242
      %v251 = vunpack.c.l.bf16 %v243
      %v252 = vunpack.c.l.bf16 %v244
      %v253 = vld [vmem:[%s1] sm:$0x1]
      %v255 = vperm.slane %v253, 0
      %v257 = vmul.f32 %v245, %v255
      %v258 = vmul.f32 %v246, %v255
      %v259 = vmul.f32 %v247, %v255
      %v260 = vmul.f32 %v248, %v255
      %v261 = vmul.f32 %v249, %v255
      %v262 = vmul.f32 %v250, %v255
      %v263 = vmul.f32 %v251, %v255
      %v264 = vmul.f32 %v252, %v255
      %v265 = vld [vmem:[%s2] sm:$0x1]
      %v267 = vperm.slane %v265, 0
      %v269 = vadd.f32 %v257, %v267
      %v270 = vadd.f32 %v258, %v267
      %v271 = vadd.f32 %v259, %v267
      %v272 = vadd.f32 %v260, %v267
      %v273 = vadd.f32 %v261, %v267
      %v274 = vadd.f32 %v262, %v267
      %v275 = vadd.f32 %v263, %v267
      %v276 = vadd.f32 %v264, %v267
      %v277 = vmax.f32 %v269, 0.0
      %v278 = vmax.f32 %v270, 0.0
      %v279 = vmax.f32 %v271, 0.0
      %v280 = vmax.f32 %v272, 0.0
      %v281 = vmax.f32 %v273, 0.0
      %v282 = vmax.f32 %v274, 0.0
      %v283 = vmax.f32 %v275, 0.0
      %v284 = vmax.f32 %v276, 0.0
      %285 = vst [vmem:[#allocation2] sm:$0xf] 0
      %286 = vst [vmem:[#allocation2 + $0x4] sm:$0x1] 0
      %s287 = scalar_lea.vmem [#allocation2], 72
      %288 = vst [vmem:[%s287] sm:$0xf] 0
      %289 = vst [vmem:[%s287 + $0x4] sm:$0x1] 0
      %vm290 = vcmask 1040384
      %vm291 = vsmask.f32 256
      %vm292 = vmand %vm290, %vm291
      %v293 = vld [vmem:[#allocation2] sm:$0x1]
      %v294 = vsel %vm292, 0, %v293
      %295 = vst [vmem:[#allocation2] sm:$0x1] %v294
      %v296 = vld [vmem:[#allocation2 + $0x8] sm:$0x1]
      %v297 = vsel %vm292, 0, %v296
      %298 = vst [vmem:[#allocation2 + $0x8] sm:$0x1] %v297
      %v299 = vld [vmem:[#allocation2 + $0x10] sm:$0x1]
      %v300 = vsel %vm292, 0, %v299
      %301 = vst [vmem:[#allocation2 + $0x10] sm:$0x1] %v300
      %v302 = vld [vmem:[#allocation2 + $0x18] sm:$0x1]
      %v303 = vsel %vm292, 0, %v302
      %304 = vst [vmem:[#allocation2 + $0x18] sm:$0x1] %v303
      %v305 = vld [vmem:[#allocation2 + $0x20] sm:$0x1]
      %v306 = vsel %vm292, 0, %v305
      %307 = vst [vmem:[#allocation2 + $0x20] sm:$0x1] %v306
      %v308 = vld [vmem:[#allocation2 + $0x28] sm:$0x1]
      %v309 = vsel %vm292, 0, %v308
      %310 = vst [vmem:[#allocation2 + $0x28] sm:$0x1] %v309
      %v311 = vld [vmem:[#allocation2 + $0x30] sm:$0x1]
      %v312 = vsel %vm292, 0, %v311
      %313 = vst [vmem:[#allocation2 + $0x30] sm:$0x1] %v312
      %v314 = vld [vmem:[#allocation2 + $0x38] sm:$0x1]
      %v315 = vsel %vm292, 0, %v314
      %316 = vst [vmem:[#allocation2 + $0x38] sm:$0x1] %v315
      %v317 = vld [vmem:[#allocation2 + $0x40] sm:$0x1]
      %v318 = vsel %vm292, 0, %v317
      %319 = vst [vmem:[#allocation2 + $0x40] sm:$0x1] %v318
      %v320 = vld [vmem:[#allocation2 + $0x48] sm:$0x1]
      %v321 = vsel %vm292, 0, %v320
      %322 = vst [vmem:[#allocation2 + $0x48] sm:$0x1] %v321
      %vm323 = vsmask.f32 7938
      %vm324 = vmand %vm290, %vm323
      %v325 = vld [vmem:[#allocation2 + $0x4] sm:$0x1]
      %v326 = vsel %vm324, 0, %v325
      %327 = vst [vmem:[#allocation2 + $0x4] sm:$0x1] %v326
      %v328 = vld [vmem:[#allocation2 + $0xc] sm:$0x1]
      %v329 = vsel %vm324, 0, %v328
      %330 = vst [vmem:[#allocation2 + $0xc] sm:$0x1] %v329
      %v331 = vld [vmem:[#allocation2 + $0x14] sm:$0x1]
      %v332 = vsel %vm324, 0, %v331
      %333 = vst [vmem:[#allocation2 + $0x14] sm:$0x1] %v332
      %v334 = vld [vmem:[#allocation2 + $0x1c] sm:$0x1]
      %v335 = vsel %vm324, 0, %v334
      %336 = vst [vmem:[#allocation2 + $0x1c] sm:$0x1] %v335
      %v337 = vld [vmem:[#allocation2 + $0x24] sm:$0x1]
      %v338 = vsel %vm324, 0, %v337
      %339 = vst [vmem:[#allocation2 + $0x24] sm:$0x1] %v338
      %v340 = vld [vmem:[#allocation2 + $0x2c] sm:$0x1]
      %v341 = vsel %vm324, 0, %v340
      %342 = vst [vmem:[#allocation2 + $0x2c] sm:$0x1] %v341
      %v343 = vld [vmem:[#allocation2 + $0x34] sm:$0x1]
      %v344 = vsel %vm324, 0, %v343
      %345 = vst [vmem:[#allocation2 + $0x34] sm:$0x1] %v344
      %v346 = vld [vmem:[#allocation2 + $0x3c] sm:$0x1]
      %v347 = vsel %vm324, 0, %v346
      %348 = vst [vmem:[#allocation2 + $0x3c] sm:$0x1] %v347
      %v349 = vld [vmem:[#allocation2 + $0x44] sm:$0x1]
      %v350 = vsel %vm324, 0, %v349
      %351 = vst [vmem:[#allocation2 + $0x44] sm:$0x1] %v350
      %v352 = vld [vmem:[#allocation2 + $0x4c] sm:$0x1]
      %v353 = vsel %vm324, 0, %v352
      %354 = vst [vmem:[#allocation2 + $0x4c] sm:$0x1] %v353
      %v355 = vpack.c.bf16 %v277, %v277
      %v356 = vpack.c.bf16 %v278, %v278
      %v357 = vpack.c.bf16 %v279, %v279
      %v358 = vpack.c.bf16 %v280, %v280
      %v359 = vpack.c.bf16 %v281, %v281
      %v360 = vpack.c.bf16 %v282, %v282
      %v361 = vpack.c.bf16 %v283, %v283
      %v362 = vpack.c.bf16 %v284, %v284
      %v364 = vshrl.u32 %v355, 16
      %v366 = vrot.slane %v364, 7
      %v367 = vshll.u32 %v355, 16
      %v369 = vor.u32 %v366, %v367
      %v370 = vrot.slane %v366, 4
      %v372 = vshrl.u32 %v356, 16
      %v374 = vrot.slane %v372, 7
      %v375 = vshll.u32 %v356, 16
      %v377 = vor.u32 %v374, %v375
      %v378 = vrot.slane %v374, 4
      %v380 = vshrl.u32 %v357, 16
      %v382 = vrot.slane %v380, 7
      %v383 = vshll.u32 %v357, 16
      %v385 = vor.u32 %v382, %v383
      %v386 = vrot.slane %v382, 4
      %v388 = vshrl.u32 %v358, 16
      %v390 = vrot.slane %v388, 7
      %v391 = vshll.u32 %v358, 16
      %v393 = vor.u32 %v390, %v391
      %v394 = vrot.slane %v390, 4
      %v396 = vshrl.u32 %v359, 16
      %v398 = vrot.slane %v396, 7
      %v399 = vshll.u32 %v359, 16
      %v401 = vor.u32 %v398, %v399
      %v402 = vrot.slane %v398, 4
      %v404 = vshrl.u32 %v360, 16
      %v406 = vrot.slane %v404, 7
      %v407 = vshll.u32 %v360, 16
      %v409 = vor.u32 %v406, %v407
      %v410 = vrot.slane %v406, 4
      %v412 = vshrl.u32 %v361, 16
      %v414 = vrot.slane %v412, 7
      %v415 = vshll.u32 %v361, 16
      %v417 = vor.u32 %v414, %v415
      %v418 = vrot.slane %v414, 4
      %v420 = vshrl.u32 %v362, 16
      %v422 = vrot.slane %v420, 7
      %v423 = vshll.u32 %v362, 16
      %v425 = vor.u32 %v422, %v423
      %v426 = vrot.slane %v422, 4
      %s443 = scalar_lea.vmem [#allocation2], 8
      %vm444 = vcmask 1043456
      %vm445 = vmand %vm444, %vm323
      %v446 = vld [vmem:[%s443] sm:$0xf]
      %v447 = vsel %vm445, %v369, %v446
      %448 = vst [vmem:[%s443] sm:$0xf] %v447
      %v449 = vld [vmem:[%s443 + $0x4] sm:$0x1]
      %v450 = vsel %vm292, %v370, %v449
      %451 = vst [vmem:[%s443 + $0x4] sm:$0x1] %v450
      %v452 = vld [vmem:[%s443 + $0x8] sm:$0xf]
      %v453 = vsel %vm445, %v377, %v452
      %454 = vst [vmem:[%s443 + $0x8] sm:$0xf] %v453
      %v455 = vld [vmem:[%s443 + $0xc] sm:$0x1]
      %v456 = vsel %vm292, %v378, %v455
      %457 = vst [vmem:[%s443 + $0xc] sm:$0x1] %v456
      %v458 = vld [vmem:[%s443 + $0x10] sm:$0xf]
      %v459 = vsel %vm445, %v385, %v458
      %460 = vst [vmem:[%s443 + $0x10] sm:$0xf] %v459
      %v461 = vld [vmem:[%s443 + $0x14] sm:$0x1]
      %v462 = vsel %vm292, %v386, %v461
      %463 = vst [vmem:[%s443 + $0x14] sm:$0x1] %v462
      %v464 = vld [vmem:[%s443 + $0x18] sm:$0xf]
      %v465 = vsel %vm445, %v393, %v464
      %466 = vst [vmem:[%s443 + $0x18] sm:$0xf] %v465
      %v467 = vld [vmem:[%s443 + $0x1c] sm:$0x1]
      %v468 = vsel %vm292, %v394, %v467
      %469 = vst [vmem:[%s443 + $0x1c] sm:$0x1] %v468
      %v470 = vld [vmem:[%s443 + $0x20] sm:$0xf]
      %v471 = vsel %vm445, %v401, %v470
      %472 = vst [vmem:[%s443 + $0x20] sm:$0xf] %v471
      %v473 = vld [vmem:[%s443 + $0x24] sm:$0x1]
      %v474 = vsel %vm292, %v402, %v473
      %475 = vst [vmem:[%s443 + $0x24] sm:$0x1] %v474
      %v476 = vld [vmem:[%s443 + $0x28] sm:$0xf]
      %v477 = vsel %vm445, %v409, %v476
      %478 = vst [vmem:[%s443 + $0x28] sm:$0xf] %v477
      %v479 = vld [vmem:[%s443 + $0x2c] sm:$0x1]
      %v480 = vsel %vm292, %v410, %v479
      %481 = vst [vmem:[%s443 + $0x2c] sm:$0x1] %v480
      %v482 = vld [vmem:[%s443 + $0x30] sm:$0xf]
      %v483 = vsel %vm445, %v417, %v482
      %484 = vst [vmem:[%s443 + $0x30] sm:$0xf] %v483
      %v485 = vld [vmem:[%s443 + $0x34] sm:$0x1]
      %v486 = vsel %vm292, %v418, %v485
      %487 = vst [vmem:[%s443 + $0x34] sm:$0x1] %v486
      %v488 = vld [vmem:[%s443 + $0x38] sm:$0xf]
      %v489 = vsel %vm445, %v425, %v488
      %490 = vst [vmem:[%s443 + $0x38] sm:$0xf] %v489
      %v491 = vld [vmem:[%s443 + $0x3c] sm:$0x1]
      %v492 = vsel %vm292, %v426, %v491
      %493 = vst [vmem:[%s443 + $0x3c] sm:$0x1] %v492
      %v494 = vld [vmem:[#allocation2] sm:$0xf]
      %v495 = vld [vmem:[#allocation2 + $0x8] sm:$0xf]
      %v496 = vld [vmem:[#allocation2 + $0x10] sm:$0xf]
      %v497 = vld [vmem:[#allocation2 + $0x18] sm:$0xf]
      %v498 = vld [vmem:[#allocation2 + $0x20] sm:$0xf]
      %v499 = vld [vmem:[#allocation2 + $0x28] sm:$0xf]
      %v500 = vld [vmem:[#allocation2 + $0x30] sm:$0xf]
      %v501 = vld [vmem:[#allocation2 + $0x38] sm:$0xf]
      %v502 = vld [vmem:[#allocation2 + $0x4] sm:$0x1]
      %v503 = vld [vmem:[#allocation2 + $0xc] sm:$0x1]
      %v504 = vld [vmem:[#allocation2 + $0x14] sm:$0x1]
      %v505 = vld [vmem:[#allocation2 + $0x1c] sm:$0x1]
      %v506 = vld [vmem:[#allocation2 + $0x24] sm:$0x1]
      %v507 = vld [vmem:[#allocation2 + $0x2c] sm:$0x1]
      %v508 = vld [vmem:[#allocation2 + $0x34] sm:$0x1]
      %v509 = vld [vmem:[#allocation2 + $0x3c] sm:$0x1]
      %vm510 = vsmask.f32 3328
      %vm511 = vsmask.f32 7440
      %vm512 = vmor %vm510, %vm511
      %v514 = vshrl.u32 %v494, 16
      %v516 = vrot.slane %v514, 4
      %v517 = vshll.u32 %v494, 16
      %v519 = vrot.slane %v517, 5
      %v520 = vor.u32 %v516, %v519
      %v521 = vrot.slane %v520, 4
      %v523 = vshll.u32 %v502, 16
      %v525 = vrot.slane %v523, 5
      %v526 = vsel %vm512, %v521, %v525
      %v528 = vshrl.u32 %v495, 16
      %v530 = vrot.slane %v528, 4
      %v531 = vshll.u32 %v495, 16
      %v533 = vrot.slane %v531, 5
      %v534 = vor.u32 %v530, %v533
      %v535 = vrot.slane %v534, 4
      %v537 = vshll.u32 %v503, 16
      %v539 = vrot.slane %v537, 5
      %v540 = vsel %vm512, %v535, %v539
      %v542 = vshrl.u32 %v496, 16
      %v544 = vrot.slane %v542, 4
      %v545 = vshll.u32 %v496, 16
      %v547 = vrot.slane %v545, 5
      %v548 = vor.u32 %v544, %v547
      %v549 = vrot.slane %v548, 4
      %v551 = vshll.u32 %v504, 16
      %v553 = vrot.slane %v551, 5
      %v554 = vsel %vm512, %v549, %v553
      %v556 = vshrl.u32 %v497, 16
      %v558 = vrot.slane %v556, 4
      %v559 = vshll.u32 %v497, 16
      %v561 = vrot.slane %v559, 5
      %v562 = vor.u32 %v558, %v561
      %v563 = vrot.slane %v562, 4
      %v565 = vshll.u32 %v505, 16
      %v567 = vrot.slane %v565, 5
      %v568 = vsel %vm512, %v563, %v567
      %v570 = vshrl.u32 %v498, 16
      %v572 = vrot.slane %v570, 4
      %v573 = vshll.u32 %v498, 16
      %v575 = vrot.slane %v573, 5
      %v576 = vor.u32 %v572, %v575
      %v577 = vrot.slane %v576, 4
      %v579 = vshll.u32 %v506, 16
      %v581 = vrot.slane %v579, 5
      %v582 = vsel %vm512, %v577, %v581
      %v584 = vshrl.u32 %v499, 16
      %v586 = vrot.slane %v584, 4
      %v587 = vshll.u32 %v499, 16
      %v589 = vrot.slane %v587, 5
      %v590 = vor.u32 %v586, %v589
      %v591 = vrot.slane %v590, 4
      %v593 = vshll.u32 %v507, 16
      %v595 = vrot.slane %v593, 5
      %v596 = vsel %vm512, %v591, %v595
      %v598 = vshrl.u32 %v500, 16
      %v600 = vrot.slane %v598, 4
      %v601 = vshll.u32 %v500, 16
      %v603 = vrot.slane %v601, 5
      %v604 = vor.u32 %v600, %v603
      %v605 = vrot.slane %v604, 4
      %v607 = vshll.u32 %v508, 16
      %v609 = vrot.slane %v607, 5
      %v610 = vsel %vm512, %v605, %v609
      %v612 = vshrl.u32 %v501, 16
      %v614 = vrot.slane %v612, 4
      %v615 = vshll.u32 %v501, 16
      %v617 = vrot.slane %v615, 5
      %v618 = vor.u32 %v614, %v617
      %v619 = vrot.slane %v618, 4
      %v621 = vshll.u32 %v509, 16
      %v623 = vrot.slane %v621, 5
      %v624 = vsel %vm512, %v619, %v623
      %v625 = vld [vmem:[#allocation2] sm:$0xe]
      %v626 = vld [vmem:[#allocation2 + $0x8] sm:$0xe]
      %v627 = vld [vmem:[#allocation2 + $0x10] sm:$0xe]
      %v628 = vld [vmem:[#allocation2 + $0x18] sm:$0xe]
      %v629 = vld [vmem:[#allocation2 + $0x20] sm:$0xe]
      %v630 = vld [vmem:[#allocation2 + $0x28] sm:$0xe]
      %v631 = vld [vmem:[#allocation2 + $0x30] sm:$0xe]
      %v632 = vld [vmem:[#allocation2 + $0x38] sm:$0xe]
      %vm649 = vcmask 1042432
      %vm650 = vcmask 1046532
      %vm651 = vmor %vm649, %vm650
      %v652 = vrot.slane %v625, 5
      %v653 = vrot.slane %v652, 4
      %v654 = vrot.slane %v502, 5
      %v655 = vsel %vm651, %v653, %v654
      %v656 = vrot.slane %v626, 5
      %v657 = vrot.slane %v656, 4
      %v658 = vrot.slane %v503, 5
      %v659 = vsel %vm651, %v657, %v658
      %v660 = vrot.slane %v627, 5
      %v661 = vrot.slane %v660, 4
      %v662 = vrot.slane %v504, 5
      %v663 = vsel %vm651, %v661, %v662
      %v664 = vrot.slane %v628, 5
      %v665 = vrot.slane %v664, 4
      %v666 = vrot.slane %v505, 5
      %v667 = vsel %vm651, %v665, %v666
      %v668 = vrot.slane %v629, 5
      %v669 = vrot.slane %v668, 4
      %v670 = vrot.slane %v506, 5
      %v671 = vsel %vm651, %v669, %v670
      %v672 = vrot.slane %v630, 5
      %v673 = vrot.slane %v672, 4
      %v674 = vrot.slane %v507, 5
      %v675 = vsel %vm651, %v673, %v674
      %v676 = vrot.slane %v631, 5
      %v677 = vrot.slane %v676, 4
      %v678 = vrot.slane %v508, 5
      %v679 = vsel %vm651, %v677, %v678
      %v680 = vrot.slane %v632, 5
      %v681 = vrot.slane %v680, 4
      %v682 = vrot.slane %v509, 5
      %v683 = vsel %vm651, %v681, %v682
      %v692 = vunpack.c.l.b16 %v494
      %v693 = vunpack.c.l.b16 %v495
      %v694 = vunpack.c.l.b16 %v496
      %v695 = vunpack.c.l.b16 %v497
      %v696 = vunpack.c.l.b16 %v498
      %v697 = vunpack.c.l.b16 %v499
      %v698 = vunpack.c.l.b16 %v500
      %v699 = vunpack.c.l.b16 %v501
      %v700 = vpack.c.b16 %v693, %v692
      %v701 = vpack.c.b16 %v695, %v694
      %v702 = vpack.c.b16 %v697, %v696
      %v703 = vpack.c.b16 %v699, %v698
      %v708 = vunpack.c.l.b16 %v526
      %v709 = vunpack.c.l.b16 %v540
      %v710 = vunpack.c.l.b16 %v554
      %v711 = vunpack.c.l.b16 %v568
      %v712 = vunpack.c.l.b16 %v582
      %v713 = vunpack.c.l.b16 %v596
      %v714 = vunpack.c.l.b16 %v610
      %v715 = vunpack.c.l.b16 %v624
      %v716 = vpack.c.b16 %v709, %v708
      %v717 = vpack.c.b16 %v711, %v710
      %v718 = vpack.c.b16 %v713, %v712
      %v719 = vpack.c.b16 %v715, %v714
      %v724 = vunpack.c.l.b16 %v655
      %v725 = vunpack.c.l.b16 %v659
      %v726 = vunpack.c.l.b16 %v663
      %v727 = vunpack.c.l.b16 %v667
      %v728 = vunpack.c.l.b16 %v671
      %v729 = vunpack.c.l.b16 %v675
      %v730 = vunpack.c.l.b16 %v679
      %v731 = vunpack.c.l.b16 %v683
      %v732 = vpack.c.b16 %v725, %v724
      %v733 = vpack.c.b16 %v727, %v726
      %v734 = vpack.c.b16 %v729, %v728
      %v735 = vpack.c.b16 %v731, %v730
      %v740 = vld [vmem:[%s3] sm:$0xf]
      %v741 = vld [vmem:[%s3 + $0x4] sm:$0xf]
      %v742 = vld [vmem:[%s3 + $0x8] sm:$0xf]
      %v743 = vld [vmem:[%s3 + $0xc] sm:$0xf]
      %v744 = vld [vmem:[%s3 + $0x10] sm:$0xf]
      %v745 = vld [vmem:[%s3 + $0x14] sm:$0xf]
      %v746 = vld [vmem:[%s3 + $0x18] sm:$0xf]
      %v747 = vld [vmem:[%s3 + $0x1c] sm:$0xf]
      %v748 = vld [vmem:[%s3 + $0x20] sm:$0xf]
      %v749 = vld [vmem:[%s3 + $0x24] sm:$0xf]
      %v750 = vld [vmem:[%s3 + $0x28] sm:$0xf]
      %v751 = vld [vmem:[%s3 + $0x2c] sm:$0xf]
      %v752 = vld [vmem:[%s3 + $0x30] sm:$0xf]
      %v753 = vld [vmem:[%s3 + $0x34] sm:$0xf]
      %v754 = vld [vmem:[%s3 + $0x38] sm:$0xf]
      %v755 = vld [vmem:[%s3 + $0x3c] sm:$0xf]
      %v756 = vld [vmem:[%s3 + $0x40] sm:$0xf]
      %v757 = vld [vmem:[%s3 + $0x44] sm:$0xf]
      %v758 = vld [vmem:[%s3 + $0x48] sm:$0xf]
      %v759 = vld [vmem:[%s3 + $0x4c] sm:$0xf]
      %v760 = vld [vmem:[%s3 + $0x50] sm:$0xf]
      %v761 = vld [vmem:[%s3 + $0x54] sm:$0xf]
      %v762 = vld [vmem:[%s3 + $0x58] sm:$0xf]
      %v763 = vld [vmem:[%s3 + $0x5c] sm:$0xf]
      %v764 = vld [vmem:[%s3 + $0x60] sm:$0xf]
      %v765 = vld [vmem:[%s3 + $0x64] sm:$0xf]
      %v766 = vld [vmem:[%s3 + $0x68] sm:$0xf]
      %v767 = vld [vmem:[%s3 + $0x6c] sm:$0xf]
      %v768 = vld [vmem:[%s3 + $0x70] sm:$0xf]
      %v769 = vld [vmem:[%s3 + $0x74] sm:$0xf]
      %v770 = vld [vmem:[%s3 + $0x78] sm:$0xf]
      %v771 = vld [vmem:[%s3 + $0x7c] sm:$0xf]
      %v772 = vld [vmem:[%s3 + $0x80] sm:$0xf]
      %v773 = vld [vmem:[%s3 + $0x84] sm:$0xf]
      %v774 = vld [vmem:[%s3 + $0x88] sm:$0xf]
      %v775 = vld [vmem:[%s3 + $0x8c] sm:$0xf]
      %v776 = vld [vmem:[%s3 + $0x90] sm:$0xf]
      %v777 = vld [vmem:[%s3 + $0x94] sm:$0xf]
      %v778 = vld [vmem:[%s3 + $0x98] sm:$0xf]
      %v779 = vld [vmem:[%s3 + $0x9c] sm:$0xf]
      %v780 = vld [vmem:[%s3 + $0xa0] sm:$0xf]
      %v781 = vld [vmem:[%s3 + $0xa4] sm:$0xf]
      %v782 = vld [vmem:[%s3 + $0xa8] sm:$0xf]
      %v783 = vld [vmem:[%s3 + $0xac] sm:$0xf]
      %v784 = vld [vmem:[%s3 + $0xb0] sm:$0xf]
      %v785 = vld [vmem:[%s3 + $0xb4] sm:$0xf]
      %v786 = vld [vmem:[%s3 + $0xb8] sm:$0xf]
      %v787 = vld [vmem:[%s3 + $0xbc] sm:$0xf]
      %v788 = vld [vmem:[%s443] sm:$0xf]
      %v789 = vld [vmem:[%s443 + $0x8] sm:$0xf]
      %v790 = vld [vmem:[%s443 + $0x10] sm:$0xf]
      %v791 = vld [vmem:[%s443 + $0x18] sm:$0xf]
      %v792 = vld [vmem:[%s443 + $0x20] sm:$0xf]
      %v793 = vld [vmem:[%s443 + $0x28] sm:$0xf]
      %v794 = vld [vmem:[%s443 + $0x30] sm:$0xf]
      %v795 = vld [vmem:[%s443 + $0x38] sm:$0xf]
      %v796 = vld [vmem:[%s443 + $0x4] sm:$0x1]
      %v797 = vld [vmem:[%s443 + $0xc] sm:$0x1]
      %v798 = vld [vmem:[%s443 + $0x14] sm:$0x1]
      %v799 = vld [vmem:[%s443 + $0x1c] sm:$0x1]
      %v800 = vld [vmem:[%s443 + $0x24] sm:$0x1]
      %v801 = vld [vmem:[%s443 + $0x2c] sm:$0x1]
      %v802 = vld [vmem:[%s443 + $0x34] sm:$0x1]
      %v803 = vld [vmem:[%s443 + $0x3c] sm:$0x1]
      %v805 = vshrl.u32 %v788, 16
      %v807 = vrot.slane %v805, 4
      %v808 = vshll.u32 %v788, 16
      %v810 = vrot.slane %v808, 5
      %v811 = vor.u32 %v807, %v810
      %v812 = vrot.slane %v811, 4
      %v814 = vshll.u32 %v796, 16
      %v816 = vrot.slane %v814, 5
      %v817 = vsel %vm512, %v812, %v816
      %v819 = vshrl.u32 %v789, 16
      %v821 = vrot.slane %v819, 4
      %v822 = vshll.u32 %v789, 16
      %v824 = vrot.slane %v822, 5
      %v825 = vor.u32 %v821, %v824
      %v826 = vrot.slane %v825, 4
      %v828 = vshll.u32 %v797, 16
      %v830 = vrot.slane %v828, 5
      %v831 = vsel %vm512, %v826, %v830
      %v833 = vshrl.u32 %v790, 16
      %v835 = vrot.slane %v833, 4
      %v836 = vshll.u32 %v790, 16
      %v838 = vrot.slane %v836, 5
      %v839 = vor.u32 %v835, %v838
      %v840 = vrot.slane %v839, 4
      %v842 = vshll.u32 %v798, 16
      %v844 = vrot.slane %v842, 5
      %v845 = vsel %vm512, %v840, %v844
      %v847 = vshrl.u32 %v791, 16
      %v849 = vrot.slane %v847, 4
      %v850 = vshll.u32 %v791, 16
      %v852 = vrot.slane %v850, 5
      %v853 = vor.u32 %v849, %v852
      %v854 = vrot.slane %v853, 4
      %v856 = vshll.u32 %v799, 16
      %v858 = vrot.slane %v856, 5
      %v859 = vsel %vm512, %v854, %v858
      %v861 = vshrl.u32 %v792, 16
      %v863 = vrot.slane %v861, 4
      %v864 = vshll.u32 %v792, 16
      %v866 = vrot.slane %v864, 5
      %v867 = vor.u32 %v863, %v866
      %v868 = vrot.slane %v867, 4
      %v870 = vshll.u32 %v800, 16
      %v872 = vrot.slane %v870, 5
      %v873 = vsel %vm512, %v868, %v872
      %v875 = vshrl.u32 %v793, 16
      %v877 = vrot.slane %v875, 4
      %v878 = vshll.u32 %v793, 16
      %v880 = vrot.slane %v878, 5
      %v881 = vor.u32 %v877, %v880
      %v882 = vrot.slane %v881, 4
      %v884 = vshll.u32 %v801, 16
      %v886 = vrot.slane %v884, 5
      %v887 = vsel %vm512, %v882, %v886
      %v889 = vshrl.u32 %v794, 16
      %v891 = vrot.slane %v889, 4
      %v892 = vshll.u32 %v794, 16
      %v894 = vrot.slane %v892, 5
      %v895 = vor.u32 %v891, %v894
      %v896 = vrot.slane %v895, 4
      %v898 = vshll.u32 %v802, 16
      %v900 = vrot.slane %v898, 5
      %v901 = vsel %vm512, %v896, %v900
      %v903 = vshrl.u32 %v795, 16
      %v905 = vrot.slane %v903, 4
      %v906 = vshll.u32 %v795, 16
      %v908 = vrot.slane %v906, 5
      %v909 = vor.u32 %v905, %v908
      %v910 = vrot.slane %v909, 4
      %v912 = vshll.u32 %v803, 16
      %v914 = vrot.slane %v912, 5
      %v915 = vsel %vm512, %v910, %v914
      %v916 = vld [vmem:[%s443] sm:$0xe]
      %v917 = vld [vmem:[%s443 + $0x8] sm:$0xe]
      %v918 = vld [vmem:[%s443 + $0x10] sm:$0xe]
      %v919 = vld [vmem:[%s443 + $0x18] sm:$0xe]
      %v920 = vld [vmem:[%s443 + $0x20] sm:$0xe]
      %v921 = vld [vmem:[%s443 + $0x28] sm:$0xe]
      %v922 = vld [vmem:[%s443 + $0x30] sm:$0xe]
      %v923 = vld [vmem:[%s443 + $0x38] sm:$0xe]
      %v940 = vrot.slane %v916, 5
      %v941 = vrot.slane %v940, 4
      %v942 = vrot.slane %v796, 5
      %v943 = vsel %vm651, %v941, %v942
      %v944 = vrot.slane %v917, 5
      %v945 = vrot.slane %v944, 4
      %v946 = vrot.slane %v797, 5
      %v947 = vsel %vm651, %v945, %v946
      %v948 = vrot.slane %v918, 5
      %v949 = vrot.slane %v948, 4
      %v950 = vrot.slane %v798, 5
      %v951 = vsel %vm651, %v949, %v950
      %v952 = vrot.slane %v919, 5
      %v953 = vrot.slane %v952, 4
      %v954 = vrot.slane %v799, 5
      %v955 = vsel %vm651, %v953, %v954
      %v956 = vrot.slane %v920, 5
      %v957 = vrot.slane %v956, 4
      %v958 = vrot.slane %v800, 5
      %v959 = vsel %vm651, %v957, %v958
      %v960 = vrot.slane %v921, 5
      %v961 = vrot.slane %v960, 4
      %v962 = vrot.slane %v801, 5
      %v963 = vsel %vm651, %v961, %v962
      %v964 = vrot.slane %v922, 5
      %v965 = vrot.slane %v964, 4
      %v966 = vrot.slane %v802, 5
      %v967 = vsel %vm651, %v965, %v966
      %v968 = vrot.slane %v923, 5
      %v969 = vrot.slane %v968, 4
      %v970 = vrot.slane %v803, 5
      %v971 = vsel %vm651, %v969, %v970
      %v980 = vunpack.c.l.b16 %v788
      %v981 = vunpack.c.l.b16 %v789
      %v982 = vunpack.c.l.b16 %v790
      %v983 = vunpack.c.l.b16 %v791
      %v984 = vunpack.c.l.b16 %v792
      %v985 = vunpack.c.l.b16 %v793
      %v986 = vunpack.c.l.b16 %v794
      %v987 = vunpack.c.l.b16 %v795
      %v988 = vpack.c.b16 %v981, %v980
      %v989 = vpack.c.b16 %v983, %v982
      %v990 = vpack.c.b16 %v985, %v984
      %v991 = vpack.c.b16 %v987, %v986
      %v996 = vunpack.c.l.b16 %v817
      %v997 = vunpack.c.l.b16 %v831
      %v998 = vunpack.c.l.b16 %v845
      %v999 = vunpack.c.l.b16 %v859
      %v1000 = vunpack.c.l.b16 %v873
      %v1001 = vunpack.c.l.b16 %v887
      %v1002 = vunpack.c.l.b16 %v901
      %v1003 = vunpack.c.l.b16 %v915
      %v1004 = vpack.c.b16 %v997, %v996
      %v1005 = vpack.c.b16 %v999, %v998
      %v1006 = vpack.c.b16 %v1001, %v1000
      %v1007 = vpack.c.b16 %v1003, %v1002
      %v1012 = vunpack.c.l.b16 %v943
      %v1013 = vunpack.c.l.b16 %v947
      %v1014 = vunpack.c.l.b16 %v951
      %v1015 = vunpack.c.l.b16 %v955
      %v1016 = vunpack.c.l.b16 %v959
      %v1017 = vunpack.c.l.b16 %v963
      %v1018 = vunpack.c.l.b16 %v967
      %v1019 = vunpack.c.l.b16 %v971
      %v1020 = vpack.c.b16 %v1013, %v1012
      %v1021 = vpack.c.b16 %v1015, %v1014
      %v1022 = vpack.c.b16 %v1017, %v1016
      %v1023 = vpack.c.b16 %v1019, %v1018
      %v1028 = vld [vmem:[%s3 + $0xc0] sm:$0xf]
      %v1029 = vld [vmem:[%s3 + $0xc4] sm:$0xf]
      %v1030 = vld [vmem:[%s3 + $0xc8] sm:$0xf]
      %v1031 = vld [vmem:[%s3 + $0xcc] sm:$0xf]
      %v1032 = vld [vmem:[%s3 + $0xd0] sm:$0xf]
      %v1033 = vld [vmem:[%s3 + $0xd4] sm:$0xf]
      %v1034 = vld [vmem:[%s3 + $0xd8] sm:$0xf]
      %v1035 = vld [vmem:[%s3 + $0xdc] sm:$0xf]
      %v1036 = vld [vmem:[%s3 + $0xe0] sm:$0xf]
      %v1037 = vld [vmem:[%s3 + $0xe4] sm:$0xf]
      %v1038 = vld [vmem:[%s3 + $0xe8] sm:$0xf]
      %v1039 = vld [vmem:[%s3 + $0xec] sm:$0xf]
      %v1040 = vld [vmem:[%s3 + $0xf0] sm:$0xf]
      %v1041 = vld [vmem:[%s3 + $0xf4] sm:$0xf]
      %v1042 = vld [vmem:[%s3 + $0xf8] sm:$0xf]
      %v1043 = vld [vmem:[%s3 + $0xfc] sm:$0xf]
      %v1044 = vld [vmem:[%s3 + $0x100] sm:$0xf]
      %v1045 = vld [vmem:[%s3 + $0x104] sm:$0xf]
      %v1046 = vld [vmem:[%s3 + $0x108] sm:$0xf]
      %v1047 = vld [vmem:[%s3 + $0x10c] sm:$0xf]
      %v1048 = vld [vmem:[%s3 + $0x110] sm:$0xf]
      %v1049 = vld [vmem:[%s3 + $0x114] sm:$0xf]
      %v1050 = vld [vmem:[%s3 + $0x118] sm:$0xf]
      %v1051 = vld [vmem:[%s3 + $0x11c] sm:$0xf]
      %v1052 = vld [vmem:[%s3 + $0x120] sm:$0xf]
      %v1053 = vld [vmem:[%s3 + $0x124] sm:$0xf]
      %v1054 = vld [vmem:[%s3 + $0x128] sm:$0xf]
      %v1055 = vld [vmem:[%s3 + $0x12c] sm:$0xf]
      %v1056 = vld [vmem:[%s3 + $0x130] sm:$0xf]
      %v1057 = vld [vmem:[%s3 + $0x134] sm:$0xf]
      %v1058 = vld [vmem:[%s3 + $0x138] sm:$0xf]
      %v1059 = vld [vmem:[%s3 + $0x13c] sm:$0xf]
      %v1060 = vld [vmem:[%s3 + $0x140] sm:$0xf]
      %v1061 = vld [vmem:[%s3 + $0x144] sm:$0xf]
      %v1062 = vld [vmem:[%s3 + $0x148] sm:$0xf]
      %v1063 = vld [vmem:[%s3 + $0x14c] sm:$0xf]
      %v1064 = vld [vmem:[%s3 + $0x150] sm:$0xf]
      %v1065 = vld [vmem:[%s3 + $0x154] sm:$0xf]
      %v1066 = vld [vmem:[%s3 + $0x158] sm:$0xf]
      %v1067 = vld [vmem:[%s3 + $0x15c] sm:$0xf]
      %v1068 = vld [vmem:[%s3 + $0x160] sm:$0xf]
      %v1069 = vld [vmem:[%s3 + $0x164] sm:$0xf]
      %v1070 = vld [vmem:[%s3 + $0x168] sm:$0xf]
      %v1071 = vld [vmem:[%s3 + $0x16c] sm:$0xf]
      %v1072 = vld [vmem:[%s3 + $0x170] sm:$0xf]
      %v1073 = vld [vmem:[%s3 + $0x174] sm:$0xf]
      %v1074 = vld [vmem:[%s3 + $0x178] sm:$0xf]
      %v1075 = vld [vmem:[%s3 + $0x17c] sm:$0xf]
      %v1124 = vunpack.c.l.b16 %v1028
      %v1125 = vunpack.c.l.b16 %v1029
      %v1126 = vunpack.c.l.b16 %v1030
      %v1127 = vunpack.c.l.b16 %v1031
      %v1128 = vunpack.c.l.b16 %v1032
      %v1129 = vunpack.c.l.b16 %v1033
      %v1130 = vunpack.c.l.b16 %v1034
      %v1131 = vunpack.c.l.b16 %v1035
      %v1132 = vunpack.c.l.b16 %v1036
      %v1133 = vunpack.c.l.b16 %v1037
      %v1134 = vunpack.c.l.b16 %v1038
      %v1135 = vunpack.c.l.b16 %v1039
      %v1136 = vunpack.c.l.b16 %v1040
      %v1137 = vunpack.c.l.b16 %v1041
      %v1138 = vunpack.c.l.b16 %v1042
      %v1139 = vunpack.c.l.b16 %v1043
      %v1140 = vunpack.c.l.b16 %v1044
      %v1141 = vunpack.c.l.b16 %v1045
      %v1142 = vunpack.c.l.b16 %v1046
      %v1143 = vunpack.c.l.b16 %v1047
      %v1144 = vunpack.c.l.b16 %v1048
      %v1145 = vunpack.c.l.b16 %v1049
      %v1146 = vunpack.c.l.b16 %v1050
      %v1147 = vunpack.c.l.b16 %v1051
      %v1148 = vunpack.c.l.b16 %v1052
      %v1149 = vunpack.c.l.b16 %v1053
      %v1150 = vunpack.c.l.b16 %v1054
      %v1151 = vunpack.c.l.b16 %v1055
      %v1152 = vunpack.c.l.b16 %v1056
      %v1153 = vunpack.c.l.b16 %v1057
      %v1154 = vunpack.c.l.b16 %v1058
      %v1155 = vunpack.c.l.b16 %v1059
      %v1156 = vunpack.c.l.b16 %v1060
      %v1157 = vunpack.c.l.b16 %v1061
      %v1158 = vunpack.c.l.b16 %v1062
      %v1159 = vunpack.c.l.b16 %v1063
      %v1160 = vunpack.c.l.b16 %v1064
      %v1161 = vunpack.c.l.b16 %v1065
      %v1162 = vunpack.c.l.b16 %v1066
      %v1163 = vunpack.c.l.b16 %v1067
      %v1164 = vunpack.c.l.b16 %v1068
      %v1165 = vunpack.c.l.b16 %v1069
      %v1166 = vunpack.c.l.b16 %v1070
      %v1167 = vunpack.c.l.b16 %v1071
      %v1168 = vunpack.c.l.b16 %v1072
      %v1169 = vunpack.c.l.b16 %v1073
      %v1170 = vunpack.c.l.b16 %v1074
      %v1171 = vunpack.c.l.b16 %v1075
      %v1172 = vpack.c.b16 %v1125, %v1124
      %v1173 = vpack.c.b16 %v1127, %v1126
      %v1174 = vpack.c.b16 %v1129, %v1128
      %v1175 = vpack.c.b16 %v1131, %v1130
      %v1176 = vpack.c.b16 %v1133, %v1132
      %v1177 = vpack.c.b16 %v1135, %v1134
      %v1178 = vpack.c.b16 %v1137, %v1136
      %v1179 = vpack.c.b16 %v1139, %v1138
      %v1180 = vpack.c.b16 %v1141, %v1140
      %v1181 = vpack.c.b16 %v1143, %v1142
      %v1182 = vpack.c.b16 %v1145, %v1144
      %v1183 = vpack.c.b16 %v1147, %v1146
      %v1184 = vpack.c.b16 %v1149, %v1148
      %v1185 = vpack.c.b16 %v1151, %v1150
      %v1186 = vpack.c.b16 %v1153, %v1152
      %v1187 = vpack.c.b16 %v1155, %v1154
      %v1188 = vpack.c.b16 %v1157, %v1156
      %v1189 = vpack.c.b16 %v1159, %v1158
      %v1190 = vpack.c.b16 %v1161, %v1160
      %v1191 = vpack.c.b16 %v1163, %v1162
      %v1192 = vpack.c.b16 %v1165, %v1164
      %v1193 = vpack.c.b16 %v1167, %v1166
      %v1194 = vpack.c.b16 %v1169, %v1168
      %v1195 = vpack.c.b16 %v1171, %v1170
      %1220 = vmatpush.bf16.msra.mxu0 %v1179
      %1221 = vmatpush.bf16.msra.mxu0 %v1178
      %1222 = vmatpush.bf16.msra.mxu0 %v1177
      %1223 = vmatpush.bf16.msra.mxu0 %v1176
      %1224 = vmatpush.bf16.msra.mxu0 %v1175
      %1225 = vmatpush.bf16.msra.mxu0 %v1174
      %1226 = vmatpush.bf16.msra.mxu0 %v1173
      %1227 = vmatpush.bf16.msra.mxu0 %v1172
      %1228 = vmatmul.bf16.gmra.mxu0 %v988
      %v1229 = vpop.f32.mrf.mxu0
      %v1230 = vadd.f32 0.0, %v1229
      %v1231 = vpop.f32.mrf.mxu0
      %v1232 = vadd.f32 0.0, %v1231
      %1233 = vmatmul.bf16.gmra.mxu0 %v989
      %v1234 = vpop.f32.mrf.mxu0
      %v1235 = vadd.f32 0.0, %v1234
      %v1236 = vpop.f32.mrf.mxu0
      %v1237 = vadd.f32 0.0, %v1236
      %1238 = vmatmul.bf16.gmra.mxu0 %v990
      %v1239 = vpop.f32.mrf.mxu0
      %v1240 = vadd.f32 0.0, %v1239
      %v1241 = vpop.f32.mrf.mxu0
      %v1242 = vadd.f32 0.0, %v1241
      %1243 = vmatmul.bf16.gmra.mxu0 %v991
      %v1244 = vpop.f32.mrf.mxu0
      %v1245 = vadd.f32 0.0, %v1244
      %v1246 = vpop.f32.mrf.mxu0
      %v1247 = vadd.f32 0.0, %v1246
      %1248 = vdwg.mxu0
      %1249 = vmatpush.bf16.msra.mxu0 %v1187
      %1250 = vmatpush.bf16.msra.mxu0 %v1186
      %1251 = vmatpush.bf16.msra.mxu0 %v1185
      %1252 = vmatpush.bf16.msra.mxu0 %v1184
      %1253 = vmatpush.bf16.msra.mxu0 %v1183
      %1254 = vmatpush.bf16.msra.mxu0 %v1182
      %1255 = vmatpush.bf16.msra.mxu0 %v1181
      %1256 = vmatpush.bf16.msra.mxu0 %v1180
      %1257 = vmatmul.bf16.gmra.mxu0 %v1004
      %v1258 = vpop.f32.mrf.mxu0
      %v1259 = vadd.f32 %v1230, %v1258
      %v1260 = vpop.f32.mrf.mxu0
      %v1261 = vadd.f32 %v1232, %v1260
      %1262 = vmatmul.bf16.gmra.mxu0 %v1005
      %v1263 = vpop.f32.mrf.mxu0
      %v1264 = vadd.f32 %v1235, %v1263
      %v1265 = vpop.f32.mrf.mxu0
      %v1266 = vadd.f32 %v1237, %v1265
      %1267 = vmatmul.bf16.gmra.mxu0 %v1006
      %v1268 = vpop.f32.mrf.mxu0
      %v1269 = vadd.f32 %v1240, %v1268
      %v1270 = vpop.f32.mrf.mxu0
      %v1271 = vadd.f32 %v1242, %v1270
      %1272 = vmatmul.bf16.gmra.mxu0 %v1007
      %v1273 = vpop.f32.mrf.mxu0
      %v1274 = vadd.f32 %v1245, %v1273
      %v1275 = vpop.f32.mrf.mxu0
      %v1276 = vadd.f32 %v1247, %v1275
      %1277 = vdwg.mxu0
      %1278 = vmatpush.bf16.msra.mxu0 %v1195
      %1279 = vmatpush.bf16.msra.mxu0 %v1194
      %1280 = vmatpush.bf16.msra.mxu0 %v1193
      %1281 = vmatpush.bf16.msra.mxu0 %v1192
      %1282 = vmatpush.bf16.msra.mxu0 %v1191
      %1283 = vmatpush.bf16.msra.mxu0 %v1190
      %1284 = vmatpush.bf16.msra.mxu0 %v1189
      %1285 = vmatpush.bf16.msra.mxu0 %v1188
      %1286 = vmatmul.bf16.gmra.mxu0 %v1020
      %v1287 = vpop.f32.mrf.mxu0
      %v1288 = vadd.f32 %v1259, %v1287
      %v1289 = vpop.f32.mrf.mxu0
      %v1290 = vadd.f32 %v1261, %v1289
      %1291 = vmatmul.bf16.gmra.mxu0 %v1021
      %v1292 = vpop.f32.mrf.mxu0
      %v1293 = vadd.f32 %v1264, %v1292
      %v1294 = vpop.f32.mrf.mxu0
      %v1295 = vadd.f32 %v1266, %v1294
      %1296 = vmatmul.bf16.gmra.mxu0 %v1022
      %v1297 = vpop.f32.mrf.mxu0
      %v1298 = vadd.f32 %v1269, %v1297
      %v1299 = vpop.f32.mrf.mxu0
      %v1300 = vadd.f32 %v1271, %v1299
      %1301 = vmatmul.bf16.gmra.mxu0 %v1023
      %v1302 = vpop.f32.mrf.mxu0
      %v1303 = vadd.f32 %v1274, %v1302
      %v1304 = vpop.f32.mrf.mxu0
      %v1305 = vadd.f32 %v1276, %v1304
      %1306 = vdwg.mxu0
      %v1355 = vunpack.c.l.b16 %v740
      %v1356 = vunpack.c.l.b16 %v741
      %v1357 = vunpack.c.l.b16 %v742
      %v1358 = vunpack.c.l.b16 %v743
      %v1359 = vunpack.c.l.b16 %v744
      %v1360 = vunpack.c.l.b16 %v745
      %v1361 = vunpack.c.l.b16 %v746
      %v1362 = vunpack.c.l.b16 %v747
      %v1363 = vunpack.c.l.b16 %v748
      %v1364 = vunpack.c.l.b16 %v749
      %v1365 = vunpack.c.l.b16 %v750
      %v1366 = vunpack.c.l.b16 %v751
      %v1367 = vunpack.c.l.b16 %v752
      %v1368 = vunpack.c.l.b16 %v753
      %v1369 = vunpack.c.l.b16 %v754
      %v1370 = vunpack.c.l.b16 %v755
      %v1371 = vunpack.c.l.b16 %v756
      %v1372 = vunpack.c.l.b16 %v757
      %v1373 = vunpack.c.l.b16 %v758
      %v1374 = vunpack.c.l.b16 %v759
      %v1375 = vunpack.c.l.b16 %v760
      %v1376 = vunpack.c.l.b16 %v761
      %v1377 = vunpack.c.l.b16 %v762
      %v1378 = vunpack.c.l.b16 %v763
      %v1379 = vunpack.c.l.b16 %v764
      %v1380 = vunpack.c.l.b16 %v765
      %v1381 = vunpack.c.l.b16 %v766
      %v1382 = vunpack.c.l.b16 %v767
      %v1383 = vunpack.c.l.b16 %v768
      %v1384 = vunpack.c.l.b16 %v769
      %v1385 = vunpack.c.l.b16 %v770
      %v1386 = vunpack.c.l.b16 %v771
      %v1387 = vunpack.c.l.b16 %v772
      %v1388 = vunpack.c.l.b16 %v773
      %v1389 = vunpack.c.l.b16 %v774
      %v1390 = vunpack.c.l.b16 %v775
      %v1391 = vunpack.c.l.b16 %v776
      %v1392 = vunpack.c.l.b16 %v777
      %v1393 = vunpack.c.l.b16 %v778
      %v1394 = vunpack.c.l.b16 %v779
      %v1395 = vunpack.c.l.b16 %v780
      %v1396 = vunpack.c.l.b16 %v781
      %v1397 = vunpack.c.l.b16 %v782
      %v1398 = vunpack.c.l.b16 %v783
      %v1399 = vunpack.c.l.b16 %v784
      %v1400 = vunpack.c.l.b16 %v785
      %v1401 = vunpack.c.l.b16 %v786
      %v1402 = vunpack.c.l.b16 %v787
      %v1403 = vpack.c.b16 %v1356, %v1355
      %v1404 = vpack.c.b16 %v1358, %v1357
      %v1405 = vpack.c.b16 %v1360, %v1359
      %v1406 = vpack.c.b16 %v1362, %v1361
      %v1407 = vpack.c.b16 %v1364, %v1363
      %v1408 = vpack.c.b16 %v1366, %v1365
      %v1409 = vpack.c.b16 %v1368, %v1367
      %v1410 = vpack.c.b16 %v1370, %v1369
      %v1411 = vpack.c.b16 %v1372, %v1371
      %v1412 = vpack.c.b16 %v1374, %v1373
      %v1413 = vpack.c.b16 %v1376, %v1375
      %v1414 = vpack.c.b16 %v1378, %v1377
      %v1415 = vpack.c.b16 %v1380, %v1379
      %v1416 = vpack.c.b16 %v1382, %v1381
      %v1417 = vpack.c.b16 %v1384, %v1383
      %v1418 = vpack.c.b16 %v1386, %v1385
      %v1419 = vpack.c.b16 %v1388, %v1387
      %v1420 = vpack.c.b16 %v1390, %v1389
      %v1421 = vpack.c.b16 %v1392, %v1391
      %v1422 = vpack.c.b16 %v1394, %v1393
      %v1423 = vpack.c.b16 %v1396, %v1395
      %v1424 = vpack.c.b16 %v1398, %v1397
      %v1425 = vpack.c.b16 %v1400, %v1399
      %v1426 = vpack.c.b16 %v1402, %v1401
      %1451 = vmatpush.bf16.msra.mxu0 %v1410
      %1452 = vmatpush.bf16.msra.mxu0 %v1409
      %1453 = vmatpush.bf16.msra.mxu0 %v1408
      %1454 = vmatpush.bf16.msra.mxu0 %v1407
      %1455 = vmatpush.bf16.msra.mxu0 %v1406
      %1456 = vmatpush.bf16.msra.mxu0 %v1405
      %1457 = vmatpush.bf16.msra.mxu0 %v1404
      %1458 = vmatpush.bf16.msra.mxu0 %v1403
      %1459 = vmatmul.bf16.gmra.mxu0 %v700
      %v1460 = vpop.f32.mrf.mxu0
      %v1461 = vadd.f32 %v1288, %v1460
      %v1462 = vpop.f32.mrf.mxu0
      %v1463 = vadd.f32 %v1290, %v1462
      %1464 = vmatmul.bf16.gmra.mxu0 %v701
      %v1465 = vpop.f32.mrf.mxu0
      %v1466 = vadd.f32 %v1293, %v1465
      %v1467 = vpop.f32.mrf.mxu0
      %v1468 = vadd.f32 %v1295, %v1467
      %1469 = vmatmul.bf16.gmra.mxu0 %v702
      %v1470 = vpop.f32.mrf.mxu0
      %v1471 = vadd.f32 %v1298, %v1470
      %v1472 = vpop.f32.mrf.mxu0
      %v1473 = vadd.f32 %v1300, %v1472
      %1474 = vmatmul.bf16.gmra.mxu0 %v703
      %v1475 = vpop.f32.mrf.mxu0
      %v1476 = vadd.f32 %v1303, %v1475
      %v1477 = vpop.f32.mrf.mxu0
      %v1478 = vadd.f32 %v1305, %v1477
      %1479 = vdwg.mxu0
      %1480 = vmatpush.bf16.msra.mxu0 %v1418
      %1481 = vmatpush.bf16.msra.mxu0 %v1417
      %1482 = vmatpush.bf16.msra.mxu0 %v1416
      %1483 = vmatpush.bf16.msra.mxu0 %v1415
      %1484 = vmatpush.bf16.msra.mxu0 %v1414
      %1485 = vmatpush.bf16.msra.mxu0 %v1413
      %1486 = vmatpush.bf16.msra.mxu0 %v1412
      %1487 = vmatpush.bf16.msra.mxu0 %v1411
      %1488 = vmatmul.bf16.gmra.mxu0 %v716
      %v1489 = vpop.f32.mrf.mxu0
      %v1490 = vadd.f32 %v1461, %v1489
      %v1491 = vpop.f32.mrf.mxu0
      %v1492 = vadd.f32 %v1463, %v1491
      %1493 = vmatmul.bf16.gmra.mxu0 %v717
      %v1494 = vpop.f32.mrf.mxu0
      %v1495 = vadd.f32 %v1466, %v1494
      %v1496 = vpop.f32.mrf.mxu0
      %v1497 = vadd.f32 %v1468, %v1496
      %1498 = vmatmul.bf16.gmra.mxu0 %v718
      %v1499 = vpop.f32.mrf.mxu0
      %v1500 = vadd.f32 %v1471, %v1499
      %v1501 = vpop.f32.mrf.mxu0
      %v1502 = vadd.f32 %v1473, %v1501
      %1503 = vmatmul.bf16.gmra.mxu0 %v719
      %v1504 = vpop.f32.mrf.mxu0
      %v1505 = vadd.f32 %v1476, %v1504
      %v1506 = vpop.f32.mrf.mxu0
      %v1507 = vadd.f32 %v1478, %v1506
      %1508 = vdwg.mxu0
      %1509 = vmatpush.bf16.msra.mxu0 %v1426
      %1510 = vmatpush.bf16.msra.mxu0 %v1425
      %1511 = vmatpush.bf16.msra.mxu0 %v1424
      %1512 = vmatpush.bf16.msra.mxu0 %v1423
      %1513 = vmatpush.bf16.msra.mxu0 %v1422
      %1514 = vmatpush.bf16.msra.mxu0 %v1421
      %1515 = vmatpush.bf16.msra.mxu0 %v1420
      %1516 = vmatpush.bf16.msra.mxu0 %v1419
      %1517 = vmatmul.bf16.gmra.mxu0 %v732
      %v1518 = vpop.f32.mrf.mxu0
      %v1519 = vadd.f32 %v1490, %v1518
      %v1520 = vpop.f32.mrf.mxu0
      %v1521 = vadd.f32 %v1492, %v1520
      %1522 = vmatmul.bf16.gmra.mxu0 %v733
      %v1523 = vpop.f32.mrf.mxu0
      %v1524 = vadd.f32 %v1495, %v1523
      %v1525 = vpop.f32.mrf.mxu0
      %v1526 = vadd.f32 %v1497, %v1525
      %1527 = vmatmul.bf16.gmra.mxu0 %v734
      %v1528 = vpop.f32.mrf.mxu0
      %v1529 = vadd.f32 %v1500, %v1528
      %v1530 = vpop.f32.mrf.mxu0
      %v1531 = vadd.f32 %v1502, %v1530
      %1532 = vmatmul.bf16.gmra.mxu0 %v735
      %v1533 = vpop.f32.mrf.mxu0
      %v1534 = vadd.f32 %v1505, %v1533
      %v1535 = vpop.f32.mrf.mxu0
      %v1536 = vadd.f32 %v1507, %v1535
      %1537 = vdwg.mxu0
      %s1538 = scalar_lea.vmem [#allocation2], 16
      %v1539 = vld [vmem:[%s1538] sm:$0xf]
      %v1540 = vld [vmem:[%s1538 + $0x8] sm:$0xf]
      %v1541 = vld [vmem:[%s1538 + $0x10] sm:$0xf]
      %v1542 = vld [vmem:[%s1538 + $0x18] sm:$0xf]
      %v1543 = vld [vmem:[%s1538 + $0x20] sm:$0xf]
      %v1544 = vld [vmem:[%s1538 + $0x28] sm:$0xf]
      %v1545 = vld [vmem:[%s1538 + $0x30] sm:$0xf]
      %v1546 = vld [vmem:[%s1538 + $0x38] sm:$0xf]
      %v1547 = vld [vmem:[%s1538 + $0x4] sm:$0x1]
      %v1548 = vld [vmem:[%s1538 + $0xc] sm:$0x1]
      %v1549 = vld [vmem:[%s1538 + $0x14] sm:$0x1]
      %v1550 = vld [vmem:[%s1538 + $0x1c] sm:$0x1]
      %v1551 = vld [vmem:[%s1538 + $0x24] sm:$0x1]
      %v1552 = vld [vmem:[%s1538 + $0x2c] sm:$0x1]
      %v1553 = vld [vmem:[%s1538 + $0x34] sm:$0x1]
      %v1554 = vld [vmem:[%s1538 + $0x3c] sm:$0x1]
      %v1556 = vshrl.u32 %v1539, 16
      %v1558 = vrot.slane %v1556, 4
      %v1559 = vshll.u32 %v1539, 16
      %v1561 = vrot.slane %v1559, 5
      %v1562 = vor.u32 %v1558, %v1561
      %v1563 = vrot.slane %v1562, 4
      %v1565 = vshll.u32 %v1547, 16
      %v1567 = vrot.slane %v1565, 5
      %v1568 = vsel %vm512, %v1563, %v1567
      %v1570 = vshrl.u32 %v1540, 16
      %v1572 = vrot.slane %v1570, 4
      %v1573 = vshll.u32 %v1540, 16
      %v1575 = vrot.slane %v1573, 5
      %v1576 = vor.u32 %v1572, %v1575
      %v1577 = vrot.slane %v1576, 4
      %v1579 = vshll.u32 %v1548, 16
      %v1581 = vrot.slane %v1579, 5
      %v1582 = vsel %vm512, %v1577, %v1581
      %v1584 = vshrl.u32 %v1541, 16
      %v1586 = vrot.slane %v1584, 4
      %v1587 = vshll.u32 %v1541, 16
      %v1589 = vrot.slane %v1587, 5
      %v1590 = vor.u32 %v1586, %v1589
      %v1591 = vrot.slane %v1590, 4
      %v1593 = vshll.u32 %v1549, 16
      %v1595 = vrot.slane %v1593, 5
      %v1596 = vsel %vm512, %v1591, %v1595
      %v1598 = vshrl.u32 %v1542, 16
      %v1600 = vrot.slane %v1598, 4
      %v1601 = vshll.u32 %v1542, 16
      %v1603 = vrot.slane %v1601, 5
      %v1604 = vor.u32 %v1600, %v1603
      %v1605 = vrot.slane %v1604, 4
      %v1607 = vshll.u32 %v1550, 16
      %v1609 = vrot.slane %v1607, 5
      %v1610 = vsel %vm512, %v1605, %v1609
      %v1612 = vshrl.u32 %v1543, 16
      %v1614 = vrot.slane %v1612, 4
      %v1615 = vshll.u32 %v1543, 16
      %v1617 = vrot.slane %v1615, 5
      %v1618 = vor.u32 %v1614, %v1617
      %v1619 = vrot.slane %v1618, 4
      %v1621 = vshll.u32 %v1551, 16
      %v1623 = vrot.slane %v1621, 5
      %v1624 = vsel %vm512, %v1619, %v1623
      %v1626 = vshrl.u32 %v1544, 16
      %v1628 = vrot.slane %v1626, 4
      %v1629 = vshll.u32 %v1544, 16
      %v1631 = vrot.slane %v1629, 5
      %v1632 = vor.u32 %v1628, %v1631
      %v1633 = vrot.slane %v1632, 4
      %v1635 = vshll.u32 %v1552, 16
      %v1637 = vrot.slane %v1635, 5
      %v1638 = vsel %vm512, %v1633, %v1637
      %v1640 = vshrl.u32 %v1545, 16
      %v1642 = vrot.slane %v1640, 4
      %v1643 = vshll.u32 %v1545, 16
      %v1645 = vrot.slane %v1643, 5
      %v1646 = vor.u32 %v1642, %v1645
      %v1647 = vrot.slane %v1646, 4
      %v1649 = vshll.u32 %v1553, 16
      %v1651 = vrot.slane %v1649, 5
      %v1652 = vsel %vm512, %v1647, %v1651
      %v1654 = vshrl.u32 %v1546, 16
      %v1656 = vrot.slane %v1654, 4
      %v1657 = vshll.u32 %v1546, 16
      %v1659 = vrot.slane %v1657, 5
      %v1660 = vor.u32 %v1656, %v1659
      %v1661 = vrot.slane %v1660, 4
      %v1663 = vshll.u32 %v1554, 16
      %v1665 = vrot.slane %v1663, 5
      %v1666 = vsel %vm512, %v1661, %v1665
      %v1667 = vld [vmem:[%s1538] sm:$0xe]
      %v1668 = vld [vmem:[%s1538 + $0x8] sm:$0xe]
      %v1669 = vld [vmem:[%s1538 + $0x10] sm:$0xe]
      %v1670 = vld [vmem:[%s1538 + $0x18] sm:$0xe]
      %v1671 = vld [vmem:[%s1538 + $0x20] sm:$0xe]
      %v1672 = vld [vmem:[%s1538 + $0x28] sm:$0xe]
      %v1673 = vld [vmem:[%s1538 + $0x30] sm:$0xe]
      %v1674 = vld [vmem:[%s1538 + $0x38] sm:$0xe]
      %v1691 = vrot.slane %v1667, 5
      %v1692 = vrot.slane %v1691, 4
      %v1693 = vrot.slane %v1547, 5
      %v1694 = vsel %vm651, %v1692, %v1693
      %v1695 = vrot.slane %v1668, 5
      %v1696 = vrot.slane %v1695, 4
      %v1697 = vrot.slane %v1548, 5
      %v1698 = vsel %vm651, %v1696, %v1697
      %v1699 = vrot.slane %v1669, 5
      %v1700 = vrot.slane %v1699, 4
      %v1701 = vrot.slane %v1549, 5
      %v1702 = vsel %vm651, %v1700, %v1701
      %v1703 = vrot.slane %v1670, 5
      %v1704 = vrot.slane %v1703, 4
      %v1705 = vrot.slane %v1550, 5
      %v1706 = vsel %vm651, %v1704, %v1705
      %v1707 = vrot.slane %v1671, 5
      %v1708 = vrot.slane %v1707, 4
      %v1709 = vrot.slane %v1551, 5
      %v1710 = vsel %vm651, %v1708, %v1709
      %v1711 = vrot.slane %v1672, 5
      %v1712 = vrot.slane %v1711, 4
      %v1713 = vrot.slane %v1552, 5
      %v1714 = vsel %vm651, %v1712, %v1713
      %v1715 = vrot.slane %v1673, 5
      %v1716 = vrot.slane %v1715, 4
      %v1717 = vrot.slane %v1553, 5
      %v1718 = vsel %vm651, %v1716, %v1717
      %v1719 = vrot.slane %v1674, 5
      %v1720 = vrot.slane %v1719, 4
      %v1721 = vrot.slane %v1554, 5
      %v1722 = vsel %vm651, %v1720, %v1721
      %v1731 = vunpack.c.l.b16 %v1539
      %v1732 = vunpack.c.l.b16 %v1540
      %v1733 = vunpack.c.l.b16 %v1541
      %v1734 = vunpack.c.l.b16 %v1542
      %v1735 = vunpack.c.l.b16 %v1543
      %v1736 = vunpack.c.l.b16 %v1544
      %v1737 = vunpack.c.l.b16 %v1545
      %v1738 = vunpack.c.l.b16 %v1546
      %v1739 = vpack.c.b16 %v1732, %v1731
      %v1740 = vpack.c.b16 %v1734, %v1733
      %v1741 = vpack.c.b16 %v1736, %v1735
      %v1742 = vpack.c.b16 %v1738, %v1737
      %v1747 = vunpack.c.l.b16 %v1568
      %v1748 = vunpack.c.l.b16 %v1582
      %v1749 = vunpack.c.l.b16 %v1596
      %v1750 = vunpack.c.l.b16 %v1610
      %v1751 = vunpack.c.l.b16 %v1624
      %v1752 = vunpack.c.l.b16 %v1638
      %v1753 = vunpack.c.l.b16 %v1652
      %v1754 = vunpack.c.l.b16 %v1666
      %v1755 = vpack.c.b16 %v1748, %v1747
      %v1756 = vpack.c.b16 %v1750, %v1749
      %v1757 = vpack.c.b16 %v1752, %v1751
      %v1758 = vpack.c.b16 %v1754, %v1753
      %v1763 = vunpack.c.l.b16 %v1694
      %v1764 = vunpack.c.l.b16 %v1698
      %v1765 = vunpack.c.l.b16 %v1702
      %v1766 = vunpack.c.l.b16 %v1706
      %v1767 = vunpack.c.l.b16 %v1710
      %v1768 = vunpack.c.l.b16 %v1714
      %v1769 = vunpack.c.l.b16 %v1718
      %v1770 = vunpack.c.l.b16 %v1722
      %v1771 = vpack.c.b16 %v1764, %v1763
      %v1772 = vpack.c.b16 %v1766, %v1765
      %v1773 = vpack.c.b16 %v1768, %v1767
      %v1774 = vpack.c.b16 %v1770, %v1769
      %v1779 = vld [vmem:[%s3 + $0x180] sm:$0xf]
      %v1780 = vld [vmem:[%s3 + $0x184] sm:$0xf]
      %v1781 = vld [vmem:[%s3 + $0x188] sm:$0xf]
      %v1782 = vld [vmem:[%s3 + $0x18c] sm:$0xf]
      %v1783 = vld [vmem:[%s3 + $0x190] sm:$0xf]
      %v1784 = vld [vmem:[%s3 + $0x194] sm:$0xf]
      %v1785 = vld [vmem:[%s3 + $0x198] sm:$0xf]
      %v1786 = vld [vmem:[%s3 + $0x19c] sm:$0xf]
      %v1787 = vld [vmem:[%s3 + $0x1a0] sm:$0xf]
      %v1788 = vld [vmem:[%s3 + $0x1a4] sm:$0xf]
      %v1789 = vld [vmem:[%s3 + $0x1a8] sm:$0xf]
      %v1790 = vld [vmem:[%s3 + $0x1ac] sm:$0xf]
      %v1791 = vld [vmem:[%s3 + $0x1b0] sm:$0xf]
      %v1792 = vld [vmem:[%s3 + $0x1b4] sm:$0xf]
      %v1793 = vld [vmem:[%s3 + $0x1b8] sm:$0xf]
      %v1794 = vld [vmem:[%s3 + $0x1bc] sm:$0xf]
      %v1795 = vld [vmem:[%s3 + $0x1c0] sm:$0xf]
      %v1796 = vld [vmem:[%s3 + $0x1c4] sm:$0xf]
      %v1797 = vld [vmem:[%s3 + $0x1c8] sm:$0xf]
      %v1798 = vld [vmem:[%s3 + $0x1cc] sm:$0xf]
      %v1799 = vld [vmem:[%s3 + $0x1d0] sm:$0xf]
      %v1800 = vld [vmem:[%s3 + $0x1d4] sm:$0xf]
      %v1801 = vld [vmem:[%s3 + $0x1d8] sm:$0xf]
      %v1802 = vld [vmem:[%s3 + $0x1dc] sm:$0xf]
      %v1803 = vld [vmem:[%s3 + $0x1e0] sm:$0xf]
      %v1804 = vld [vmem:[%s3 + $0x1e4] sm:$0xf]
      %v1805 = vld [vmem:[%s3 + $0x1e8] sm:$0xf]
      %v1806 = vld [vmem:[%s3 + $0x1ec] sm:$0xf]
      %v1807 = vld [vmem:[%s3 + $0x1f0] sm:$0xf]
      %v1808 = vld [vmem:[%s3 + $0x1f4] sm:$0xf]
      %v1809 = vld [vmem:[%s3 + $0x1f8] sm:$0xf]
      %v1810 = vld [vmem:[%s3 + $0x1fc] sm:$0xf]
      %v1811 = vld [vmem:[%s3 + $0x200] sm:$0xf]
      %v1812 = vld [vmem:[%s3 + $0x204] sm:$0xf]
      %v1813 = vld [vmem:[%s3 + $0x208] sm:$0xf]
      %v1814 = vld [vmem:[%s3 + $0x20c] sm:$0xf]
      %v1815 = vld [vmem:[%s3 + $0x210] sm:$0xf]
      %v1816 = vld [vmem:[%s3 + $0x214] sm:$0xf]
      %v1817 = vld [vmem:[%s3 + $0x218] sm:$0xf]
      %v1818 = vld [vmem:[%s3 + $0x21c] sm:$0xf]
      %v1819 = vld [vmem:[%s3 + $0x220] sm:$0xf]
      %v1820 = vld [vmem:[%s3 + $0x224] sm:$0xf]
      %v1821 = vld [vmem:[%s3 + $0x228] sm:$0xf]
      %v1822 = vld [vmem:[%s3 + $0x22c] sm:$0xf]
      %v1823 = vld [vmem:[%s3 + $0x230] sm:$0xf]
      %v1824 = vld [vmem:[%s3 + $0x234] sm:$0xf]
      %v1825 = vld [vmem:[%s3 + $0x238] sm:$0xf]
      %v1826 = vld [vmem:[%s3 + $0x23c] sm:$0xf]
      %v1875 = vunpack.c.l.b16 %v1779
      %v1876 = vunpack.c.l.b16 %v1780
      %v1877 = vunpack.c.l.b16 %v1781
      %v1878 = vunpack.c.l.b16 %v1782
      %v1879 = vunpack.c.l.b16 %v1783
      %v1880 = vunpack.c.l.b16 %v1784
      %v1881 = vunpack.c.l.b16 %v1785
      %v1882 = vunpack.c.l.b16 %v1786
      %v1883 = vunpack.c.l.b16 %v1787
      %v1884 = vunpack.c.l.b16 %v1788
      %v1885 = vunpack.c.l.b16 %v1789
      %v1886 = vunpack.c.l.b16 %v1790
      %v1887 = vunpack.c.l.b16 %v1791
      %v1888 = vunpack.c.l.b16 %v1792
      %v1889 = vunpack.c.l.b16 %v1793
      %v1890 = vunpack.c.l.b16 %v1794
      %v1891 = vunpack.c.l.b16 %v1795
      %v1892 = vunpack.c.l.b16 %v1796
      %v1893 = vunpack.c.l.b16 %v1797
      %v1894 = vunpack.c.l.b16 %v1798
      %v1895 = vunpack.c.l.b16 %v1799
      %v1896 = vunpack.c.l.b16 %v1800
      %v1897 = vunpack.c.l.b16 %v1801
      %v1898 = vunpack.c.l.b16 %v1802
      %v1899 = vunpack.c.l.b16 %v1803
      %v1900 = vunpack.c.l.b16 %v1804
      %v1901 = vunpack.c.l.b16 %v1805
      %v1902 = vunpack.c.l.b16 %v1806
      %v1903 = vunpack.c.l.b16 %v1807
      %v1904 = vunpack.c.l.b16 %v1808
      %v1905 = vunpack.c.l.b16 %v1809
      %v1906 = vunpack.c.l.b16 %v1810
      %v1907 = vunpack.c.l.b16 %v1811
      %v1908 = vunpack.c.l.b16 %v1812
      %v1909 = vunpack.c.l.b16 %v1813
      %v1910 = vunpack.c.l.b16 %v1814
      %v1911 = vunpack.c.l.b16 %v1815
      %v1912 = vunpack.c.l.b16 %v1816
      %v1913 = vunpack.c.l.b16 %v1817
      %v1914 = vunpack.c.l.b16 %v1818
      %v1915 = vunpack.c.l.b16 %v1819
      %v1916 = vunpack.c.l.b16 %v1820
      %v1917 = vunpack.c.l.b16 %v1821
      %v1918 = vunpack.c.l.b16 %v1822
      %v1919 = vunpack.c.l.b16 %v1823
      %v1920 = vunpack.c.l.b16 %v1824
      %v1921 = vunpack.c.l.b16 %v1825
      %v1922 = vunpack.c.l.b16 %v1826
      %v1923 = vpack.c.b16 %v1876, %v1875
      %v1924 = vpack.c.b16 %v1878, %v1877
      %v1925 = vpack.c.b16 %v1880, %v1879
      %v1926 = vpack.c.b16 %v1882, %v1881
      %v1927 = vpack.c.b16 %v1884, %v1883
      %v1928 = vpack.c.b16 %v1886, %v1885
      %v1929 = vpack.c.b16 %v1888, %v1887
      %v1930 = vpack.c.b16 %v1890, %v1889
      %v1931 = vpack.c.b16 %v1892, %v1891
      %v1932 = vpack.c.b16 %v1894, %v1893
      %v1933 = vpack.c.b16 %v1896, %v1895
      %v1934 = vpack.c.b16 %v1898, %v1897
      %v1935 = vpack.c.b16 %v1900, %v1899
      %v1936 = vpack.c.b16 %v1902, %v1901
      %v1937 = vpack.c.b16 %v1904, %v1903
      %v1938 = vpack.c.b16 %v1906, %v1905
      %v1939 = vpack.c.b16 %v1908, %v1907
      %v1940 = vpack.c.b16 %v1910, %v1909
      %v1941 = vpack.c.b16 %v1912, %v1911
      %v1942 = vpack.c.b16 %v1914, %v1913
      %v1943 = vpack.c.b16 %v1916, %v1915
      %v1944 = vpack.c.b16 %v1918, %v1917
      %v1945 = vpack.c.b16 %v1920, %v1919
      %v1946 = vpack.c.b16 %v1922, %v1921
      %1971 = vmatpush.bf16.msra.mxu0 %v1930
      %1972 = vmatpush.bf16.msra.mxu0 %v1929
      %1973 = vmatpush.bf16.msra.mxu0 %v1928
      %1974 = vmatpush.bf16.msra.mxu0 %v1927
      %1975 = vmatpush.bf16.msra.mxu0 %v1926
      %1976 = vmatpush.bf16.msra.mxu0 %v1925
      %1977 = vmatpush.bf16.msra.mxu0 %v1924
      %1978 = vmatpush.bf16.msra.mxu0 %v1923
      %1979 = vmatmul.bf16.gmra.mxu0 %v1739
      %v1980 = vpop.f32.mrf.mxu0
      %v1981 = vadd.f32 0.0, %v1980
      %v1982 = vpop.f32.mrf.mxu0
      %v1983 = vadd.f32 0.0, %v1982
      %1984 = vmatmul.bf16.gmra.mxu0 %v1740
      %v1985 = vpop.f32.mrf.mxu0
      %v1986 = vadd.f32 0.0, %v1985
      %v1987 = vpop.f32.mrf.mxu0
      %v1988 = vadd.f32 0.0, %v1987
      %1989 = vmatmul.bf16.gmra.mxu0 %v1741
      %v1990 = vpop.f32.mrf.mxu0
      %v1991 = vadd.f32 0.0, %v1990
      %v1992 = vpop.f32.mrf.mxu0
      %v1993 = vadd.f32 0.0, %v1992
      %1994 = vmatmul.bf16.gmra.mxu0 %v1742
      %v1995 = vpop.f32.mrf.mxu0
      %v1996 = vadd.f32 0.0, %v1995
      %v1997 = vpop.f32.mrf.mxu0
      %v1998 = vadd.f32 0.0, %v1997
      %1999 = vdwg.mxu0
      %2000 = vmatpush.bf16.msra.mxu0 %v1938
      %2001 = vmatpush.bf16.msra.mxu0 %v1937
      %2002 = vmatpush.bf16.msra.mxu0 %v1936
      %2003 = vmatpush.bf16.msra.mxu0 %v1935
      %2004 = vmatpush.bf16.msra.mxu0 %v1934
      %2005 = vmatpush.bf16.msra.mxu0 %v1933
      %2006 = vmatpush.bf16.msra.mxu0 %v1932
      %2007 = vmatpush.bf16.msra.mxu0 %v1931
      %2008 = vmatmul.bf16.gmra.mxu0 %v1755
      %v2009 = vpop.f32.mrf.mxu0
      %v2010 = vadd.f32 %v1981, %v2009
      %v2011 = vpop.f32.mrf.mxu0
      %v2012 = vadd.f32 %v1983, %v2011
      %2013 = vmatmul.bf16.gmra.mxu0 %v1756
      %v2014 = vpop.f32.mrf.mxu0
      %v2015 = vadd.f32 %v1986, %v2014
      %v2016 = vpop.f32.mrf.mxu0
      %v2017 = vadd.f32 %v1988, %v2016
      %2018 = vmatmul.bf16.gmra.mxu0 %v1757
      %v2019 = vpop.f32.mrf.mxu0
      %v2020 = vadd.f32 %v1991, %v2019
      %v2021 = vpop.f32.mrf.mxu0
      %v2022 = vadd.f32 %v1993, %v2021
      %2023 = vmatmul.bf16.gmra.mxu0 %v1758
      %v2024 = vpop.f32.mrf.mxu0
      %v2025 = vadd.f32 %v1996, %v2024
      %v2026 = vpop.f32.mrf.mxu0
      %v2027 = vadd.f32 %v1998, %v2026
      %2028 = vdwg.mxu0
      %2029 = vmatpush.bf16.msra.mxu0 %v1946
      %2030 = vmatpush.bf16.msra.mxu0 %v1945
      %2031 = vmatpush.bf16.msra.mxu0 %v1944
      %2032 = vmatpush.bf16.msra.mxu0 %v1943
      %2033 = vmatpush.bf16.msra.mxu0 %v1942
      %2034 = vmatpush.bf16.msra.mxu0 %v1941
      %2035 = vmatpush.bf16.msra.mxu0 %v1940
      %2036 = vmatpush.bf16.msra.mxu0 %v1939
      %2037 = vmatmul.bf16.gmra.mxu0 %v1771
      %v2038 = vpop.f32.mrf.mxu0
      %v2039 = vadd.f32 %v2010, %v2038
      %v2040 = vpop.f32.mrf.mxu0
      %v2041 = vadd.f32 %v2012, %v2040
      %2042 = vmatmul.bf16.gmra.mxu0 %v1772
      %v2043 = vpop.f32.mrf.mxu0
      %v2044 = vadd.f32 %v2015, %v2043
      %v2045 = vpop.f32.mrf.mxu0
      %v2046 = vadd.f32 %v2017, %v2045
      %2047 = vmatmul.bf16.gmra.mxu0 %v1773
      %v2048 = vpop.f32.mrf.mxu0
      %v2049 = vadd.f32 %v2020, %v2048
      %v2050 = vpop.f32.mrf.mxu0
      %v2051 = vadd.f32 %v2022, %v2050
      %2052 = vmatmul.bf16.gmra.mxu0 %v1774
      %v2053 = vpop.f32.mrf.mxu0
      %v2054 = vadd.f32 %v2025, %v2053
      %v2055 = vpop.f32.mrf.mxu0
      %v2056 = vadd.f32 %v2027, %v2055
      %2057 = vdwg.mxu0
      %v2058 = vadd.f32 %v1519, %v2039
      %v2059 = vadd.f32 %v1521, %v2041
      %v2060 = vadd.f32 %v1524, %v2044
      %v2061 = vadd.f32 %v1526, %v2046
      %v2062 = vadd.f32 %v1529, %v2049
      %v2063 = vadd.f32 %v1531, %v2051
      %v2064 = vadd.f32 %v1534, %v2054
      %v2065 = vadd.f32 %v1536, %v2056
      %v2066 = vpack.c.bf16 %v2058, %v2058
      %v2067 = vpack.c.bf16 %v2059, %v2059
      %v2068 = vpack.c.bf16 %v2060, %v2060
      %v2069 = vpack.c.bf16 %v2061, %v2061
      %v2070 = vpack.c.bf16 %v2062, %v2062
      %v2071 = vpack.c.bf16 %v2063, %v2063
      %v2072 = vpack.c.bf16 %v2064, %v2064
      %v2073 = vpack.c.bf16 %v2065, %v2065
      %2074 = vst [vmem:[%s231] sm:$0xf] %v2066
      %2075 = vst [vmem:[%s231 + $0x4] sm:$0xf] %v2067
      %2076 = vst [vmem:[%s231 + $0x8] sm:$0xf] %v2068
      %2077 = vst [vmem:[%s231 + $0xc] sm:$0xf] %v2069
      %2078 = vst [vmem:[%s231 + $0x10] sm:$0xf] %v2070
      %2079 = vst [vmem:[%s231 + $0x14] sm:$0xf] %v2071
      %2080 = vst [vmem:[%s231 + $0x18] sm:$0xf] %v2072
      %2081 = vst [vmem:[%s231 + $0x1c] sm:$0xf] %v2073
      %v2082 = vrot.slane %v2058, 4
      %v2083 = vadd.f32 %v2058, %v2082
      %v2084 = vrot.slane %v2083, 2
      %v2085 = vadd.f32 %v2083, %v2084
      %v2086 = vrot.slane %v2085, 1
      %v2087 = vadd.f32 %v2085, %v2086
      %v2088 = vadd.f32 %v2087, 0.0
      %v2089 = vmul.f32 %v2058, %v2058
      %v2090 = vrot.slane %v2089, 4
      %v2091 = vadd.f32 %v2089, %v2090
      %v2092 = vrot.slane %v2091, 2
      %v2093 = vadd.f32 %v2091, %v2092
      %v2094 = vrot.slane %v2093, 1
      %v2095 = vadd.f32 %v2093, %v2094
      %v2096 = vadd.f32 %v2095, 0.0
      %v2097 = vrot.slane %v2059, 4
      %v2098 = vadd.f32 %v2059, %v2097
      %v2099 = vrot.slane %v2098, 2
      %v2100 = vadd.f32 %v2098, %v2099
      %v2101 = vrot.slane %v2100, 1
      %v2102 = vadd.f32 %v2100, %v2101
      %v2103 = vadd.f32 %v2088, %v2102
      %v2104 = vmul.f32 %v2059, %v2059
      %v2105 = vrot.slane %v2104, 4
      %v2106 = vadd.f32 %v2104, %v2105
      %v2107 = vrot.slane %v2106, 2
      %v2108 = vadd.f32 %v2106, %v2107
      %v2109 = vrot.slane %v2108, 1
      %v2110 = vadd.f32 %v2108, %v2109
      %v2111 = vadd.f32 %v2096, %v2110
      %v2112 = vrot.slane %v2060, 4
      %v2113 = vadd.f32 %v2060, %v2112
      %v2114 = vrot.slane %v2113, 2
      %v2115 = vadd.f32 %v2113, %v2114
      %v2116 = vrot.slane %v2115, 1
      %v2117 = vadd.f32 %v2115, %v2116
      %v2118 = vadd.f32 %v2103, %v2117
      %v2119 = vmul.f32 %v2060, %v2060
      %v2120 = vrot.slane %v2119, 4
      %v2121 = vadd.f32 %v2119, %v2120
      %v2122 = vrot.slane %v2121, 2
      %v2123 = vadd.f32 %v2121, %v2122
      %v2124 = vrot.slane %v2123, 1
      %v2125 = vadd.f32 %v2123, %v2124
      %v2126 = vadd.f32 %v2111, %v2125
      %v2127 = vrot.slane %v2061, 4
      %v2128 = vadd.f32 %v2061, %v2127
      %v2129 = vrot.slane %v2128, 2
      %v2130 = vadd.f32 %v2128, %v2129
      %v2131 = vrot.slane %v2130, 1
      %v2132 = vadd.f32 %v2130, %v2131
      %v2133 = vadd.f32 %v2118, %v2132
      %v2134 = vmul.f32 %v2061, %v2061
      %v2135 = vrot.slane %v2134, 4
      %v2136 = vadd.f32 %v2134, %v2135
      %v2137 = vrot.slane %v2136, 2
      %v2138 = vadd.f32 %v2136, %v2137
      %v2139 = vrot.slane %v2138, 1
      %v2140 = vadd.f32 %v2138, %v2139
      %v2141 = vadd.f32 %v2126, %v2140
      %v2142 = vrot.slane %v2062, 4
      %v2143 = vadd.f32 %v2062, %v2142
      %v2144 = vrot.slane %v2143, 2
      %v2145 = vadd.f32 %v2143, %v2144
      %v2146 = vrot.slane %v2145, 1
      %v2147 = vadd.f32 %v2145, %v2146
      %v2148 = vadd.f32 %v2133, %v2147
      %v2149 = vmul.f32 %v2062, %v2062
      %v2150 = vrot.slane %v2149, 4
      %v2151 = vadd.f32 %v2149, %v2150
      %v2152 = vrot.slane %v2151, 2
      %v2153 = vadd.f32 %v2151, %v2152
      %v2154 = vrot.slane %v2153, 1
      %v2155 = vadd.f32 %v2153, %v2154
      %v2156 = vadd.f32 %v2141, %v2155
      %v2157 = vrot.slane %v2063, 4
      %v2158 = vadd.f32 %v2063, %v2157
      %v2159 = vrot.slane %v2158, 2
      %v2160 = vadd.f32 %v2158, %v2159
      %v2161 = vrot.slane %v2160, 1
      %v2162 = vadd.f32 %v2160, %v2161
      %v2163 = vadd.f32 %v2148, %v2162
      %v2164 = vmul.f32 %v2063, %v2063
      %v2165 = vrot.slane %v2164, 4
      %v2166 = vadd.f32 %v2164, %v2165
      %v2167 = vrot.slane %v2166, 2
      %v2168 = vadd.f32 %v2166, %v2167
      %v2169 = vrot.slane %v2168, 1
      %v2170 = vadd.f32 %v2168, %v2169
      %v2171 = vadd.f32 %v2156, %v2170
      %v2172 = vrot.slane %v2064, 4
      %v2173 = vadd.f32 %v2064, %v2172
      %v2174 = vrot.slane %v2173, 2
      %v2175 = vadd.f32 %v2173, %v2174
      %v2176 = vrot.slane %v2175, 1
      %v2177 = vadd.f32 %v2175, %v2176
      %v2178 = vadd.f32 %v2163, %v2177
      %v2179 = vmul.f32 %v2064, %v2064
      %v2180 = vrot.slane %v2179, 4
      %v2181 = vadd.f32 %v2179, %v2180
      %v2182 = vrot.slane %v2181, 2
      %v2183 = vadd.f32 %v2181, %v2182
      %v2184 = vrot.slane %v2183, 1
      %v2185 = vadd.f32 %v2183, %v2184
      %v2186 = vadd.f32 %v2171, %v2185
      %v2187 = vrot.slane %v2065, 4
      %v2188 = vadd.f32 %v2065, %v2187
      %v2189 = vrot.slane %v2188, 2
      %v2190 = vadd.f32 %v2188, %v2189
      %v2191 = vrot.slane %v2190, 1
      %v2192 = vadd.f32 %v2190, %v2191
      %v2193 = vadd.f32 %v2178, %v2192
      %v2194 = vmul.f32 %v2065, %v2065
      %v2195 = vrot.slane %v2194, 4
      %v2196 = vadd.f32 %v2194, %v2195
      %v2197 = vrot.slane %v2196, 2
      %v2198 = vadd.f32 %v2196, %v2197
      %v2199 = vrot.slane %v2198, 1
      %v2200 = vadd.f32 %v2198, %v2199
      %v2201 = vadd.f32 %v2186, %v2200
      %2202 = vst [vmem:[%s235] sm:$0x1] %v2193
      %2203 = vst [vmem:[%s235 + $0x1] sm:$0x1] %v2201
      %p2204 = scmp.lt.s32.totalorder %s17, 1
      %s2205 = scalar_select %p2204, %s17, 1
      %s2206 = smul.addr %s2205, 8
      %s2207 = smul.addr %s2206, 4
      %s2208 = scalar_lea.vmem %s4, %s2207
      %p2209 = scmp.lt.s32.totalorder %s17, 1
      %s2210 = scalar_select %p2209, %s17, 1
      %s2211 = smul.addr %s2210, 2
      %s2212 = scalar_lea.vmem %s5, %s2211
      // Predicated region
      $region37: #{down_forward.4} parent=35 // pred_check
        %p2213 = pneg %p124
      $region38: #{down_forward.4} parent=35 // pred_check_branch
        %2215 = sbr.rel (%p2213) target = $region40
      $region39: #{down_forward.4} parent=35 // pred_region
        _
      $region40: #{down_forward.4} parent=35 // pred_fallthru
        _
      // Predicated region
      $region41: #{down_forward.4} parent=35 // pred_check
        %p2216 = pneg %p150
      $region42: #{down_forward.4} parent=35 // pred_check_branch
        %2218 = sbr.rel (%p2216) target = $region44
      $region43: #{down_forward.4} parent=35 // pred_region
        _
      $region44: #{down_forward.4} parent=35 // pred_fallthru
        _
    $region36: #{down_forward.4} parent=5 // pred_fallthru
      _
    %p2219 = scmp.le.s32.totalorder 2, %s12
    // Predicated region
    $region45: #{down_forward.4} parent=5 // pred_check
      %p2220 = pneg %p2219
    $region46: #{down_forward.4} parent=5 // pred_check_branch
      %2222 = sbr.rel (%p2220) target = $region48
    $region47: #{down_forward.4} parent=5 // pred_region
      %s2223 = ssub.s32 %s12, 2
      // Predicated region
      $region49: #{down_forward.4} parent=47 // pred_check
        %p2224 = pneg %p130
      $region50: #{down_forward.4} parent=47 // pred_check_branch
        %2226 = sbr.rel (%p2224) target = $region52
      $region51: #{down_forward.4} parent=47 // pred_region
        %p2227 = scmp.lt.s32.totalorder %s18, 1
        %s2228 = scalar_select %p2227, %s18, 1
        %s2229 = smul.addr %s2228, 8
        %s2230 = smul.addr %s2229, 4
        %s2231 = scalar_lea.vmem %s4, %s2230
      $region52: #{down_forward.4} parent=47 // pred_fallthru
        _
      // Predicated region
      $region53: #{down_forward.4} parent=47 // pred_check
        %p2232 = pneg %p156
      $region54: #{down_forward.4} parent=47 // pred_check_branch
        %2234 = sbr.rel (%p2232) target = $region56
      $region55: #{down_forward.4} parent=47 // pred_region
        %p2235 = scmp.lt.s32.totalorder %s18, 1
        %s2236 = scalar_select %p2235, %s18, 1
        %s2237 = smul.addr %s2236, 2
        %s2238 = scalar_lea.vmem %s5, %s2237
      $region56: #{down_forward.4} parent=47 // pred_fallthru
        _
    $region48: #{down_forward.4} parent=5 // pred_fallthru
      _
  $region6: #{down_forward.4} parent=0 // loop_footer
    %s16 = sadd.s32 1, %s12
  $region7: #{down_forward.4} parent=0 // loop_footer_branch
    %11 = sbr.rel target = $region3
  $region8: #{down_forward.4} parent=0 // loop_exit
    _

</llo_original>
